<compile_context>
chip_gen: v6e
topology: v6e:2x2x1
jax: 0.10.0
libtpu: 0.0.40
codegen_flags: <defaults>
</compile_context>

<pallas_src>
import functools

import numpy as np
import jax
import jax.numpy as jnp
from jax import lax
from jax.experimental import pallas as pl
from jax.experimental.pallas import tpu as pltpu

LANE = 128
TB_MAX = 128          # max images per grid step (per-step VMEM ~8-10 MB)


def _cdiv(a, b):
    return -(-a // b)


# ----------------------------------------------------------------------------
# The single fused kernel: conv1+pool -> conv2+pool -> fc1 -> fc2 -> fc3
# ----------------------------------------------------------------------------
def _cifar_net_kernel(x_ref, t1_ref, b1c_ref, t2_ref, b2c_ref,
                      f1_ref, b1f_ref, f2_ref, b2f_ref, f3_ref, b3f_ref,
                      o_ref, *, tb):
    f32 = jnp.float32
    x = x_ref[0]            # (32*tb, 128) bf16; row = (h%4)*8*tb + (h//4)*tb + n
    t1 = t1_ref[...]        # (10, 128, 128) bf16, index = pj*5 + kh
    t2 = t2_ref[...]        # (10, 128, 128) bf16, index = pj2*5 + kh2
    f1 = f1_ref[...]        # (5, 128, 128) bf16, index = r2

    # ---- conv1 (3->6, k=5) + ReLU + 2x2 max-pool -------------------------
    # Pooled output rows r = 2u + rpar are computed per row-parity group so
    # that conv2 can slice them contiguously.  Lane = s*8 + co (s: pooled col).
    p1 = []                                            # [rpar] -> (7*tb, 128) bf16
    for rpar in range(2):
        best = None
        for pi in range(2):                            # pool row phase
            for pj in range(2):                        # pool col phase (in T1)
                acc = None
                for kh in range(5):                    # conv row tap
                    q = 2 * rpar + pi + kh             # input row = 4u + q
                    start = ((q % 4) * 8 + q // 4) * tb
                    lhs = x[start:start + 7 * tb, :]   # (7*tb, 128)
                    c = jnp.dot(lhs, t1[pj * 5 + kh], preferred_element_type=f32)
                    acc = c if acc is None else acc + c
                best = acc if best is None else jnp.maximum(best, acc)
        # max-before-bias is exact: bias is per-channel, ReLU is monotone.
        p1.append(jnp.maximum(best + b1c_ref[...], 0.0).astype(jnp.bfloat16))

    # ---- conv2 (6->16, k=5) + ReLU + 2x2 max-pool ------------------------
    # Input row h1 = 2u + parity lives in p1[parity] at row-block u.
    # Output lane = s2*16 + co2 (s2: pooled col).
    best = None
    for pi in range(2):
        for pj in range(2):
            acc = None
            for kh in range(5):
                q = pi + kh
                lhs = p1[q % 2][(q // 2) * tb:(q // 2 + 5) * tb, :]  # (5*tb, 128)
                c = jnp.dot(lhs, t2[pj * 5 + kh], preferred_element_type=f32)
                acc = c if acc is None else acc + c
            best = acc if best is None else jnp.maximum(best, acc)
    p2 = jnp.maximum(best + b2c_ref[...], 0.0).astype(jnp.bfloat16)  # (5*tb, 128)

    # ---- fc1 -> ReLU -> fc2 -> ReLU -> fc3 (all intermediates in-kernel) --
    # fc1 consumes the conv2 layout directly: sum over output rows r2 of
    # (tb, 128) @ F1[r2]; F1 was packed to match torch's (c, h, w) flatten.
    h = None
    for r2 in range(5):
        c = jnp.dot(p2[r2 * tb:(r2 + 1) * tb, :], f1[r2],
                    preferred_element_type=f32)
        h = c if h is None else h + c
    h = jnp.maximum(h + b1f_ref[...], 0.0).astype(jnp.bfloat16)      # (tb, 128)
    h = jnp.dot(h, f2_ref[...], preferred_element_type=f32)
    h = jnp.maximum(h + b2f_ref[...], 0.0).astype(jnp.bfloat16)
    out = jnp.dot(h, f3_ref[...], preferred_element_type=f32) + b3f_ref[...]
    o_ref[0] = out                                                   # (tb, 128) f32


# ----------------------------------------------------------------------------
# Wrapper: batch tiling (grid >= 2 when N >= 2), input layout prep, pallas_call
# ----------------------------------------------------------------------------
def _resident(shape):
    # Weight / bias spec: full block, constant index_map -> stays VMEM-resident.
    return pl.BlockSpec(shape, lambda g, _s=len(shape): (0,) * _s)


def cifar_net_forward(x_nchw, prepped):
    N = x_nchw.shape[0]
    ntiles = 1 if N < 2 else max(2, _cdiv(N, TB_MAX))   # grid>=2 -> v7x megacore
    tb = _cdiv(N, ntiles)
    G = _cdiv(N, tb)
    Np = G * tb

    # Input layout: NCHW f32 -> (G, 32*tb, 128) bf16 with lane = w*4 + c and
    # row = (h%4)*(8*tb) + (h//4)*tb + n.  Pure permutation of the raw input
    # (8 KB/image), done once by XLA -- no patch duplication.
    x = jnp.transpose(x_nchw, (0, 2, 3, 1)).astype(jnp.bfloat16)       # (N,32,32,3)
    x = jnp.pad(x, ((0, Np - N), (0, 0), (0, 0), (0, 1)))              # (Np,32,32,4)
    x = x.reshape(G, tb, 32, 128)
    x = x.reshape(G, tb, 8, 4, 128).transpose(0, 3, 2, 1, 4)           # (G,4,8,tb,128)
    x = x.reshape(G, 32 * tb, 128)

    out = pl.pallas_call(
        functools.partial(_cifar_net_kernel, tb=tb),
        grid=(G,),
        out_shape=jax.ShapeDtypeStruct((G, tb, LANE), jnp.float32),
        in_specs=[
            pl.BlockSpec((1, 32 * tb, LANE), lambda g: (g, 0, 0)),     # input tile
            _resident((10, LANE, LANE)), _resident((1, LANE)),         # conv1
            _resident((10, LANE, LANE)), _resident((1, LANE)),         # conv2
            _resident((5, LANE, LANE)),  _resident((1, LANE)),         # fc1
            _resident((LANE, LANE)),     _resident((1, LANE)),         # fc2
            _resident((LANE, LANE)),     _resident((1, LANE)),         # fc3
        ],
        out_specs=pl.BlockSpec((1, tb, LANE), lambda g: (g, 0, 0)),
        compiler_params=pltpu.CompilerParams(
            dimension_semantics=("parallel",),
            vmem_limit_bytes=32 * 1024 * 1024),
    )(x, prepped["t1"], prepped["b1c"], prepped["t2"], prepped["b2c"],
      prepped["f1"], prepped["b1f"], prepped["f2"], prepped["b2f"],
      prepped["f3"], prepped["b3f"])

    return out.reshape(G * tb, LANE)[:N, :10]


# ----------------------------------------------------------------------------
# Parameters (torch-default-style uniform init)
# ----------------------------------------------------------------------------
def _uniform(key, shape, fan_in):
    bound = 1.0 / jnp.sqrt(jnp.float32(fan_in))
    return jax.random.uniform(key, shape, jnp.float32, -bound, bound)


def init_params(key):
    ks = jax.random.split(key, 10)
    return {
        "conv1_w": _uniform(ks[0], (6, 3, 5, 5), 3 * 5 * 5),
        "conv1_b": _uniform(ks[1], (6,), 3 * 5 * 5),
        "conv2_w": _uniform(ks[2], (16, 6, 5, 5), 6 * 5 * 5),
        "conv2_b": _uniform(ks[3], (16,), 6 * 5 * 5),
        "fc1_w": _uniform(ks[4], (120, 400), 400),      # torch Linear: (out, in)
        "fc1_b": _uniform(ks[5], (120,), 400),
        "fc2_w": _uniform(ks[6], (84, 120), 120),
        "fc2_b": _uniform(ks[7], (84,), 120),
        "fc3_w": _uniform(ks[8], (10, 84), 84),
        "fc3_b": _uniform(ks[9], (10,), 84),
    }


# ----------------------------------------------------------------------------
# One-time host-side packing of PyTorch-layout weights into the kernel layout.
# ----------------------------------------------------------------------------
def prepare_params(params):
    w1 = np.asarray(params["conv1_w"], np.float32)      # (6,3,5,5)
    b1 = np.asarray(params["conv1_b"], np.float32)
    w2 = np.asarray(params["conv2_w"], np.float32)      # (16,6,5,5)
    b2 = np.asarray(params["conv2_b"], np.float32)
    fw1 = np.asarray(params["fc1_w"], np.float32)       # (120,400)
    fb1 = np.asarray(params["fc1_b"], np.float32)
    fw2 = np.asarray(params["fc2_w"], np.float32)       # (84,120)
    fb2 = np.asarray(params["fc2_b"], np.float32)
    fw3 = np.asarray(params["fc3_w"], np.float32)       # (10,84)
    fb3 = np.asarray(params["fc3_b"], np.float32)

    # conv1 Toeplitz: input lane l = w*4 + c, output lane o = s*8 + co,
    # T1[pj,kh][(2s+pj+kw)*4 + c, s*8 + co] = w1[co,c,kh,kw].
    t1 = np.zeros((2, 5, LANE, LANE), np.float32)
    s1 = np.arange(14)
    for pj in range(2):
        for kh in range(5):
            for kw in range(5):
                for c in range(3):
                    rows = (2 * s1 + pj + kw) * 4 + c
                    for co in range(6):
                        t1[pj, kh, rows, s1 * 8 + co] = w1[co, c, kh, kw]
    t1 = t1.reshape(10, LANE, LANE)
    b1c = np.zeros((1, LANE), np.float32)
    for si in range(14):
        b1c[0, si * 8: si * 8 + 6] = b1

    # conv2 Toeplitz: input lane l = w1_*8 + c, output lane o = s2*16 + co2.
    t2 = np.zeros((2, 5, LANE, LANE), np.float32)
    s2 = np.arange(5)
    for pj in range(2):
        for kh in range(5):
            for kw in range(5):
                for c in range(6):
                    rows = (2 * s2 + pj + kw) * 8 + c
                    for co in range(16):
                        t2[pj, kh, rows, s2 * 16 + co] = w2[co, c, kh, kw]
    t2 = t2.reshape(10, LANE, LANE)
    b2c = np.zeros((1, LANE), np.float32)
    for si in range(5):
        b2c[0, si * 16: si * 16 + 16] = b2

    # fc1 grouped by conv2 output row r2, consuming lane = s2*16 + co2 directly,
    # matching torch's view(-1, 16*5*5) flatten order f = co2*25 + r2*5 + s2.
    f1 = np.zeros((5, LANE, LANE), np.float32)
    for r2 in range(5):
        for s2i in range(5):
            for co in range(16):
                f1[r2, s2i * 16 + co, :120] = fw1[:, co * 25 + r2 * 5 + s2i]
    b1f = np.zeros((1, LANE), np.float32); b1f[0, :120] = fb1

    f2 = np.zeros((LANE, LANE), np.float32); f2[:120, :84] = fw2.T
    b2f = np.zeros((1, LANE), np.float32);   b2f[0, :84] = fb2
    f3 = np.zeros((LANE, LANE), np.float32); f3[:84, :10] = fw3.T
    b3f = np.zeros((1, LANE), np.float32);   b3f[0, :10] = fb3

    bf16 = lambda a: jnp.asarray(a, jnp.bfloat16)
    f32 = lambda a: jnp.asarray(a, jnp.float32)
    return {"t1": bf16(t1), "b1c": f32(b1c), "t2": bf16(t2), "b2c": f32(b2c),
            "f1": bf16(f1), "b1f": f32(b1f), "f2": bf16(f2), "b2f": f32(b2f),
            "f3": bf16(f3), "b3f": f32(b3f)}


# ----------------------------------------------------------------------------
# Pure-JAX reference (mirrors CIFAR_Net.forward) for a numerical check.
# ----------------------------------------------------------------------------
def _reference_forward(x, params):
    dn = ("NCHW", "OIHW", "NCHW")

    def conv(v, w, b):
        y = lax.conv_general_dilated(v, w, (1, 1), "VALID", dimension_numbers=dn)
        return y + b[None, :, None, None]

    def pool(v):
        return lax.reduce_window(v, -jnp.inf, lax.max,
                                 (1, 1, 2, 2), (1, 1, 2, 2), "VALID")

    y = pool(jax.nn.relu(conv(x, params["conv1_w"], params["conv1_b"])))
    y = pool(jax.nn.relu(conv(y, params["conv2_w"], params["conv2_b"])))
    feat = y.reshape(y.shape[0], 16 * 5 * 5)
    h = jax.nn.relu(feat @ params["fc1_w"].T + params["fc1_b"])
    h = jax.nn.relu(h @ params["fc2_w"].T + params["fc2_b"])
    return h @ params["fc3_w"].T + params["fc3_b"]


# ----------------------------------------------------------------------------
if __name__ == "__main__":
    key = jax.random.PRNGKey(0)
    k_param, k_input = jax.random.split(key)

    params = init_params(k_param)
    prepped = prepare_params(params)

    # CIFAR-sized input is required by the 16*5*5 flatten; small batch = 2
    # (-> tb=1, grid=(2,): both v7x TensorCores get one image).
    x = jax.random.normal(k_input, (2, 3, 32, 32), jnp.float32)

    fwd = jax.jit(cifar_net_forward)
    logits = jax.block_until_ready(fwd(x, prepped))

    assert logits.shape == (2, 10)
    assert bool(jnp.all(jnp.isfinite(logits)))

    ref = _reference_forward(x, params)
    max_err = float(jnp.max(jnp.abs(logits - ref)))
    assert max_err < 5e-2, f"kernel vs reference max |err| = {max_err}"
    print("KERNEL_OK")
</pallas_src>

<mosaic_0001>
module attributes {stable_mosaic.version = 11 : i64} {
  func.func @_cifar_net_kernel(%arg0: i32, %arg1: memref<1x32x128xbf16, #tpu.memory_space<vmem>>, %arg2: memref<10x128x128xbf16, #tpu.memory_space<vmem>>, %arg3: memref<1x128xf32, #tpu.memory_space<vmem>>, %arg4: memref<10x128x128xbf16, #tpu.memory_space<vmem>>, %arg5: memref<1x128xf32, #tpu.memory_space<vmem>>, %arg6: memref<5x128x128xbf16, #tpu.memory_space<vmem>>, %arg7: memref<1x128xf32, #tpu.memory_space<vmem>>, %arg8: memref<128x128xbf16, #tpu.memory_space<vmem>>, %arg9: memref<1x128xf32, #tpu.memory_space<vmem>>, %arg10: memref<128x128xbf16, #tpu.memory_space<vmem>>, %arg11: memref<1x128xf32, #tpu.memory_space<vmem>>, %arg12: memref<1x1x128xf32, #tpu.memory_space<vmem>>) attributes {dimension_semantics = [#tpu.dimension_semantics<parallel>], iteration_bounds = array<i64: 2>, scalar_prefetch = 0 : i64, scratch_operands = 0 : i64, tpu.core_type = #tpu.core_type<tc>, window_params = [{transform_indices = @transform_0, window_bounds = array<i64: 1, 32, 128>}, {pipeline_mode = #tpu.pipeline_mode<synchronous>, transform_indices = @transform_1, window_bounds = array<i64: 10, 128, 128>}, {pipeline_mode = #tpu.pipeline_mode<synchronous>, transform_indices = @transform_2, window_bounds = array<i64: 1, 128>}, {pipeline_mode = #tpu.pipeline_mode<synchronous>, transform_indices = @transform_3, window_bounds = array<i64: 10, 128, 128>}, {pipeline_mode = #tpu.pipeline_mode<synchronous>, transform_indices = @transform_4, window_bounds = array<i64: 1, 128>}, {pipeline_mode = #tpu.pipeline_mode<synchronous>, transform_indices = @transform_5, window_bounds = array<i64: 5, 128, 128>}, {pipeline_mode = #tpu.pipeline_mode<synchronous>, transform_indices = @transform_6, window_bounds = array<i64: 1, 128>}, {pipeline_mode = #tpu.pipeline_mode<synchronous>, transform_indices = @transform_7, window_bounds = array<i64: 128, 128>}, {pipeline_mode = #tpu.pipeline_mode<synchronous>, transform_indices = @transform_8, window_bounds = array<i64: 1, 128>}, {pipeline_mode = #tpu.pipeline_mode<synchronous>, transform_indices = @transform_9, window_bounds = array<i64: 128, 128>}, {pipeline_mode = #tpu.pipeline_mode<synchronous>, transform_indices = @transform_10, window_bounds = array<i64: 1, 128>}, {transform_indices = @transform_11, window_bounds = array<i64: 1, 1, 128>}]} {
    %c0 = arith.constant 0 : index
    %c0_0 = arith.constant 0 : index
    %c0_1 = arith.constant 0 : index
    %0 = vector.load %arg1[%c0, %c0_0, %c0_1] : memref<1x32x128xbf16, #tpu.memory_space<vmem>>, vector<1x32x128xbf16>
    %1 = vector.shape_cast %0 : vector<1x32x128xbf16> to vector<32x128xbf16>
    %c0_2 = arith.constant 0 : index
    %c0_3 = arith.constant 0 : index
    %c0_4 = arith.constant 0 : index
    %2 = vector.load %arg2[%c0_2, %c0_3, %c0_4] : memref<10x128x128xbf16, #tpu.memory_space<vmem>>, vector<10x128x128xbf16>
    %c0_5 = arith.constant 0 : index
    %c0_6 = arith.constant 0 : index
    %c0_7 = arith.constant 0 : index
    %3 = vector.load %arg4[%c0_5, %c0_6, %c0_7] : memref<10x128x128xbf16, #tpu.memory_space<vmem>>, vector<10x128x128xbf16>
    %c0_8 = arith.constant 0 : index
    %c0_9 = arith.constant 0 : index
    %c0_10 = arith.constant 0 : index
    %4 = vector.load %arg6[%c0_8, %c0_9, %c0_10] : memref<5x128x128xbf16, #tpu.memory_space<vmem>>, vector<5x128x128xbf16>
    %5 = vector.extract_strided_slice %1 {offsets = [0, 0], sizes = [7, 128], strides = [1, 1]} : vector<32x128xbf16> to vector<7x128xbf16>
    %6 = vector.extract_strided_slice %2 {offsets = [0, 0, 0], sizes = [1, 128, 128], strides = [1, 1, 1]} : vector<10x128x128xbf16> to vector<1x128x128xbf16>
    %7 = vector.shape_cast %6 : vector<1x128x128xbf16> to vector<128x128xbf16>
    %cst = arith.constant dense<0.000000e+00> : vector<7x128xf32>
    %8 = tpu.matmul %5, %7, %cst {dimension_numbers = #tpu.dot_dimension_numbers<[1], [0], [0], [1], [0, 0, 1, 1], [], []>} : vector<7x128xbf16>, vector<128x128xbf16>, vector<7x128xf32> -> vector<7x128xf32>
    %9 = vector.extract_strided_slice %1 {offsets = [8, 0], sizes = [7, 128], strides = [1, 1]} : vector<32x128xbf16> to vector<7x128xbf16>
    %10 = vector.extract_strided_slice %2 {offsets = [1, 0, 0], sizes = [1, 128, 128], strides = [1, 1, 1]} : vector<10x128x128xbf16> to vector<1x128x128xbf16>
    %11 = vector.shape_cast %10 : vector<1x128x128xbf16> to vector<128x128xbf16>
    %cst_11 = arith.constant dense<0.000000e+00> : vector<7x128xf32>
    %12 = tpu.matmul %9, %11, %cst_11 {dimension_numbers = #tpu.dot_dimension_numbers<[1], [0], [0], [1], [0, 0, 1, 1], [], []>} : vector<7x128xbf16>, vector<128x128xbf16>, vector<7x128xf32> -> vector<7x128xf32>
    %13 = arith.addf %8, %12 : vector<7x128xf32>
    %14 = vector.extract_strided_slice %1 {offsets = [16, 0], sizes = [7, 128], strides = [1, 1]} : vector<32x128xbf16> to vector<7x128xbf16>
    %15 = vector.extract_strided_slice %2 {offsets = [2, 0, 0], sizes = [1, 128, 128], strides = [1, 1, 1]} : vector<10x128x128xbf16> to vector<1x128x128xbf16>
    %16 = vector.shape_cast %15 : vector<1x128x128xbf16> to vector<128x128xbf16>
    %cst_12 = arith.constant dense<0.000000e+00> : vector<7x128xf32>
    %17 = tpu.matmul %14, %16, %cst_12 {dimension_numbers = #tpu.dot_dimension_numbers<[1], [0], [0], [1], [0, 0, 1, 1], [], []>} : vector<7x128xbf16>, vector<128x128xbf16>, vector<7x128xf32> -> vector<7x128xf32>
    %18 = arith.addf %13, %17 : vector<7x128xf32>
    %19 = vector.extract_strided_slice %1 {offsets = [24, 0], sizes = [7, 128], strides = [1, 1]} : vector<32x128xbf16> to vector<7x128xbf16>
    %20 = vector.extract_strided_slice %2 {offsets = [3, 0, 0], sizes = [1, 128, 128], strides = [1, 1, 1]} : vector<10x128x128xbf16> to vector<1x128x128xbf16>
    %21 = vector.shape_cast %20 : vector<1x128x128xbf16> to vector<128x128xbf16>
    %cst_13 = arith.constant dense<0.000000e+00> : vector<7x128xf32>
    %22 = tpu.matmul %19, %21, %cst_13 {dimension_numbers = #tpu.dot_dimension_numbers<[1], [0], [0], [1], [0, 0, 1, 1], [], []>} : vector<7x128xbf16>, vector<128x128xbf16>, vector<7x128xf32> -> vector<7x128xf32>
    %23 = arith.addf %18, %22 : vector<7x128xf32>
    %24 = vector.extract_strided_slice %1 {offsets = [1, 0], sizes = [7, 128], strides = [1, 1]} : vector<32x128xbf16> to vector<7x128xbf16>
    %25 = vector.extract_strided_slice %2 {offsets = [4, 0, 0], sizes = [1, 128, 128], strides = [1, 1, 1]} : vector<10x128x128xbf16> to vector<1x128x128xbf16>
    %26 = vector.shape_cast %25 : vector<1x128x128xbf16> to vector<128x128xbf16>
    %cst_14 = arith.constant dense<0.000000e+00> : vector<7x128xf32>
    %27 = tpu.matmul %24, %26, %cst_14 {dimension_numbers = #tpu.dot_dimension_numbers<[1], [0], [0], [1], [0, 0, 1, 1], [], []>} : vector<7x128xbf16>, vector<128x128xbf16>, vector<7x128xf32> -> vector<7x128xf32>
    %28 = arith.addf %23, %27 : vector<7x128xf32>
    %29 = vector.extract_strided_slice %1 {offsets = [0, 0], sizes = [7, 128], strides = [1, 1]} : vector<32x128xbf16> to vector<7x128xbf16>
    %30 = vector.extract_strided_slice %2 {offsets = [5, 0, 0], sizes = [1, 128, 128], strides = [1, 1, 1]} : vector<10x128x128xbf16> to vector<1x128x128xbf16>
    %31 = vector.shape_cast %30 : vector<1x128x128xbf16> to vector<128x128xbf16>
    %cst_15 = arith.constant dense<0.000000e+00> : vector<7x128xf32>
    %32 = tpu.matmul %29, %31, %cst_15 {dimension_numbers = #tpu.dot_dimension_numbers<[1], [0], [0], [1], [0, 0, 1, 1], [], []>} : vector<7x128xbf16>, vector<128x128xbf16>, vector<7x128xf32> -> vector<7x128xf32>
    %33 = vector.extract_strided_slice %1 {offsets = [8, 0], sizes = [7, 128], strides = [1, 1]} : vector<32x128xbf16> to vector<7x128xbf16>
    %34 = vector.extract_strided_slice %2 {offsets = [6, 0, 0], sizes = [1, 128, 128], strides = [1, 1, 1]} : vector<10x128x128xbf16> to vector<1x128x128xbf16>
    %35 = vector.shape_cast %34 : vector<1x128x128xbf16> to vector<128x128xbf16>
    %cst_16 = arith.constant dense<0.000000e+00> : vector<7x128xf32>
    %36 = tpu.matmul %33, %35, %cst_16 {dimension_numbers = #tpu.dot_dimension_numbers<[1], [0], [0], [1], [0, 0, 1, 1], [], []>} : vector<7x128xbf16>, vector<128x128xbf16>, vector<7x128xf32> -> vector<7x128xf32>
    %37 = arith.addf %32, %36 : vector<7x128xf32>
    %38 = vector.extract_strided_slice %1 {offsets = [16, 0], sizes = [7, 128], strides = [1, 1]} : vector<32x128xbf16> to vector<7x128xbf16>
    %39 = vector.extract_strided_slice %2 {offsets = [7, 0, 0], sizes = [1, 128, 128], strides = [1, 1, 1]} : vector<10x128x128xbf16> to vector<1x128x128xbf16>
    %40 = vector.shape_cast %39 : vector<1x128x128xbf16> to vector<128x128xbf16>
    %cst_17 = arith.constant dense<0.000000e+00> : vector<7x128xf32>
    %41 = tpu.matmul %38, %40, %cst_17 {dimension_numbers = #tpu.dot_dimension_numbers<[1], [0], [0], [1], [0, 0, 1, 1], [], []>} : vector<7x128xbf16>, vector<128x128xbf16>, vector<7x128xf32> -> vector<7x128xf32>
    %42 = arith.addf %37, %41 : vector<7x128xf32>
    %43 = vector.extract_strided_slice %1 {offsets = [24, 0], sizes = [7, 128], strides = [1, 1]} : vector<32x128xbf16> to vector<7x128xbf16>
    %44 = vector.extract_strided_slice %2 {offsets = [8, 0, 0], sizes = [1, 128, 128], strides = [1, 1, 1]} : vector<10x128x128xbf16> to vector<1x128x128xbf16>
    %45 = vector.shape_cast %44 : vector<1x128x128xbf16> to vector<128x128xbf16>
    %cst_18 = arith.constant dense<0.000000e+00> : vector<7x128xf32>
    %46 = tpu.matmul %43, %45, %cst_18 {dimension_numbers = #tpu.dot_dimension_numbers<[1], [0], [0], [1], [0, 0, 1, 1], [], []>} : vector<7x128xbf16>, vector<128x128xbf16>, vector<7x128xf32> -> vector<7x128xf32>
    %47 = arith.addf %42, %46 : vector<7x128xf32>
    %48 = vector.extract_strided_slice %1 {offsets = [1, 0], sizes = [7, 128], strides = [1, 1]} : vector<32x128xbf16> to vector<7x128xbf16>
    %49 = vector.extract_strided_slice %2 {offsets = [9, 0, 0], sizes = [1, 128, 128], strides = [1, 1, 1]} : vector<10x128x128xbf16> to vector<1x128x128xbf16>
    %50 = vector.shape_cast %49 : vector<1x128x128xbf16> to vector<128x128xbf16>
    %cst_19 = arith.constant dense<0.000000e+00> : vector<7x128xf32>
    %51 = tpu.matmul %48, %50, %cst_19 {dimension_numbers = #tpu.dot_dimension_numbers<[1], [0], [0], [1], [0, 0, 1, 1], [], []>} : vector<7x128xbf16>, vector<128x128xbf16>, vector<7x128xf32> -> vector<7x128xf32>
    %52 = arith.addf %47, %51 : vector<7x128xf32>
    %53 = arith.maximumf %28, %52 : vector<7x128xf32>
    %54 = vector.extract_strided_slice %1 {offsets = [8, 0], sizes = [7, 128], strides = [1, 1]} : vector<32x128xbf16> to vector<7x128xbf16>
    %55 = vector.extract_strided_slice %2 {offsets = [0, 0, 0], sizes = [1, 128, 128], strides = [1, 1, 1]} : vector<10x128x128xbf16> to vector<1x128x128xbf16>
    %56 = vector.shape_cast %55 : vector<1x128x128xbf16> to vector<128x128xbf16>
    %cst_20 = arith.constant dense<0.000000e+00> : vector<7x128xf32>
    %57 = tpu.matmul %54, %56, %cst_20 {dimension_numbers = #tpu.dot_dimension_numbers<[1], [0], [0], [1], [0, 0, 1, 1], [], []>} : vector<7x128xbf16>, vector<128x128xbf16>, vector<7x128xf32> -> vector<7x128xf32>
    %58 = vector.extract_strided_slice %1 {offsets = [16, 0], sizes = [7, 128], strides = [1, 1]} : vector<32x128xbf16> to vector<7x128xbf16>
    %59 = vector.extract_strided_slice %2 {offsets = [1, 0, 0], sizes = [1, 128, 128], strides = [1, 1, 1]} : vector<10x128x128xbf16> to vector<1x128x128xbf16>
    %60 = vector.shape_cast %59 : vector<1x128x128xbf16> to vector<128x128xbf16>
    %cst_21 = arith.constant dense<0.000000e+00> : vector<7x128xf32>
    %61 = tpu.matmul %58, %60, %cst_21 {dimension_numbers = #tpu.dot_dimension_numbers<[1], [0], [0], [1], [0, 0, 1, 1], [], []>} : vector<7x128xbf16>, vector<128x128xbf16>, vector<7x128xf32> -> vector<7x128xf32>
    %62 = arith.addf %57, %61 : vector<7x128xf32>
    %63 = vector.extract_strided_slice %1 {offsets = [24, 0], sizes = [7, 128], strides = [1, 1]} : vector<32x128xbf16> to vector<7x128xbf16>
    %64 = vector.extract_strided_slice %2 {offsets = [2, 0, 0], sizes = [1, 128, 128], strides = [1, 1, 1]} : vector<10x128x128xbf16> to vector<1x128x128xbf16>
    %65 = vector.shape_cast %64 : vector<1x128x128xbf16> to vector<128x128xbf16>
    %cst_22 = arith.constant dense<0.000000e+00> : vector<7x128xf32>
    %66 = tpu.matmul %63, %65, %cst_22 {dimension_numbers = #tpu.dot_dimension_numbers<[1], [0], [0], [1], [0, 0, 1, 1], [], []>} : vector<7x128xbf16>, vector<128x128xbf16>, vector<7x128xf32> -> vector<7x128xf32>
    %67 = arith.addf %62, %66 : vector<7x128xf32>
    %68 = vector.extract_strided_slice %1 {offsets = [1, 0], sizes = [7, 128], strides = [1, 1]} : vector<32x128xbf16> to vector<7x128xbf16>
    %69 = vector.extract_strided_slice %2 {offsets = [3, 0, 0], sizes = [1, 128, 128], strides = [1, 1, 1]} : vector<10x128x128xbf16> to vector<1x128x128xbf16>
    %70 = vector.shape_cast %69 : vector<1x128x128xbf16> to vector<128x128xbf16>
    %cst_23 = arith.constant dense<0.000000e+00> : vector<7x128xf32>
    %71 = tpu.matmul %68, %70, %cst_23 {dimension_numbers = #tpu.dot_dimension_numbers<[1], [0], [0], [1], [0, 0, 1, 1], [], []>} : vector<7x128xbf16>, vector<128x128xbf16>, vector<7x128xf32> -> vector<7x128xf32>
    %72 = arith.addf %67, %71 : vector<7x128xf32>
    %73 = vector.extract_strided_slice %1 {offsets = [9, 0], sizes = [7, 128], strides = [1, 1]} : vector<32x128xbf16> to vector<7x128xbf16>
    %74 = vector.extract_strided_slice %2 {offsets = [4, 0, 0], sizes = [1, 128, 128], strides = [1, 1, 1]} : vector<10x128x128xbf16> to vector<1x128x128xbf16>
    %75 = vector.shape_cast %74 : vector<1x128x128xbf16> to vector<128x128xbf16>
    %cst_24 = arith.constant dense<0.000000e+00> : vector<7x128xf32>
    %76 = tpu.matmul %73, %75, %cst_24 {dimension_numbers = #tpu.dot_dimension_numbers<[1], [0], [0], [1], [0, 0, 1, 1], [], []>} : vector<7x128xbf16>, vector<128x128xbf16>, vector<7x128xf32> -> vector<7x128xf32>
    %77 = arith.addf %72, %76 : vector<7x128xf32>
    %78 = arith.maximumf %53, %77 : vector<7x128xf32>
    %79 = vector.extract_strided_slice %1 {offsets = [8, 0], sizes = [7, 128], strides = [1, 1]} : vector<32x128xbf16> to vector<7x128xbf16>
    %80 = vector.extract_strided_slice %2 {offsets = [5, 0, 0], sizes = [1, 128, 128], strides = [1, 1, 1]} : vector<10x128x128xbf16> to vector<1x128x128xbf16>
    %81 = vector.shape_cast %80 : vector<1x128x128xbf16> to vector<128x128xbf16>
    %cst_25 = arith.constant dense<0.000000e+00> : vector<7x128xf32>
    %82 = tpu.matmul %79, %81, %cst_25 {dimension_numbers = #tpu.dot_dimension_numbers<[1], [0], [0], [1], [0, 0, 1, 1], [], []>} : vector<7x128xbf16>, vector<128x128xbf16>, vector<7x128xf32> -> vector<7x128xf32>
    %83 = vector.extract_strided_slice %1 {offsets = [16, 0], sizes = [7, 128], strides = [1, 1]} : vector<32x128xbf16> to vector<7x128xbf16>
    %84 = vector.extract_strided_slice %2 {offsets = [6, 0, 0], sizes = [1, 128, 128], strides = [1, 1, 1]} : vector<10x128x128xbf16> to vector<1x128x128xbf16>
    %85 = vector.shape_cast %84 : vector<1x128x128xbf16> to vector<128x128xbf16>
    %cst_26 = arith.constant dense<0.000000e+00> : vector<7x128xf32>
    %86 = tpu.matmul %83, %85, %cst_26 {dimension_numbers = #tpu.dot_dimension_numbers<[1], [0], [0], [1], [0, 0, 1, 1], [], []>} : vector<7x128xbf16>, vector<128x128xbf16>, vector<7x128xf32> -> vector<7x128xf32>
    %87 = arith.addf %82, %86 : vector<7x128xf32>
    %88 = vector.extract_strided_slice %1 {offsets = [24, 0], sizes = [7, 128], strides = [1, 1]} : vector<32x128xbf16> to vector<7x128xbf16>
    %89 = vector.extract_strided_slice %2 {offsets = [7, 0, 0], sizes = [1, 128, 128], strides = [1, 1, 1]} : vector<10x128x128xbf16> to vector<1x128x128xbf16>
    %90 = vector.shape_cast %89 : vector<1x128x128xbf16> to vector<128x128xbf16>
    %cst_27 = arith.constant dense<0.000000e+00> : vector<7x128xf32>
    %91 = tpu.matmul %88, %90, %cst_27 {dimension_numbers = #tpu.dot_dimension_numbers<[1], [0], [0], [1], [0, 0, 1, 1], [], []>} : vector<7x128xbf16>, vector<128x128xbf16>, vector<7x128xf32> -> vector<7x128xf32>
    %92 = arith.addf %87, %91 : vector<7x128xf32>
    %93 = vector.extract_strided_slice %1 {offsets = [1, 0], sizes = [7, 128], strides = [1, 1]} : vector<32x128xbf16> to vector<7x128xbf16>
    %94 = vector.extract_strided_slice %2 {offsets = [8, 0, 0], sizes = [1, 128, 128], strides = [1, 1, 1]} : vector<10x128x128xbf16> to vector<1x128x128xbf16>
    %95 = vector.shape_cast %94 : vector<1x128x128xbf16> to vector<128x128xbf16>
    %cst_28 = arith.constant dense<0.000000e+00> : vector<7x128xf32>
    %96 = tpu.matmul %93, %95, %cst_28 {dimension_numbers = #tpu.dot_dimension_numbers<[1], [0], [0], [1], [0, 0, 1, 1], [], []>} : vector<7x128xbf16>, vector<128x128xbf16>, vector<7x128xf32> -> vector<7x128xf32>
    %97 = arith.addf %92, %96 : vector<7x128xf32>
    %98 = vector.extract_strided_slice %1 {offsets = [9, 0], sizes = [7, 128], strides = [1, 1]} : vector<32x128xbf16> to vector<7x128xbf16>
    %99 = vector.extract_strided_slice %2 {offsets = [9, 0, 0], sizes = [1, 128, 128], strides = [1, 1, 1]} : vector<10x128x128xbf16> to vector<1x128x128xbf16>
    %100 = vector.shape_cast %99 : vector<1x128x128xbf16> to vector<128x128xbf16>
    %cst_29 = arith.constant dense<0.000000e+00> : vector<7x128xf32>
    %101 = tpu.matmul %98, %100, %cst_29 {dimension_numbers = #tpu.dot_dimension_numbers<[1], [0], [0], [1], [0, 0, 1, 1], [], []>} : vector<7x128xbf16>, vector<128x128xbf16>, vector<7x128xf32> -> vector<7x128xf32>
    %102 = arith.addf %97, %101 : vector<7x128xf32>
    %103 = arith.maximumf %78, %102 : vector<7x128xf32>
    %c0_30 = arith.constant 0 : index
    %c0_31 = arith.constant 0 : index
    %104 = vector.load %arg3[%c0_30, %c0_31] : memref<1x128xf32, #tpu.memory_space<vmem>>, vector<1x128xf32>
    %105 = vector.broadcast %104 : vector<1x128xf32> to vector<7x128xf32>
    %106 = arith.addf %103, %105 : vector<7x128xf32>
    %cst_32 = arith.constant 0.000000e+00 : f32
    %107 = vector.broadcast %cst_32 : f32 to vector<7x128xf32>
    %108 = arith.maximumf %106, %107 : vector<7x128xf32>
    %109 = arith.truncf %108 : vector<7x128xf32> to vector<7x128xbf16>
    %110 = vector.extract_strided_slice %1 {offsets = [16, 0], sizes = [7, 128], strides = [1, 1]} : vector<32x128xbf16> to vector<7x128xbf16>
    %111 = vector.extract_strided_slice %2 {offsets = [0, 0, 0], sizes = [1, 128, 128], strides = [1, 1, 1]} : vector<10x128x128xbf16> to vector<1x128x128xbf16>
    %112 = vector.shape_cast %111 : vector<1x128x128xbf16> to vector<128x128xbf16>
    %cst_33 = arith.constant dense<0.000000e+00> : vector<7x128xf32>
    %113 = tpu.matmul %110, %112, %cst_33 {dimension_numbers = #tpu.dot_dimension_numbers<[1], [0], [0], [1], [0, 0, 1, 1], [], []>} : vector<7x128xbf16>, vector<128x128xbf16>, vector<7x128xf32> -> vector<7x128xf32>
    %114 = vector.extract_strided_slice %1 {offsets = [24, 0], sizes = [7, 128], strides = [1, 1]} : vector<32x128xbf16> to vector<7x128xbf16>
    %115 = vector.extract_strided_slice %2 {offsets = [1, 0, 0], sizes = [1, 128, 128], strides = [1, 1, 1]} : vector<10x128x128xbf16> to vector<1x128x128xbf16>
    %116 = vector.shape_cast %115 : vector<1x128x128xbf16> to vector<128x128xbf16>
    %cst_34 = arith.constant dense<0.000000e+00> : vector<7x128xf32>
    %117 = tpu.matmul %114, %116, %cst_34 {dimension_numbers = #tpu.dot_dimension_numbers<[1], [0], [0], [1], [0, 0, 1, 1], [], []>} : vector<7x128xbf16>, vector<128x128xbf16>, vector<7x128xf32> -> vector<7x128xf32>
    %118 = arith.addf %113, %117 : vector<7x128xf32>
    %119 = vector.extract_strided_slice %1 {offsets = [1, 0], sizes = [7, 128], strides = [1, 1]} : vector<32x128xbf16> to vector<7x128xbf16>
    %120 = vector.extract_strided_slice %2 {offsets = [2, 0, 0], sizes = [1, 128, 128], strides = [1, 1, 1]} : vector<10x128x128xbf16> to vector<1x128x128xbf16>
    %121 = vector.shape_cast %120 : vector<1x128x128xbf16> to vector<128x128xbf16>
    %cst_35 = arith.constant dense<0.000000e+00> : vector<7x128xf32>
    %122 = tpu.matmul %119, %121, %cst_35 {dimension_numbers = #tpu.dot_dimension_numbers<[1], [0], [0], [1], [0, 0, 1, 1], [], []>} : vector<7x128xbf16>, vector<128x128xbf16>, vector<7x128xf32> -> vector<7x128xf32>
    %123 = arith.addf %118, %122 : vector<7x128xf32>
    %124 = vector.extract_strided_slice %1 {offsets = [9, 0], sizes = [7, 128], strides = [1, 1]} : vector<32x128xbf16> to vector<7x128xbf16>
    %125 = vector.extract_strided_slice %2 {offsets = [3, 0, 0], sizes = [1, 128, 128], strides = [1, 1, 1]} : vector<10x128x128xbf16> to vector<1x128x128xbf16>
    %126 = vector.shape_cast %125 : vector<1x128x128xbf16> to vector<128x128xbf16>
    %cst_36 = arith.constant dense<0.000000e+00> : vector<7x128xf32>
    %127 = tpu.matmul %124, %126, %cst_36 {dimension_numbers = #tpu.dot_dimension_numbers<[1], [0], [0], [1], [0, 0, 1, 1], [], []>} : vector<7x128xbf16>, vector<128x128xbf16>, vector<7x128xf32> -> vector<7x128xf32>
    %128 = arith.addf %123, %127 : vector<7x128xf32>
    %129 = vector.extract_strided_slice %1 {offsets = [17, 0], sizes = [7, 128], strides = [1, 1]} : vector<32x128xbf16> to vector<7x128xbf16>
    %130 = vector.extract_strided_slice %2 {offsets = [4, 0, 0], sizes = [1, 128, 128], strides = [1, 1, 1]} : vector<10x128x128xbf16> to vector<1x128x128xbf16>
    %131 = vector.shape_cast %130 : vector<1x128x128xbf16> to vector<128x128xbf16>
    %cst_37 = arith.constant dense<0.000000e+00> : vector<7x128xf32>
    %132 = tpu.matmul %129, %131, %cst_37 {dimension_numbers = #tpu.dot_dimension_numbers<[1], [0], [0], [1], [0, 0, 1, 1], [], []>} : vector<7x128xbf16>, vector<128x128xbf16>, vector<7x128xf32> -> vector<7x128xf32>
    %133 = arith.addf %128, %132 : vector<7x128xf32>
    %134 = vector.extract_strided_slice %1 {offsets = [16, 0], sizes = [7, 128], strides = [1, 1]} : vector<32x128xbf16> to vector<7x128xbf16>
    %135 = vector.extract_strided_slice %2 {offsets = [5, 0, 0], sizes = [1, 128, 128], strides = [1, 1, 1]} : vector<10x128x128xbf16> to vector<1x128x128xbf16>
    %136 = vector.shape_cast %135 : vector<1x128x128xbf16> to vector<128x128xbf16>
    %cst_38 = arith.constant dense<0.000000e+00> : vector<7x128xf32>
    %137 = tpu.matmul %134, %136, %cst_38 {dimension_numbers = #tpu.dot_dimension_numbers<[1], [0], [0], [1], [0, 0, 1, 1], [], []>} : vector<7x128xbf16>, vector<128x128xbf16>, vector<7x128xf32> -> vector<7x128xf32>
    %138 = vector.extract_strided_slice %1 {offsets = [24, 0], sizes = [7, 128], strides = [1, 1]} : vector<32x128xbf16> to vector<7x128xbf16>
    %139 = vector.extract_strided_slice %2 {offsets = [6, 0, 0], sizes = [1, 128, 128], strides = [1, 1, 1]} : vector<10x128x128xbf16> to vector<1x128x128xbf16>
    %140 = vector.shape_cast %139 : vector<1x128x128xbf16> to vector<128x128xbf16>
    %cst_39 = arith.constant dense<0.000000e+00> : vector<7x128xf32>
    %141 = tpu.matmul %138, %140, %cst_39 {dimension_numbers = #tpu.dot_dimension_numbers<[1], [0], [0], [1], [0, 0, 1, 1], [], []>} : vector<7x128xbf16>, vector<128x128xbf16>, vector<7x128xf32> -> vector<7x128xf32>
    %142 = arith.addf %137, %141 : vector<7x128xf32>
    %143 = vector.extract_strided_slice %1 {offsets = [1, 0], sizes = [7, 128], strides = [1, 1]} : vector<32x128xbf16> to vector<7x128xbf16>
    %144 = vector.extract_strided_slice %2 {offsets = [7, 0, 0], sizes = [1, 128, 128], strides = [1, 1, 1]} : vector<10x128x128xbf16> to vector<1x128x128xbf16>
    %145 = vector.shape_cast %144 : vector<1x128x128xbf16> to vector<128x128xbf16>
    %cst_40 = arith.constant dense<0.000000e+00> : vector<7x128xf32>
    %146 = tpu.matmul %143, %145, %cst_40 {dimension_numbers = #tpu.dot_dimension_numbers<[1], [0], [0], [1], [0, 0, 1, 1], [], []>} : vector<7x128xbf16>, vector<128x128xbf16>, vector<7x128xf32> -> vector<7x128xf32>
    %147 = arith.addf %142, %146 : vector<7x128xf32>
    %148 = vector.extract_strided_slice %1 {offsets = [9, 0], sizes = [7, 128], strides = [1, 1]} : vector<32x128xbf16> to vector<7x128xbf16>
    %149 = vector.extract_strided_slice %2 {offsets = [8, 0, 0], sizes = [1, 128, 128], strides = [1, 1, 1]} : vector<10x128x128xbf16> to vector<1x128x128xbf16>
    %150 = vector.shape_cast %149 : vector<1x128x128xbf16> to vector<128x128xbf16>
    %cst_41 = arith.constant dense<0.000000e+00> : vector<7x128xf32>
    %151 = tpu.matmul %148, %150, %cst_41 {dimension_numbers = #tpu.dot_dimension_numbers<[1], [0], [0], [1], [0, 0, 1, 1], [], []>} : vector<7x128xbf16>, vector<128x128xbf16>, vector<7x128xf32> -> vector<7x128xf32>
    %152 = arith.addf %147, %151 : vector<7x128xf32>
    %153 = vector.extract_strided_slice %1 {offsets = [17, 0], sizes = [7, 128], strides = [1, 1]} : vector<32x128xbf16> to vector<7x128xbf16>
    %154 = vector.extract_strided_slice %2 {offsets = [9, 0, 0], sizes = [1, 128, 128], strides = [1, 1, 1]} : vector<10x128x128xbf16> to vector<1x128x128xbf16>
    %155 = vector.shape_cast %154 : vector<1x128x128xbf16> to vector<128x128xbf16>
    %cst_42 = arith.constant dense<0.000000e+00> : vector<7x128xf32>
    %156 = tpu.matmul %153, %155, %cst_42 {dimension_numbers = #tpu.dot_dimension_numbers<[1], [0], [0], [1], [0, 0, 1, 1], [], []>} : vector<7x128xbf16>, vector<128x128xbf16>, vector<7x128xf32> -> vector<7x128xf32>
    %157 = arith.addf %152, %156 : vector<7x128xf32>
    %158 = arith.maximumf %133, %157 : vector<7x128xf32>
    %159 = vector.extract_strided_slice %1 {offsets = [24, 0], sizes = [7, 128], strides = [1, 1]} : vector<32x128xbf16> to vector<7x128xbf16>
    %160 = vector.extract_strided_slice %2 {offsets = [0, 0, 0], sizes = [1, 128, 128], strides = [1, 1, 1]} : vector<10x128x128xbf16> to vector<1x128x128xbf16>
    %161 = vector.shape_cast %160 : vector<1x128x128xbf16> to vector<128x128xbf16>
    %cst_43 = arith.constant dense<0.000000e+00> : vector<7x128xf32>
    %162 = tpu.matmul %159, %161, %cst_43 {dimension_numbers = #tpu.dot_dimension_numbers<[1], [0], [0], [1], [0, 0, 1, 1], [], []>} : vector<7x128xbf16>, vector<128x128xbf16>, vector<7x128xf32> -> vector<7x128xf32>
    %163 = vector.extract_strided_slice %1 {offsets = [1, 0], sizes = [7, 128], strides = [1, 1]} : vector<32x128xbf16> to vector<7x128xbf16>
    %164 = vector.extract_strided_slice %2 {offsets = [1, 0, 0], sizes = [1, 128, 128], strides = [1, 1, 1]} : vector<10x128x128xbf16> to vector<1x128x128xbf16>
    %165 = vector.shape_cast %164 : vector<1x128x128xbf16> to vector<128x128xbf16>
    %cst_44 = arith.constant dense<0.000000e+00> : vector<7x128xf32>
    %166 = tpu.matmul %163, %165, %cst_44 {dimension_numbers = #tpu.dot_dimension_numbers<[1], [0], [0], [1], [0, 0, 1, 1], [], []>} : vector<7x128xbf16>, vector<128x128xbf16>, vector<7x128xf32> -> vector<7x128xf32>
    %167 = arith.addf %162, %166 : vector<7x128xf32>
    %168 = vector.extract_strided_slice %1 {offsets = [9, 0], sizes = [7, 128], strides = [1, 1]} : vector<32x128xbf16> to vector<7x128xbf16>
    %169 = vector.extract_strided_slice %2 {offsets = [2, 0, 0], sizes = [1, 128, 128], strides = [1, 1, 1]} : vector<10x128x128xbf16> to vector<1x128x128xbf16>
    %170 = vector.shape_cast %169 : vector<1x128x128xbf16> to vector<128x128xbf16>
    %cst_45 = arith.constant dense<0.000000e+00> : vector<7x128xf32>
    %171 = tpu.matmul %168, %170, %cst_45 {dimension_numbers = #tpu.dot_dimension_numbers<[1], [0], [0], [1], [0, 0, 1, 1], [], []>} : vector<7x128xbf16>, vector<128x128xbf16>, vector<7x128xf32> -> vector<7x128xf32>
    %172 = arith.addf %167, %171 : vector<7x128xf32>
    %173 = vector.extract_strided_slice %1 {offsets = [17, 0], sizes = [7, 128], strides = [1, 1]} : vector<32x128xbf16> to vector<7x128xbf16>
    %174 = vector.extract_strided_slice %2 {offsets = [3, 0, 0], sizes = [1, 128, 128], strides = [1, 1, 1]} : vector<10x128x128xbf16> to vector<1x128x128xbf16>
    %175 = vector.shape_cast %174 : vector<1x128x128xbf16> to vector<128x128xbf16>
    %cst_46 = arith.constant dense<0.000000e+00> : vector<7x128xf32>
    %176 = tpu.matmul %173, %175, %cst_46 {dimension_numbers = #tpu.dot_dimension_numbers<[1], [0], [0], [1], [0, 0, 1, 1], [], []>} : vector<7x128xbf16>, vector<128x128xbf16>, vector<7x128xf32> -> vector<7x128xf32>
    %177 = arith.addf %172, %176 : vector<7x128xf32>
    %178 = vector.extract_strided_slice %1 {offsets = [25, 0], sizes = [7, 128], strides = [1, 1]} : vector<32x128xbf16> to vector<7x128xbf16>
    %179 = vector.extract_strided_slice %2 {offsets = [4, 0, 0], sizes = [1, 128, 128], strides = [1, 1, 1]} : vector<10x128x128xbf16> to vector<1x128x128xbf16>
    %180 = vector.shape_cast %179 : vector<1x128x128xbf16> to vector<128x128xbf16>
    %cst_47 = arith.constant dense<0.000000e+00> : vector<7x128xf32>
    %181 = tpu.matmul %178, %180, %cst_47 {dimension_numbers = #tpu.dot_dimension_numbers<[1], [0], [0], [1], [0, 0, 1, 1], [], []>} : vector<7x128xbf16>, vector<128x128xbf16>, vector<7x128xf32> -> vector<7x128xf32>
    %182 = arith.addf %177, %181 : vector<7x128xf32>
    %183 = arith.maximumf %158, %182 : vector<7x128xf32>
    %184 = vector.extract_strided_slice %1 {offsets = [24, 0], sizes = [7, 128], strides = [1, 1]} : vector<32x128xbf16> to vector<7x128xbf16>
    %185 = vector.extract_strided_slice %2 {offsets = [5, 0, 0], sizes = [1, 128, 128], strides = [1, 1, 1]} : vector<10x128x128xbf16> to vector<1x128x128xbf16>
    %186 = vector.shape_cast %185 : vector<1x128x128xbf16> to vector<128x128xbf16>
    %cst_48 = arith.constant dense<0.000000e+00> : vector<7x128xf32>
    %187 = tpu.matmul %184, %186, %cst_48 {dimension_numbers = #tpu.dot_dimension_numbers<[1], [0], [0], [1], [0, 0, 1, 1], [], []>} : vector<7x128xbf16>, vector<128x128xbf16>, vector<7x128xf32> -> vector<7x128xf32>
    %188 = vector.extract_strided_slice %1 {offsets = [1, 0], sizes = [7, 128], strides = [1, 1]} : vector<32x128xbf16> to vector<7x128xbf16>
    %189 = vector.extract_strided_slice %2 {offsets = [6, 0, 0], sizes = [1, 128, 128], strides = [1, 1, 1]} : vector<10x128x128xbf16> to vector<1x128x128xbf16>
    %190 = vector.shape_cast %189 : vector<1x128x128xbf16> to vector<128x128xbf16>
    %cst_49 = arith.constant dense<0.000000e+00> : vector<7x128xf32>
    %191 = tpu.matmul %188, %190, %cst_49 {dimension_numbers = #tpu.dot_dimension_numbers<[1], [0], [0], [1], [0, 0, 1, 1], [], []>} : vector<7x128xbf16>, vector<128x128xbf16>, vector<7x128xf32> -> vector<7x128xf32>
    %192 = arith.addf %187, %191 : vector<7x128xf32>
    %193 = vector.extract_strided_slice %1 {offsets = [9, 0], sizes = [7, 128], strides = [1, 1]} : vector<32x128xbf16> to vector<7x128xbf16>
    %194 = vector.extract_strided_slice %2 {offsets = [7, 0, 0], sizes = [1, 128, 128], strides = [1, 1, 1]} : vector<10x128x128xbf16> to vector<1x128x128xbf16>
    %195 = vector.shape_cast %194 : vector<1x128x128xbf16> to vector<128x128xbf16>
    %cst_50 = arith.constant dense<0.000000e+00> : vector<7x128xf32>
    %196 = tpu.matmul %193, %195, %cst_50 {dimension_numbers = #tpu.dot_dimension_numbers<[1], [0], [0], [1], [0, 0, 1, 1], [], []>} : vector<7x128xbf16>, vector<128x128xbf16>, vector<7x128xf32> -> vector<7x128xf32>
    %197 = arith.addf %192, %196 : vector<7x128xf32>
    %198 = vector.extract_strided_slice %1 {offsets = [17, 0], sizes = [7, 128], strides = [1, 1]} : vector<32x128xbf16> to vector<7x128xbf16>
    %199 = vector.extract_strided_slice %2 {offsets = [8, 0, 0], sizes = [1, 128, 128], strides = [1, 1, 1]} : vector<10x128x128xbf16> to vector<1x128x128xbf16>
    %200 = vector.shape_cast %199 : vector<1x128x128xbf16> to vector<128x128xbf16>
    %cst_51 = arith.constant dense<0.000000e+00> : vector<7x128xf32>
    %201 = tpu.matmul %198, %200, %cst_51 {dimension_numbers = #tpu.dot_dimension_numbers<[1], [0], [0], [1], [0, 0, 1, 1], [], []>} : vector<7x128xbf16>, vector<128x128xbf16>, vector<7x128xf32> -> vector<7x128xf32>
    %202 = arith.addf %197, %201 : vector<7x128xf32>
    %203 = vector.extract_strided_slice %1 {offsets = [25, 0], sizes = [7, 128], strides = [1, 1]} : vector<32x128xbf16> to vector<7x128xbf16>
    %204 = vector.extract_strided_slice %2 {offsets = [9, 0, 0], sizes = [1, 128, 128], strides = [1, 1, 1]} : vector<10x128x128xbf16> to vector<1x128x128xbf16>
    %205 = vector.shape_cast %204 : vector<1x128x128xbf16> to vector<128x128xbf16>
    %cst_52 = arith.constant dense<0.000000e+00> : vector<7x128xf32>
    %206 = tpu.matmul %203, %205, %cst_52 {dimension_numbers = #tpu.dot_dimension_numbers<[1], [0], [0], [1], [0, 0, 1, 1], [], []>} : vector<7x128xbf16>, vector<128x128xbf16>, vector<7x128xf32> -> vector<7x128xf32>
    %207 = arith.addf %202, %206 : vector<7x128xf32>
    %208 = arith.maximumf %183, %207 : vector<7x128xf32>
    %c0_53 = arith.constant 0 : index
    %c0_54 = arith.constant 0 : index
    %209 = vector.load %arg3[%c0_53, %c0_54] : memref<1x128xf32, #tpu.memory_space<vmem>>, vector<1x128xf32>
    %210 = vector.broadcast %209 : vector<1x128xf32> to vector<7x128xf32>
    %211 = arith.addf %208, %210 : vector<7x128xf32>
    %cst_55 = arith.constant 0.000000e+00 : f32
    %212 = vector.broadcast %cst_55 : f32 to vector<7x128xf32>
    %213 = arith.maximumf %211, %212 : vector<7x128xf32>
    %214 = arith.truncf %213 : vector<7x128xf32> to vector<7x128xbf16>
    %215 = vector.extract_strided_slice %109 {offsets = [0, 0], sizes = [5, 128], strides = [1, 1]} : vector<7x128xbf16> to vector<5x128xbf16>
    %216 = vector.extract_strided_slice %3 {offsets = [0, 0, 0], sizes = [1, 128, 128], strides = [1, 1, 1]} : vector<10x128x128xbf16> to vector<1x128x128xbf16>
    %217 = vector.shape_cast %216 : vector<1x128x128xbf16> to vector<128x128xbf16>
    %cst_56 = arith.constant dense<0.000000e+00> : vector<5x128xf32>
    %218 = tpu.matmul %215, %217, %cst_56 {dimension_numbers = #tpu.dot_dimension_numbers<[1], [0], [0], [1], [0, 0, 1, 1], [], []>} : vector<5x128xbf16>, vector<128x128xbf16>, vector<5x128xf32> -> vector<5x128xf32>
    %219 = vector.extract_strided_slice %214 {offsets = [0, 0], sizes = [5, 128], strides = [1, 1]} : vector<7x128xbf16> to vector<5x128xbf16>
    %220 = vector.extract_strided_slice %3 {offsets = [1, 0, 0], sizes = [1, 128, 128], strides = [1, 1, 1]} : vector<10x128x128xbf16> to vector<1x128x128xbf16>
    %221 = vector.shape_cast %220 : vector<1x128x128xbf16> to vector<128x128xbf16>
    %cst_57 = arith.constant dense<0.000000e+00> : vector<5x128xf32>
    %222 = tpu.matmul %219, %221, %cst_57 {dimension_numbers = #tpu.dot_dimension_numbers<[1], [0], [0], [1], [0, 0, 1, 1], [], []>} : vector<5x128xbf16>, vector<128x128xbf16>, vector<5x128xf32> -> vector<5x128xf32>
    %223 = arith.addf %218, %222 : vector<5x128xf32>
    %224 = vector.extract_strided_slice %109 {offsets = [1, 0], sizes = [5, 128], strides = [1, 1]} : vector<7x128xbf16> to vector<5x128xbf16>
    %225 = vector.extract_strided_slice %3 {offsets = [2, 0, 0], sizes = [1, 128, 128], strides = [1, 1, 1]} : vector<10x128x128xbf16> to vector<1x128x128xbf16>
    %226 = vector.shape_cast %225 : vector<1x128x128xbf16> to vector<128x128xbf16>
    %cst_58 = arith.constant dense<0.000000e+00> : vector<5x128xf32>
    %227 = tpu.matmul %224, %226, %cst_58 {dimension_numbers = #tpu.dot_dimension_numbers<[1], [0], [0], [1], [0, 0, 1, 1], [], []>} : vector<5x128xbf16>, vector<128x128xbf16>, vector<5x128xf32> -> vector<5x128xf32>
    %228 = arith.addf %223, %227 : vector<5x128xf32>
    %229 = vector.extract_strided_slice %214 {offsets = [1, 0], sizes = [5, 128], strides = [1, 1]} : vector<7x128xbf16> to vector<5x128xbf16>
    %230 = vector.extract_strided_slice %3 {offsets = [3, 0, 0], sizes = [1, 128, 128], strides = [1, 1, 1]} : vector<10x128x128xbf16> to vector<1x128x128xbf16>
    %231 = vector.shape_cast %230 : vector<1x128x128xbf16> to vector<128x128xbf16>
    %cst_59 = arith.constant dense<0.000000e+00> : vector<5x128xf32>
    %232 = tpu.matmul %229, %231, %cst_59 {dimension_numbers = #tpu.dot_dimension_numbers<[1], [0], [0], [1], [0, 0, 1, 1], [], []>} : vector<5x128xbf16>, vector<128x128xbf16>, vector<5x128xf32> -> vector<5x128xf32>
    %233 = arith.addf %228, %232 : vector<5x128xf32>
    %234 = vector.extract_strided_slice %109 {offsets = [2, 0], sizes = [5, 128], strides = [1, 1]} : vector<7x128xbf16> to vector<5x128xbf16>
    %235 = vector.extract_strided_slice %3 {offsets = [4, 0, 0], sizes = [1, 128, 128], strides = [1, 1, 1]} : vector<10x128x128xbf16> to vector<1x128x128xbf16>
    %236 = vector.shape_cast %235 : vector<1x128x128xbf16> to vector<128x128xbf16>
    %cst_60 = arith.constant dense<0.000000e+00> : vector<5x128xf32>
    %237 = tpu.matmul %234, %236, %cst_60 {dimension_numbers = #tpu.dot_dimension_numbers<[1], [0], [0], [1], [0, 0, 1, 1], [], []>} : vector<5x128xbf16>, vector<128x128xbf16>, vector<5x128xf32> -> vector<5x128xf32>
    %238 = arith.addf %233, %237 : vector<5x128xf32>
    %239 = vector.extract_strided_slice %109 {offsets = [0, 0], sizes = [5, 128], strides = [1, 1]} : vector<7x128xbf16> to vector<5x128xbf16>
    %240 = vector.extract_strided_slice %3 {offsets = [5, 0, 0], sizes = [1, 128, 128], strides = [1, 1, 1]} : vector<10x128x128xbf16> to vector<1x128x128xbf16>
    %241 = vector.shape_cast %240 : vector<1x128x128xbf16> to vector<128x128xbf16>
    %cst_61 = arith.constant dense<0.000000e+00> : vector<5x128xf32>
    %242 = tpu.matmul %239, %241, %cst_61 {dimension_numbers = #tpu.dot_dimension_numbers<[1], [0], [0], [1], [0, 0, 1, 1], [], []>} : vector<5x128xbf16>, vector<128x128xbf16>, vector<5x128xf32> -> vector<5x128xf32>
    %243 = vector.extract_strided_slice %214 {offsets = [0, 0], sizes = [5, 128], strides = [1, 1]} : vector<7x128xbf16> to vector<5x128xbf16>
    %244 = vector.extract_strided_slice %3 {offsets = [6, 0, 0], sizes = [1, 128, 128], strides = [1, 1, 1]} : vector<10x128x128xbf16> to vector<1x128x128xbf16>
    %245 = vector.shape_cast %244 : vector<1x128x128xbf16> to vector<128x128xbf16>
    %cst_62 = arith.constant dense<0.000000e+00> : vector<5x128xf32>
    %246 = tpu.matmul %243, %245, %cst_62 {dimension_numbers = #tpu.dot_dimension_numbers<[1], [0], [0], [1], [0, 0, 1, 1], [], []>} : vector<5x128xbf16>, vector<128x128xbf16>, vector<5x128xf32> -> vector<5x128xf32>
    %247 = arith.addf %242, %246 : vector<5x128xf32>
    %248 = vector.extract_strided_slice %109 {offsets = [1, 0], sizes = [5, 128], strides = [1, 1]} : vector<7x128xbf16> to vector<5x128xbf16>
    %249 = vector.extract_strided_slice %3 {offsets = [7, 0, 0], sizes = [1, 128, 128], strides = [1, 1, 1]} : vector<10x128x128xbf16> to vector<1x128x128xbf16>
    %250 = vector.shape_cast %249 : vector<1x128x128xbf16> to vector<128x128xbf16>
    %cst_63 = arith.constant dense<0.000000e+00> : vector<5x128xf32>
    %251 = tpu.matmul %248, %250, %cst_63 {dimension_numbers = #tpu.dot_dimension_numbers<[1], [0], [0], [1], [0, 0, 1, 1], [], []>} : vector<5x128xbf16>, vector<128x128xbf16>, vector<5x128xf32> -> vector<5x128xf32>
    %252 = arith.addf %247, %251 : vector<5x128xf32>
    %253 = vector.extract_strided_slice %214 {offsets = [1, 0], sizes = [5, 128], strides = [1, 1]} : vector<7x128xbf16> to vector<5x128xbf16>
    %254 = vector.extract_strided_slice %3 {offsets = [8, 0, 0], sizes = [1, 128, 128], strides = [1, 1, 1]} : vector<10x128x128xbf16> to vector<1x128x128xbf16>
    %255 = vector.shape_cast %254 : vector<1x128x128xbf16> to vector<128x128xbf16>
    %cst_64 = arith.constant dense<0.000000e+00> : vector<5x128xf32>
    %256 = tpu.matmul %253, %255, %cst_64 {dimension_numbers = #tpu.dot_dimension_numbers<[1], [0], [0], [1], [0, 0, 1, 1], [], []>} : vector<5x128xbf16>, vector<128x128xbf16>, vector<5x128xf32> -> vector<5x128xf32>
    %257 = arith.addf %252, %256 : vector<5x128xf32>
    %258 = vector.extract_strided_slice %109 {offsets = [2, 0], sizes = [5, 128], strides = [1, 1]} : vector<7x128xbf16> to vector<5x128xbf16>
    %259 = vector.extract_strided_slice %3 {offsets = [9, 0, 0], sizes = [1, 128, 128], strides = [1, 1, 1]} : vector<10x128x128xbf16> to vector<1x128x128xbf16>
    %260 = vector.shape_cast %259 : vector<1x128x128xbf16> to vector<128x128xbf16>
    %cst_65 = arith.constant dense<0.000000e+00> : vector<5x128xf32>
    %261 = tpu.matmul %258, %260, %cst_65 {dimension_numbers = #tpu.dot_dimension_numbers<[1], [0], [0], [1], [0, 0, 1, 1], [], []>} : vector<5x128xbf16>, vector<128x128xbf16>, vector<5x128xf32> -> vector<5x128xf32>
    %262 = arith.addf %257, %261 : vector<5x128xf32>
    %263 = arith.maximumf %238, %262 : vector<5x128xf32>
    %264 = vector.extract_strided_slice %214 {offsets = [0, 0], sizes = [5, 128], strides = [1, 1]} : vector<7x128xbf16> to vector<5x128xbf16>
    %265 = vector.extract_strided_slice %3 {offsets = [0, 0, 0], sizes = [1, 128, 128], strides = [1, 1, 1]} : vector<10x128x128xbf16> to vector<1x128x128xbf16>
    %266 = vector.shape_cast %265 : vector<1x128x128xbf16> to vector<128x128xbf16>
    %cst_66 = arith.constant dense<0.000000e+00> : vector<5x128xf32>
    %267 = tpu.matmul %264, %266, %cst_66 {dimension_numbers = #tpu.dot_dimension_numbers<[1], [0], [0], [1], [0, 0, 1, 1], [], []>} : vector<5x128xbf16>, vector<128x128xbf16>, vector<5x128xf32> -> vector<5x128xf32>
    %268 = vector.extract_strided_slice %109 {offsets = [1, 0], sizes = [5, 128], strides = [1, 1]} : vector<7x128xbf16> to vector<5x128xbf16>
    %269 = vector.extract_strided_slice %3 {offsets = [1, 0, 0], sizes = [1, 128, 128], strides = [1, 1, 1]} : vector<10x128x128xbf16> to vector<1x128x128xbf16>
    %270 = vector.shape_cast %269 : vector<1x128x128xbf16> to vector<128x128xbf16>
    %cst_67 = arith.constant dense<0.000000e+00> : vector<5x128xf32>
    %271 = tpu.matmul %268, %270, %cst_67 {dimension_numbers = #tpu.dot_dimension_numbers<[1], [0], [0], [1], [0, 0, 1, 1], [], []>} : vector<5x128xbf16>, vector<128x128xbf16>, vector<5x128xf32> -> vector<5x128xf32>
    %272 = arith.addf %267, %271 : vector<5x128xf32>
    %273 = vector.extract_strided_slice %214 {offsets = [1, 0], sizes = [5, 128], strides = [1, 1]} : vector<7x128xbf16> to vector<5x128xbf16>
    %274 = vector.extract_strided_slice %3 {offsets = [2, 0, 0], sizes = [1, 128, 128], strides = [1, 1, 1]} : vector<10x128x128xbf16> to vector<1x128x128xbf16>
    %275 = vector.shape_cast %274 : vector<1x128x128xbf16> to vector<128x128xbf16>
    %cst_68 = arith.constant dense<0.000000e+00> : vector<5x128xf32>
    %276 = tpu.matmul %273, %275, %cst_68 {dimension_numbers = #tpu.dot_dimension_numbers<[1], [0], [0], [1], [0, 0, 1, 1], [], []>} : vector<5x128xbf16>, vector<128x128xbf16>, vector<5x128xf32> -> vector<5x128xf32>
    %277 = arith.addf %272, %276 : vector<5x128xf32>
    %278 = vector.extract_strided_slice %109 {offsets = [2, 0], sizes = [5, 128], strides = [1, 1]} : vector<7x128xbf16> to vector<5x128xbf16>
    %279 = vector.extract_strided_slice %3 {offsets = [3, 0, 0], sizes = [1, 128, 128], strides = [1, 1, 1]} : vector<10x128x128xbf16> to vector<1x128x128xbf16>
    %280 = vector.shape_cast %279 : vector<1x128x128xbf16> to vector<128x128xbf16>
    %cst_69 = arith.constant dense<0.000000e+00> : vector<5x128xf32>
    %281 = tpu.matmul %278, %280, %cst_69 {dimension_numbers = #tpu.dot_dimension_numbers<[1], [0], [0], [1], [0, 0, 1, 1], [], []>} : vector<5x128xbf16>, vector<128x128xbf16>, vector<5x128xf32> -> vector<5x128xf32>
    %282 = arith.addf %277, %281 : vector<5x128xf32>
    %283 = vector.extract_strided_slice %214 {offsets = [2, 0], sizes = [5, 128], strides = [1, 1]} : vector<7x128xbf16> to vector<5x128xbf16>
    %284 = vector.extract_strided_slice %3 {offsets = [4, 0, 0], sizes = [1, 128, 128], strides = [1, 1, 1]} : vector<10x128x128xbf16> to vector<1x128x128xbf16>
    %285 = vector.shape_cast %284 : vector<1x128x128xbf16> to vector<128x128xbf16>
    %cst_70 = arith.constant dense<0.000000e+00> : vector<5x128xf32>
    %286 = tpu.matmul %283, %285, %cst_70 {dimension_numbers = #tpu.dot_dimension_numbers<[1], [0], [0], [1], [0, 0, 1, 1], [], []>} : vector<5x128xbf16>, vector<128x128xbf16>, vector<5x128xf32> -> vector<5x128xf32>
    %287 = arith.addf %282, %286 : vector<5x128xf32>
    %288 = arith.maximumf %263, %287 : vector<5x128xf32>
    %289 = vector.extract_strided_slice %214 {offsets = [0, 0], sizes = [5, 128], strides = [1, 1]} : vector<7x128xbf16> to vector<5x128xbf16>
    %290 = vector.extract_strided_slice %3 {offsets = [5, 0, 0], sizes = [1, 128, 128], strides = [1, 1, 1]} : vector<10x128x128xbf16> to vector<1x128x128xbf16>
    %291 = vector.shape_cast %290 : vector<1x128x128xbf16> to vector<128x128xbf16>
    %cst_71 = arith.constant dense<0.000000e+00> : vector<5x128xf32>
    %292 = tpu.matmul %289, %291, %cst_71 {dimension_numbers = #tpu.dot_dimension_numbers<[1], [0], [0], [1], [0, 0, 1, 1], [], []>} : vector<5x128xbf16>, vector<128x128xbf16>, vector<5x128xf32> -> vector<5x128xf32>
    %293 = vector.extract_strided_slice %109 {offsets = [1, 0], sizes = [5, 128], strides = [1, 1]} : vector<7x128xbf16> to vector<5x128xbf16>
    %294 = vector.extract_strided_slice %3 {offsets = [6, 0, 0], sizes = [1, 128, 128], strides = [1, 1, 1]} : vector<10x128x128xbf16> to vector<1x128x128xbf16>
    %295 = vector.shape_cast %294 : vector<1x128x128xbf16> to vector<128x128xbf16>
    %cst_72 = arith.constant dense<0.000000e+00> : vector<5x128xf32>
    %296 = tpu.matmul %293, %295, %cst_72 {dimension_numbers = #tpu.dot_dimension_numbers<[1], [0], [0], [1], [0, 0, 1, 1], [], []>} : vector<5x128xbf16>, vector<128x128xbf16>, vector<5x128xf32> -> vector<5x128xf32>
    %297 = arith.addf %292, %296 : vector<5x128xf32>
    %298 = vector.extract_strided_slice %214 {offsets = [1, 0], sizes = [5, 128], strides = [1, 1]} : vector<7x128xbf16> to vector<5x128xbf16>
    %299 = vector.extract_strided_slice %3 {offsets = [7, 0, 0], sizes = [1, 128, 128], strides = [1, 1, 1]} : vector<10x128x128xbf16> to vector<1x128x128xbf16>
    %300 = vector.shape_cast %299 : vector<1x128x128xbf16> to vector<128x128xbf16>
    %cst_73 = arith.constant dense<0.000000e+00> : vector<5x128xf32>
    %301 = tpu.matmul %298, %300, %cst_73 {dimension_numbers = #tpu.dot_dimension_numbers<[1], [0], [0], [1], [0, 0, 1, 1], [], []>} : vector<5x128xbf16>, vector<128x128xbf16>, vector<5x128xf32> -> vector<5x128xf32>
    %302 = arith.addf %297, %301 : vector<5x128xf32>
    %303 = vector.extract_strided_slice %109 {offsets = [2, 0], sizes = [5, 128], strides = [1, 1]} : vector<7x128xbf16> to vector<5x128xbf16>
    %304 = vector.extract_strided_slice %3 {offsets = [8, 0, 0], sizes = [1, 128, 128], strides = [1, 1, 1]} : vector<10x128x128xbf16> to vector<1x128x128xbf16>
    %305 = vector.shape_cast %304 : vector<1x128x128xbf16> to vector<128x128xbf16>
    %cst_74 = arith.constant dense<0.000000e+00> : vector<5x128xf32>
    %306 = tpu.matmul %303, %305, %cst_74 {dimension_numbers = #tpu.dot_dimension_numbers<[1], [0], [0], [1], [0, 0, 1, 1], [], []>} : vector<5x128xbf16>, vector<128x128xbf16>, vector<5x128xf32> -> vector<5x128xf32>
    %307 = arith.addf %302, %306 : vector<5x128xf32>
    %308 = vector.extract_strided_slice %214 {offsets = [2, 0], sizes = [5, 128], strides = [1, 1]} : vector<7x128xbf16> to vector<5x128xbf16>
    %309 = vector.extract_strided_slice %3 {offsets = [9, 0, 0], sizes = [1, 128, 128], strides = [1, 1, 1]} : vector<10x128x128xbf16> to vector<1x128x128xbf16>
    %310 = vector.shape_cast %309 : vector<1x128x128xbf16> to vector<128x128xbf16>
    %cst_75 = arith.constant dense<0.000000e+00> : vector<5x128xf32>
    %311 = tpu.matmul %308, %310, %cst_75 {dimension_numbers = #tpu.dot_dimension_numbers<[1], [0], [0], [1], [0, 0, 1, 1], [], []>} : vector<5x128xbf16>, vector<128x128xbf16>, vector<5x128xf32> -> vector<5x128xf32>
    %312 = arith.addf %307, %311 : vector<5x128xf32>
    %313 = arith.maximumf %288, %312 : vector<5x128xf32>
    %c0_76 = arith.constant 0 : index
    %c0_77 = arith.constant 0 : index
    %314 = vector.load %arg5[%c0_76, %c0_77] : memref<1x128xf32, #tpu.memory_space<vmem>>, vector<1x128xf32>
    %315 = vector.broadcast %314 : vector<1x128xf32> to vector<5x128xf32>
    %316 = arith.addf %313, %315 : vector<5x128xf32>
    %cst_78 = arith.constant 0.000000e+00 : f32
    %317 = vector.broadcast %cst_78 : f32 to vector<5x128xf32>
    %318 = arith.maximumf %316, %317 : vector<5x128xf32>
    %319 = arith.truncf %318 : vector<5x128xf32> to vector<5x128xbf16>
    %320 = vector.extract_strided_slice %319 {offsets = [0, 0], sizes = [1, 128], strides = [1, 1]} : vector<5x128xbf16> to vector<1x128xbf16>
    %321 = vector.extract_strided_slice %4 {offsets = [0, 0, 0], sizes = [1, 128, 128], strides = [1, 1, 1]} : vector<5x128x128xbf16> to vector<1x128x128xbf16>
    %322 = vector.shape_cast %321 : vector<1x128x128xbf16> to vector<128x128xbf16>
    %cst_79 = arith.constant dense<0.000000e+00> : vector<1x128xf32>
    %323 = tpu.matmul %320, %322, %cst_79 {dimension_numbers = #tpu.dot_dimension_numbers<[1], [0], [0], [1], [0, 0, 1, 1], [], []>} : vector<1x128xbf16>, vector<128x128xbf16>, vector<1x128xf32> -> vector<1x128xf32>
    %324 = vector.extract_strided_slice %319 {offsets = [1, 0], sizes = [1, 128], strides = [1, 1]} : vector<5x128xbf16> to vector<1x128xbf16>
    %325 = vector.extract_strided_slice %4 {offsets = [1, 0, 0], sizes = [1, 128, 128], strides = [1, 1, 1]} : vector<5x128x128xbf16> to vector<1x128x128xbf16>
    %326 = vector.shape_cast %325 : vector<1x128x128xbf16> to vector<128x128xbf16>
    %cst_80 = arith.constant dense<0.000000e+00> : vector<1x128xf32>
    %327 = tpu.matmul %324, %326, %cst_80 {dimension_numbers = #tpu.dot_dimension_numbers<[1], [0], [0], [1], [0, 0, 1, 1], [], []>} : vector<1x128xbf16>, vector<128x128xbf16>, vector<1x128xf32> -> vector<1x128xf32>
    %328 = arith.addf %323, %327 : vector<1x128xf32>
    %329 = vector.extract_strided_slice %319 {offsets = [2, 0], sizes = [1, 128], strides = [1, 1]} : vector<5x128xbf16> to vector<1x128xbf16>
    %330 = vector.extract_strided_slice %4 {offsets = [2, 0, 0], sizes = [1, 128, 128], strides = [1, 1, 1]} : vector<5x128x128xbf16> to vector<1x128x128xbf16>
    %331 = vector.shape_cast %330 : vector<1x128x128xbf16> to vector<128x128xbf16>
    %cst_81 = arith.constant dense<0.000000e+00> : vector<1x128xf32>
    %332 = tpu.matmul %329, %331, %cst_81 {dimension_numbers = #tpu.dot_dimension_numbers<[1], [0], [0], [1], [0, 0, 1, 1], [], []>} : vector<1x128xbf16>, vector<128x128xbf16>, vector<1x128xf32> -> vector<1x128xf32>
    %333 = arith.addf %328, %332 : vector<1x128xf32>
    %334 = vector.extract_strided_slice %319 {offsets = [3, 0], sizes = [1, 128], strides = [1, 1]} : vector<5x128xbf16> to vector<1x128xbf16>
    %335 = vector.extract_strided_slice %4 {offsets = [3, 0, 0], sizes = [1, 128, 128], strides = [1, 1, 1]} : vector<5x128x128xbf16> to vector<1x128x128xbf16>
    %336 = vector.shape_cast %335 : vector<1x128x128xbf16> to vector<128x128xbf16>
    %cst_82 = arith.constant dense<0.000000e+00> : vector<1x128xf32>
    %337 = tpu.matmul %334, %336, %cst_82 {dimension_numbers = #tpu.dot_dimension_numbers<[1], [0], [0], [1], [0, 0, 1, 1], [], []>} : vector<1x128xbf16>, vector<128x128xbf16>, vector<1x128xf32> -> vector<1x128xf32>
    %338 = arith.addf %333, %337 : vector<1x128xf32>
    %339 = vector.extract_strided_slice %319 {offsets = [4, 0], sizes = [1, 128], strides = [1, 1]} : vector<5x128xbf16> to vector<1x128xbf16>
    %340 = vector.extract_strided_slice %4 {offsets = [4, 0, 0], sizes = [1, 128, 128], strides = [1, 1, 1]} : vector<5x128x128xbf16> to vector<1x128x128xbf16>
    %341 = vector.shape_cast %340 : vector<1x128x128xbf16> to vector<128x128xbf16>
    %cst_83 = arith.constant dense<0.000000e+00> : vector<1x128xf32>
    %342 = tpu.matmul %339, %341, %cst_83 {dimension_numbers = #tpu.dot_dimension_numbers<[1], [0], [0], [1], [0, 0, 1, 1], [], []>} : vector<1x128xbf16>, vector<128x128xbf16>, vector<1x128xf32> -> vector<1x128xf32>
    %343 = arith.addf %338, %342 : vector<1x128xf32>
    %c0_84 = arith.constant 0 : index
    %c0_85 = arith.constant 0 : index
    %344 = vector.load %arg7[%c0_84, %c0_85] : memref<1x128xf32, #tpu.memory_space<vmem>>, vector<1x128xf32>
    %345 = arith.addf %343, %344 : vector<1x128xf32>
    %cst_86 = arith.constant 0.000000e+00 : f32
    %346 = vector.broadcast %cst_86 : f32 to vector<1x128xf32>
    %347 = arith.maximumf %345, %346 : vector<1x128xf32>
    %348 = arith.truncf %347 : vector<1x128xf32> to vector<1x128xbf16>
    %c0_87 = arith.constant 0 : index
    %c0_88 = arith.constant 0 : index
    %349 = vector.load %arg8[%c0_87, %c0_88] : memref<128x128xbf16, #tpu.memory_space<vmem>>, vector<128x128xbf16>
    %cst_89 = arith.constant dense<0.000000e+00> : vector<1x128xf32>
    %350 = tpu.matmul %348, %349, %cst_89 {dimension_numbers = #tpu.dot_dimension_numbers<[1], [0], [0], [1], [0, 0, 1, 1], [], []>} : vector<1x128xbf16>, vector<128x128xbf16>, vector<1x128xf32> -> vector<1x128xf32>
    %c0_90 = arith.constant 0 : index
    %c0_91 = arith.constant 0 : index
    %351 = vector.load %arg9[%c0_90, %c0_91] : memref<1x128xf32, #tpu.memory_space<vmem>>, vector<1x128xf32>
    %352 = arith.addf %350, %351 : vector<1x128xf32>
    %cst_92 = arith.constant 0.000000e+00 : f32
    %353 = vector.broadcast %cst_92 : f32 to vector<1x128xf32>
    %354 = arith.maximumf %352, %353 : vector<1x128xf32>
    %355 = arith.truncf %354 : vector<1x128xf32> to vector<1x128xbf16>
    %c0_93 = arith.constant 0 : index
    %c0_94 = arith.constant 0 : index
    %356 = vector.load %arg10[%c0_93, %c0_94] : memref<128x128xbf16, #tpu.memory_space<vmem>>, vector<128x128xbf16>
    %cst_95 = arith.constant dense<0.000000e+00> : vector<1x128xf32>
    %357 = tpu.matmul %355, %356, %cst_95 {dimension_numbers = #tpu.dot_dimension_numbers<[1], [0], [0], [1], [0, 0, 1, 1], [], []>} : vector<1x128xbf16>, vector<128x128xbf16>, vector<1x128xf32> -> vector<1x128xf32>
    %c0_96 = arith.constant 0 : index
    %c0_97 = arith.constant 0 : index
    %358 = vector.load %arg11[%c0_96, %c0_97] : memref<1x128xf32, #tpu.memory_space<vmem>>, vector<1x128xf32>
    %359 = arith.addf %357, %358 : vector<1x128xf32>
    %c0_98 = arith.constant 0 : index
    %c0_99 = arith.constant 0 : index
    %c0_100 = arith.constant 0 : index
    %360 = vector.load %arg12[%c0_98, %c0_99, %c0_100] : memref<1x1x128xf32, #tpu.memory_space<vmem>>, vector<1x1x128xf32>
    %361 = vector.shape_cast %360 : vector<1x1x128xf32> to vector<1x128xf32>
    %362 = vector.shape_cast %359 : vector<1x128xf32> to vector<1x1x128xf32>
    tpu.vector_store %arg12[%c0_98, %c0_99, %c0_100], %362 {strides = array<i32>} : memref<1x1x128xf32, #tpu.memory_space<vmem>>, vector<1x1x128xf32>,
    return
  }
  func.func @transform_0(%arg0: i32) -> (i32, i32, i32) {
    %c0_i32 = arith.constant 0 : i32
    %c0_i32_0 = arith.constant 0 : i32
    %c0_i32_1 = arith.constant 0 : i32
    return %arg0, %c0_i32, %c0_i32_0 : i32, i32, i32
  }
  func.func @transform_1(%arg0: i32) -> (i32, i32, i32) {
    %c0_i32 = arith.constant 0 : i32
    %c0_i32_0 = arith.constant 0 : i32
    %c0_i32_1 = arith.constant 0 : i32
    %c0_i32_2 = arith.constant 0 : i32
    return %c0_i32, %c0_i32_0, %c0_i32_1 : i32, i32, i32
  }
  func.func @transform_2(%arg0: i32) -> (i32, i32) {
    %c0_i32 = arith.constant 0 : i32
    %c0_i32_0 = arith.constant 0 : i32
    %c0_i32_1 = arith.constant 0 : i32
    return %c0_i32, %c0_i32_0 : i32, i32
  }
  func.func @transform_3(%arg0: i32) -> (i32, i32, i32) {
    %c0_i32 = arith.constant 0 : i32
    %c0_i32_0 = arith.constant 0 : i32
    %c0_i32_1 = arith.constant 0 : i32
    %c0_i32_2 = arith.constant 0 : i32
    return %c0_i32, %c0_i32_0, %c0_i32_1 : i32, i32, i32
  }
  func.func @transform_4(%arg0: i32) -> (i32, i32) {
    %c0_i32 = arith.constant 0 : i32
    %c0_i32_0 = arith.constant 0 : i32
    %c0_i32_1 = arith.constant 0 : i32
    return %c0_i32, %c0_i32_0 : i32, i32
  }
  func.func @transform_5(%arg0: i32) -> (i32, i32, i32) {
    %c0_i32 = arith.constant 0 : i32
    %c0_i32_0 = arith.constant 0 : i32
    %c0_i32_1 = arith.constant 0 : i32
    %c0_i32_2 = arith.constant 0 : i32
    return %c0_i32, %c0_i32_0, %c0_i32_1 : i32, i32, i32
  }
  func.func @transform_6(%arg0: i32) -> (i32, i32) {
    %c0_i32 = arith.constant 0 : i32
    %c0_i32_0 = arith.constant 0 : i32
    %c0_i32_1 = arith.constant 0 : i32
    return %c0_i32, %c0_i32_0 : i32, i32
  }
  func.func @transform_7(%arg0: i32) -> (i32, i32) {
    %c0_i32 = arith.constant 0 : i32
    %c0_i32_0 = arith.constant 0 : i32
    %c0_i32_1 = arith.constant 0 : i32
    return %c0_i32, %c0_i32_0 : i32, i32
  }
  func.func @transform_8(%arg0: i32) -> (i32, i32) {
    %c0_i32 = arith.constant 0 : i32
    %c0_i32_0 = arith.constant 0 : i32
    %c0_i32_1 = arith.constant 0 : i32
    return %c0_i32, %c0_i32_0 : i32, i32
  }
  func.func @transform_9(%arg0: i32) -> (i32, i32) {
    %c0_i32 = arith.constant 0 : i32
    %c0_i32_0 = arith.constant 0 : i32
    %c0_i32_1 = arith.constant 0 : i32
    return %c0_i32, %c0_i32_0 : i32, i32
  }
  func.func @transform_10(%arg0: i32) -> (i32, i32) {
    %c0_i32 = arith.constant 0 : i32
    %c0_i32_0 = arith.constant 0 : i32
    %c0_i32_1 = arith.constant 0 : i32
    return %c0_i32, %c0_i32_0 : i32, i32
  }
  func.func @transform_11(%arg0: i32) -> (i32, i32, i32) {
    %c0_i32 = arith.constant 0 : i32
    %c0_i32_0 = arith.constant 0 : i32
    %c0_i32_1 = arith.constant 0 : i32
    return %arg0, %c0_i32, %c0_i32_0 : i32, i32, i32
  }
}

</mosaic_0001>

<llo_original>
// kernel: cifar_net_forward.1
$region0: #{cifar_net_forward.1}
  #allocation0 [shape = 'u32[]', space=smem, size = 0x4, offset = 0x4, fixed_abs, tag = 'smem constant byte address 0x4 - core index']
  #allocation1 [shape = 'u32[144,128]{1,0:T(1,128)}', space=vmem, size = 0x12000, scoped, tag = 'internal scratch']
  %s0 = inlined_call_operand.vmem [shape: bf16[2,32,128], index: 0, kind: input, shape index: {}]
  %s1 = inlined_call_operand.vmem [shape: bf16[10,128,128], index: 1, kind: input, shape index: {}]
  %s2 = inlined_call_operand.vmem [shape: f32[1,128], index: 2, kind: input, shape index: {}]
  %s3 = inlined_call_operand.vmem [shape: bf16[10,128,128], index: 3, kind: input, shape index: {}]
  %s4 = inlined_call_operand.vmem [shape: f32[1,128], index: 4, kind: input, shape index: {}]
  %s5 = inlined_call_operand.vmem [shape: bf16[5,128,128], index: 5, kind: input, shape index: {}]
  %s6 = inlined_call_operand.vmem [shape: f32[1,128], index: 6, kind: input, shape index: {}]
  %s7 = inlined_call_operand.vmem [shape: bf16[128,128], index: 7, kind: input, shape index: {}]
  %s8 = inlined_call_operand.vmem [shape: f32[1,128], index: 8, kind: input, shape index: {}]
  %s9 = inlined_call_operand.vmem [shape: bf16[128,128], index: 9, kind: input, shape index: {}]
  %s10 = inlined_call_operand.vmem [shape: f32[1,128], index: 10, kind: input, shape index: {}]
  %s11 = inlined_call_operand.hbm [shape: f32[2,1,128], index: 11, kind: output, shape index: {}]
  %s12 = sld [smem:[#allocation0]]
  $region77: #{cifar_net_forward.1} parent=0
    _
  %s14 = ssub.s32 1, %s12
  %s15 = scalar_select 0, %s14, %s12
  $region1: #{cifar_net_forward.1} parent=0
    #allocation2 [shape = 'u8[1024]{0}', space=vmem, size = 0x400, scoped, tag = 'output window, operand 0']
    #allocation3 [shape = 's32[2]{0}', space=sflag, size = 0x8, scoped, tag = 'scoped memory for cifar_net_forward.1']
    %16 = vsyncpa [#allocation3], 0
    %s17 = scalar_lea.sflag [#allocation3], 1
    %18 = vsyncpa %s17, 0
    loop: start=0, step=1, limit=4
    $region2: #{cifar_net_forward.1} parent=1 // loop_pre_header
      _
    $region3: #{cifar_net_forward.1} parent=1 // loop_header
      %s20 = sphi 0, %s24
      %p21 = scmp.ge.s32.totalorder %s20, 4
      %s30 = sphi 0, %s32
      %s33 = sphi 0, %s30
      %s34 = sphi 0, %s33
      %s50 = sphi 0, %s34
      %s54 = sphi 0, %s54
      %s56 = sphi 0, %s54
      %s57 = sphi 0, %s56
      %s71 = sphi 0, %s57
      %s75 = sphi 0, %s75
      %s77 = sphi 0, %s75
      %s78 = sphi 0, %s77
      %s92 = sphi 0, %s78
      %s96 = sphi 0, %s96
      %s98 = sphi 0, %s96
      %s99 = sphi 0, %s98
      %s113 = sphi 0, %s99
      %s117 = sphi 0, %s117
      %s119 = sphi 0, %s117
      %s120 = sphi 0, %s119
      %s134 = sphi 0, %s120
      %s138 = sphi 0, %s138
      %s140 = sphi 0, %s138
      %s141 = sphi 0, %s140
      %s155 = sphi 0, %s141
      %s159 = sphi 0, %s159
      %s161 = sphi 0, %s159
      %s162 = sphi 0, %s161
      %s176 = sphi 0, %s162
      %s180 = sphi 0, %s180
      %s182 = sphi 0, %s180
      %s183 = sphi 0, %s182
      %s197 = sphi 0, %s183
      %s201 = sphi 0, %s201
      %s203 = sphi 0, %s201
      %s204 = sphi 0, %s203
      %s218 = sphi 0, %s204
      %s222 = sphi 0, %s222
      %s224 = sphi 0, %s222
      %s225 = sphi 0, %s224
      %s239 = sphi 0, %s225
      %s243 = sphi 0, %s243
      %s245 = sphi 0, %s243
      %s246 = sphi 0, %s245
      %s260 = sphi 0, %s246
      %s266 = sphi 0, %s268
      %s269 = sphi 0, %s266
      %s270 = sphi 0, %s269
      %s286 = sphi 0, %s270
    $region4: #{cifar_net_forward.1} parent=1 // loop_header_branch
      %23 = sbr.rel (%p21) target = $region8
    $region5: #{cifar_net_forward.1} parent=1 // loop_body
      %s25 = ssub.s32 %s20, 1
      %s26 = ssub.s32 %s20, 2
      %s27 = sadd.s32 %s20, 1
      %s28 = ssub.s32 %s20, %s27
      %p29 = scmp.eq.s32.totalorder %s28, 0
      %s31 = sadd.s32 %s30, 1
      %s32 = scalar_select %p29, %s30, %s31
      %p35 = pneg %p29
      %p36 = scmp.eq.s32.totalorder %s20, 1
      %p37 = por %p35, %p36
      %p38 = scmp.ne.s32.totalorder %s30, %s33
      %p39 = scmp.eq.s32.totalorder %s20, 0
      %p40 = por %p38, %p39
      %p41 = scmp.ne.s32.totalorder %s30, %s33
      %p42 = scmp.eq.s32.totalorder %s25, 1
      %p43 = por %p41, %p42
      %p44 = scmp.ne.s32.totalorder %s33, %s34
      %p45 = scmp.eq.s32.totalorder %s25, 0
      %p46 = por %p44, %p45
      %p47 = scmp.ne.s32.totalorder %s33, %s34
      %p48 = scmp.eq.s32.totalorder %s26, 1
      %p49 = por %p47, %p48
      %p51 = scmp.ne.s32.totalorder %s34, %s50
      %p52 = scmp.eq.s32.totalorder %s26, 0
      %p53 = por %p51, %p52
      %s55 = sadd.s32 %s54, 1
      %p58 = scmp.eq.s32.totalorder %s20, 1
      %p59 = scmp.ne.s32.totalorder %s54, %s56
      %p60 = scmp.eq.s32.totalorder %s20, 0
      %p61 = por %p59, %p60
      %p62 = scmp.ne.s32.totalorder %s54, %s56
      %p63 = scmp.eq.s32.totalorder %s25, 1
      %p64 = por %p62, %p63
      %p65 = scmp.ne.s32.totalorder %s56, %s57
      %p66 = scmp.eq.s32.totalorder %s25, 0
      %p67 = por %p65, %p66
      %p68 = scmp.ne.s32.totalorder %s56, %s57
      %p69 = scmp.eq.s32.totalorder %s26, 1
      %p70 = por %p68, %p69
      %p72 = scmp.ne.s32.totalorder %s57, %s71
      %p73 = scmp.eq.s32.totalorder %s26, 0
      %p74 = por %p72, %p73
      %s76 = sadd.s32 %s75, 1
      %p79 = scmp.eq.s32.totalorder %s20, 1
      %p80 = scmp.ne.s32.totalorder %s75, %s77
      %p81 = scmp.eq.s32.totalorder %s20, 0
      %p82 = por %p80, %p81
      %p83 = scmp.ne.s32.totalorder %s75, %s77
      %p84 = scmp.eq.s32.totalorder %s25, 1
      %p85 = por %p83, %p84
      %p86 = scmp.ne.s32.totalorder %s77, %s78
      %p87 = scmp.eq.s32.totalorder %s25, 0
      %p88 = por %p86, %p87
      %p89 = scmp.ne.s32.totalorder %s77, %s78
      %p90 = scmp.eq.s32.totalorder %s26, 1
      %p91 = por %p89, %p90
      %p93 = scmp.ne.s32.totalorder %s78, %s92
      %p94 = scmp.eq.s32.totalorder %s26, 0
      %p95 = por %p93, %p94
      %s97 = sadd.s32 %s96, 1
      %p100 = scmp.eq.s32.totalorder %s20, 1
      %p101 = scmp.ne.s32.totalorder %s96, %s98
      %p102 = scmp.eq.s32.totalorder %s20, 0
      %p103 = por %p101, %p102
      %p104 = scmp.ne.s32.totalorder %s96, %s98
      %p105 = scmp.eq.s32.totalorder %s25, 1
      %p106 = por %p104, %p105
      %p107 = scmp.ne.s32.totalorder %s98, %s99
      %p108 = scmp.eq.s32.totalorder %s25, 0
      %p109 = por %p107, %p108
      %p110 = scmp.ne.s32.totalorder %s98, %s99
      %p111 = scmp.eq.s32.totalorder %s26, 1
      %p112 = por %p110, %p111
      %p114 = scmp.ne.s32.totalorder %s99, %s113
      %p115 = scmp.eq.s32.totalorder %s26, 0
      %p116 = por %p114, %p115
      %s118 = sadd.s32 %s117, 1
      %p121 = scmp.eq.s32.totalorder %s20, 1
      %p122 = scmp.ne.s32.totalorder %s117, %s119
      %p123 = scmp.eq.s32.totalorder %s20, 0
      %p124 = por %p122, %p123
      %p125 = scmp.ne.s32.totalorder %s117, %s119
      %p126 = scmp.eq.s32.totalorder %s25, 1
      %p127 = por %p125, %p126
      %p128 = scmp.ne.s32.totalorder %s119, %s120
      %p129 = scmp.eq.s32.totalorder %s25, 0
      %p130 = por %p128, %p129
      %p131 = scmp.ne.s32.totalorder %s119, %s120
      %p132 = scmp.eq.s32.totalorder %s26, 1
      %p133 = por %p131, %p132
      %p135 = scmp.ne.s32.totalorder %s120, %s134
      %p136 = scmp.eq.s32.totalorder %s26, 0
      %p137 = por %p135, %p136
      %s139 = sadd.s32 %s138, 1
      %p142 = scmp.eq.s32.totalorder %s20, 1
      %p143 = scmp.ne.s32.totalorder %s138, %s140
      %p144 = scmp.eq.s32.totalorder %s20, 0
      %p145 = por %p143, %p144
      %p146 = scmp.ne.s32.totalorder %s138, %s140
      %p147 = scmp.eq.s32.totalorder %s25, 1
      %p148 = por %p146, %p147
      %p149 = scmp.ne.s32.totalorder %s140, %s141
      %p150 = scmp.eq.s32.totalorder %s25, 0
      %p151 = por %p149, %p150
      %p152 = scmp.ne.s32.totalorder %s140, %s141
      %p153 = scmp.eq.s32.totalorder %s26, 1
      %p154 = por %p152, %p153
      %p156 = scmp.ne.s32.totalorder %s141, %s155
      %p157 = scmp.eq.s32.totalorder %s26, 0
      %p158 = por %p156, %p157
      %s160 = sadd.s32 %s159, 1
      %p163 = scmp.eq.s32.totalorder %s20, 1
      %p164 = scmp.ne.s32.totalorder %s159, %s161
      %p165 = scmp.eq.s32.totalorder %s20, 0
      %p166 = por %p164, %p165
      %p167 = scmp.ne.s32.totalorder %s159, %s161
      %p168 = scmp.eq.s32.totalorder %s25, 1
      %p169 = por %p167, %p168
      %p170 = scmp.ne.s32.totalorder %s161, %s162
      %p171 = scmp.eq.s32.totalorder %s25, 0
      %p172 = por %p170, %p171
      %p173 = scmp.ne.s32.totalorder %s161, %s162
      %p174 = scmp.eq.s32.totalorder %s26, 1
      %p175 = por %p173, %p174
      %p177 = scmp.ne.s32.totalorder %s162, %s176
      %p178 = scmp.eq.s32.totalorder %s26, 0
      %p179 = por %p177, %p178
      %s181 = sadd.s32 %s180, 1
      %p184 = scmp.eq.s32.totalorder %s20, 1
      %p185 = scmp.ne.s32.totalorder %s180, %s182
      %p186 = scmp.eq.s32.totalorder %s20, 0
      %p187 = por %p185, %p186
      %p188 = scmp.ne.s32.totalorder %s180, %s182
      %p189 = scmp.eq.s32.totalorder %s25, 1
      %p190 = por %p188, %p189
      %p191 = scmp.ne.s32.totalorder %s182, %s183
      %p192 = scmp.eq.s32.totalorder %s25, 0
      %p193 = por %p191, %p192
      %p194 = scmp.ne.s32.totalorder %s182, %s183
      %p195 = scmp.eq.s32.totalorder %s26, 1
      %p196 = por %p194, %p195
      %p198 = scmp.ne.s32.totalorder %s183, %s197
      %p199 = scmp.eq.s32.totalorder %s26, 0
      %p200 = por %p198, %p199
      %s202 = sadd.s32 %s201, 1
      %p205 = scmp.eq.s32.totalorder %s20, 1
      %p206 = scmp.ne.s32.totalorder %s201, %s203
      %p207 = scmp.eq.s32.totalorder %s20, 0
      %p208 = por %p206, %p207
      %p209 = scmp.ne.s32.totalorder %s201, %s203
      %p210 = scmp.eq.s32.totalorder %s25, 1
      %p211 = por %p209, %p210
      %p212 = scmp.ne.s32.totalorder %s203, %s204
      %p213 = scmp.eq.s32.totalorder %s25, 0
      %p214 = por %p212, %p213
      %p215 = scmp.ne.s32.totalorder %s203, %s204
      %p216 = scmp.eq.s32.totalorder %s26, 1
      %p217 = por %p215, %p216
      %p219 = scmp.ne.s32.totalorder %s204, %s218
      %p220 = scmp.eq.s32.totalorder %s26, 0
      %p221 = por %p219, %p220
      %s223 = sadd.s32 %s222, 1
      %p226 = scmp.eq.s32.totalorder %s20, 1
      %p227 = scmp.ne.s32.totalorder %s222, %s224
      %p228 = scmp.eq.s32.totalorder %s20, 0
      %p229 = por %p227, %p228
      %p230 = scmp.ne.s32.totalorder %s222, %s224
      %p231 = scmp.eq.s32.totalorder %s25, 1
      %p232 = por %p230, %p231
      %p233 = scmp.ne.s32.totalorder %s224, %s225
      %p234 = scmp.eq.s32.totalorder %s25, 0
      %p235 = por %p233, %p234
      %p236 = scmp.ne.s32.totalorder %s224, %s225
      %p237 = scmp.eq.s32.totalorder %s26, 1
      %p238 = por %p236, %p237
      %p240 = scmp.ne.s32.totalorder %s225, %s239
      %p241 = scmp.eq.s32.totalorder %s26, 0
      %p242 = por %p240, %p241
      %s244 = sadd.s32 %s243, 1
      %p247 = scmp.eq.s32.totalorder %s20, 1
      %p248 = scmp.ne.s32.totalorder %s243, %s245
      %p249 = scmp.eq.s32.totalorder %s20, 0
      %p250 = por %p248, %p249
      %p251 = scmp.ne.s32.totalorder %s243, %s245
      %p252 = scmp.eq.s32.totalorder %s25, 1
      %p253 = por %p251, %p252
      %p254 = scmp.ne.s32.totalorder %s245, %s246
      %p255 = scmp.eq.s32.totalorder %s25, 0
      %p256 = por %p254, %p255
      %p257 = scmp.ne.s32.totalorder %s245, %s246
      %p258 = scmp.eq.s32.totalorder %s26, 1
      %p259 = por %p257, %p258
      %p261 = scmp.ne.s32.totalorder %s246, %s260
      %p262 = scmp.eq.s32.totalorder %s26, 0
      %p263 = por %p261, %p262
      %s264 = ssub.s32 %s20, %s27
      %p265 = scmp.eq.s32.totalorder %s264, 0
      %s267 = sadd.s32 %s266, 1
      %s268 = scalar_select %p265, %s266, %s267
      %p271 = pneg %p265
      %p272 = scmp.eq.s32.totalorder %s20, 1
      %p273 = por %p271, %p272
      %p274 = scmp.ne.s32.totalorder %s266, %s269
      %p275 = scmp.eq.s32.totalorder %s20, 0
      %p276 = por %p274, %p275
      %p277 = scmp.ne.s32.totalorder %s266, %s269
      %p278 = scmp.eq.s32.totalorder %s25, 1
      %p279 = por %p277, %p278
      %p280 = scmp.ne.s32.totalorder %s269, %s270
      %p281 = scmp.eq.s32.totalorder %s25, 0
      %p282 = por %p280, %p281
      %p283 = scmp.ne.s32.totalorder %s269, %s270
      %p284 = scmp.eq.s32.totalorder %s26, 1
      %p285 = por %p283, %p284
      %p287 = scmp.ne.s32.totalorder %s270, %s286
      %p288 = scmp.eq.s32.totalorder %s26, 0
      %p289 = por %p287, %p288
      %p290 = scmp.le.s32.totalorder 1, %s20
      %p291 = scmp.lt.s32.totalorder %s20, 3
      %p292 = pnand %p290, %p291
      %p293 = pneg %p292
      // Predicated region
      $region9: #{cifar_net_forward.1} parent=5 // pred_check
        _
      $region10: #{cifar_net_forward.1} parent=5 // pred_check_branch
        %295 = sbr.rel (%p292) target = $region12
      $region11: #{cifar_net_forward.1} parent=5 // pred_region
        %s296 = ssub.s32 %s20, 1
        // Predicated region
        $region13: #{cifar_net_forward.1} parent=11 // pred_check
          %p297 = pneg %p67
        $region14: #{cifar_net_forward.1} parent=11 // pred_check_branch
          %299 = sbr.rel (%p297) target = $region16
        $region15: #{cifar_net_forward.1} parent=11 // pred_region
          _
        $region16: #{cifar_net_forward.1} parent=11 // pred_fallthru
          _
        // Predicated region
        $region17: #{cifar_net_forward.1} parent=11 // pred_check
          %p300 = pneg %p88
        $region18: #{cifar_net_forward.1} parent=11 // pred_check_branch
          %302 = sbr.rel (%p300) target = $region20
        $region19: #{cifar_net_forward.1} parent=11 // pred_region
          _
        $region20: #{cifar_net_forward.1} parent=11 // pred_fallthru
          _
        // Predicated region
        $region21: #{cifar_net_forward.1} parent=11 // pred_check
          %p303 = pneg %p109
        $region22: #{cifar_net_forward.1} parent=11 // pred_check_branch
          %305 = sbr.rel (%p303) target = $region24
        $region23: #{cifar_net_forward.1} parent=11 // pred_region
          _
        $region24: #{cifar_net_forward.1} parent=11 // pred_fallthru
          _
        // Predicated region
        $region25: #{cifar_net_forward.1} parent=11 // pred_check
          %p306 = pneg %p130
        $region26: #{cifar_net_forward.1} parent=11 // pred_check_branch
          %308 = sbr.rel (%p306) target = $region28
        $region27: #{cifar_net_forward.1} parent=11 // pred_region
          _
        $region28: #{cifar_net_forward.1} parent=11 // pred_fallthru
          _
        // Predicated region
        $region29: #{cifar_net_forward.1} parent=11 // pred_check
          %p309 = pneg %p151
        $region30: #{cifar_net_forward.1} parent=11 // pred_check_branch
          %311 = sbr.rel (%p309) target = $region32
        $region31: #{cifar_net_forward.1} parent=11 // pred_region
          _
        $region32: #{cifar_net_forward.1} parent=11 // pred_fallthru
          _
        // Predicated region
        $region33: #{cifar_net_forward.1} parent=11 // pred_check
          %p312 = pneg %p172
        $region34: #{cifar_net_forward.1} parent=11 // pred_check_branch
          %314 = sbr.rel (%p312) target = $region36
        $region35: #{cifar_net_forward.1} parent=11 // pred_region
          _
        $region36: #{cifar_net_forward.1} parent=11 // pred_fallthru
          _
        // Predicated region
        $region37: #{cifar_net_forward.1} parent=11 // pred_check
          %p315 = pneg %p193
        $region38: #{cifar_net_forward.1} parent=11 // pred_check_branch
          %317 = sbr.rel (%p315) target = $region40
        $region39: #{cifar_net_forward.1} parent=11 // pred_region
          _
        $region40: #{cifar_net_forward.1} parent=11 // pred_fallthru
          _
        // Predicated region
        $region41: #{cifar_net_forward.1} parent=11 // pred_check
          %p318 = pneg %p214
        $region42: #{cifar_net_forward.1} parent=11 // pred_check_branch
          %320 = sbr.rel (%p318) target = $region44
        $region43: #{cifar_net_forward.1} parent=11 // pred_region
          _
        $region44: #{cifar_net_forward.1} parent=11 // pred_fallthru
          _
        // Predicated region
        $region45: #{cifar_net_forward.1} parent=11 // pred_check
          %p321 = pneg %p235
        $region46: #{cifar_net_forward.1} parent=11 // pred_check_branch
          %323 = sbr.rel (%p321) target = $region48
        $region47: #{cifar_net_forward.1} parent=11 // pred_region
          _
        $region48: #{cifar_net_forward.1} parent=11 // pred_fallthru
          _
        // Predicated region
        $region49: #{cifar_net_forward.1} parent=11 // pred_check
          %p324 = pneg %p256
        $region50: #{cifar_net_forward.1} parent=11 // pred_check_branch
          %326 = sbr.rel (%p324) target = $region52
        $region51: #{cifar_net_forward.1} parent=11 // pred_region
          _
        $region52: #{cifar_net_forward.1} parent=11 // pred_fallthru
          _
      $region12: #{cifar_net_forward.1} parent=5 // pred_fallthru
        _
      %p327 = scmp.lt.s32.totalorder %s20, 2
      // Predicated region
      $region53: #{cifar_net_forward.1} parent=5 // pred_check
        %p328 = pneg %p327
      $region54: #{cifar_net_forward.1} parent=5 // pred_check_branch
        %330 = sbr.rel (%p328) target = $region56
      $region55: #{cifar_net_forward.1} parent=5 // pred_region
        // Predicated region
        $region57: #{cifar_net_forward.1} parent=55 // pred_check
          %p331 = pneg %p40
        $region58: #{cifar_net_forward.1} parent=55 // pred_check_branch
          %333 = sbr.rel (%p331) target = $region60
        $region59: #{cifar_net_forward.1} parent=55 // pred_region
          %p334 = scmp.lt.s32.totalorder %s20, 1
          %s335 = scalar_select %p334, %s20, 1
          %s336 = smul.addr %s335, 4
          %s337 = smul.addr %s336, 4
          %s338 = scalar_lea.vmem %s0, %s337
        $region60: #{cifar_net_forward.1} parent=55 // pred_fallthru
          _
      $region56: #{cifar_net_forward.1} parent=5 // pred_fallthru
        _
      %p339 = scmp.le.s32.totalorder 1, %s20
      %p340 = scmp.lt.s32.totalorder %s20, 3
      %p341 = pnand %p339, %p340
      %p342 = pneg %p341
      // Predicated region
      $region61: #{cifar_net_forward.1} parent=5 // pred_check
        _
      $region62: #{cifar_net_forward.1} parent=5 // pred_check_branch
        %344 = sbr.rel (%p341) target = $region64
      $region63: #{cifar_net_forward.1} parent=5 // pred_region
        %s345 = ssub.s32 %s20, 1
        %p346 = scmp.lt.s32.totalorder %s25, 1
        %s347 = scalar_select %p346, %s25, 1
        %s348 = smul.addr %s347, 4
        %s349 = smul.addr %s348, 4
        %s350 = scalar_lea.vmem %s0, %s349
        %p351 = pneg %p46
        %p352 = pneg %p43
        %p353 = pneg %p67
        %p354 = pneg %p64
        %p355 = pneg %p88
        %p356 = pneg %p85
        %p357 = pneg %p109
        %p358 = pneg %p106
        %p359 = pneg %p130
        %p360 = pneg %p127
        %p361 = pneg %p151
        %p362 = pneg %p148
        %p363 = pneg %p172
        %p364 = pneg %p169
        %p365 = pneg %p193
        %p366 = pneg %p190
        %p367 = pneg %p214
        %p368 = pneg %p211
        %p369 = pneg %p235
        %p370 = pneg %p232
        %p371 = pneg %p256
        %p372 = pneg %p253
        %p373 = pneg %p282
        %p374 = pneg %p279
        %s375 = sand.u32 %s269, 1
        %s376 = scalar_lea.sflag [#allocation3], %s375
        %s377 = sand.u32 %s269, 1
        %s378 = scalar_lea.vmem [#allocation2], %s377
        %p379 = scmp.lt.s32.totalorder %s25, 1
        %s380 = scalar_select %p379, %s25, 1
        %s381 = smul.addr %s380, 4
        %s382 = smul.addr %s381, 4
        %s383 = scalar_lea.vmem %s0, %s382
        %v385 = vld [vmem:[%s383] sm:$0xf]
        %v386 = vld [vmem:[%s383 + $0x4] sm:$0xf]
        %v387 = vld [vmem:[%s383 + $0x8] sm:$0xf]
        %v388 = vld [vmem:[%s383 + $0xc] sm:$0xf]
        %v389 = vld [vmem:[%s1] sm:$0xf]
        %v390 = vld [vmem:[%s1 + $0x4] sm:$0xf]
        %v391 = vld [vmem:[%s1 + $0x8] sm:$0xf]
        %v392 = vld [vmem:[%s1 + $0xc] sm:$0xf]
        %v393 = vld [vmem:[%s1 + $0x10] sm:$0xf]
        %v394 = vld [vmem:[%s1 + $0x14] sm:$0xf]
        %v395 = vld [vmem:[%s1 + $0x18] sm:$0xf]
        %v396 = vld [vmem:[%s1 + $0x1c] sm:$0xf]
        %v397 = vld [vmem:[%s1 + $0x20] sm:$0xf]
        %v398 = vld [vmem:[%s1 + $0x24] sm:$0xf]
        %v399 = vld [vmem:[%s1 + $0x28] sm:$0xf]
        %v400 = vld [vmem:[%s1 + $0x2c] sm:$0xf]
        %v401 = vld [vmem:[%s1 + $0x30] sm:$0xf]
        %v402 = vld [vmem:[%s1 + $0x34] sm:$0xf]
        %v403 = vld [vmem:[%s1 + $0x38] sm:$0xf]
        %v404 = vld [vmem:[%s1 + $0x3c] sm:$0xf]
        %v405 = vld [vmem:[%s1 + $0x40] sm:$0xf]
        %v406 = vld [vmem:[%s1 + $0x44] sm:$0xf]
        %v407 = vld [vmem:[%s1 + $0x48] sm:$0xf]
        %v408 = vld [vmem:[%s1 + $0x4c] sm:$0xf]
        %v409 = vld [vmem:[%s1 + $0x50] sm:$0xf]
        %v410 = vld [vmem:[%s1 + $0x54] sm:$0xf]
        %v411 = vld [vmem:[%s1 + $0x58] sm:$0xf]
        %v412 = vld [vmem:[%s1 + $0x5c] sm:$0xf]
        %v413 = vld [vmem:[%s1 + $0x60] sm:$0xf]
        %v414 = vld [vmem:[%s1 + $0x64] sm:$0xf]
        %v415 = vld [vmem:[%s1 + $0x68] sm:$0xf]
        %v416 = vld [vmem:[%s1 + $0x6c] sm:$0xf]
        %v417 = vld [vmem:[%s1 + $0x70] sm:$0xf]
        %v418 = vld [vmem:[%s1 + $0x74] sm:$0xf]
        %v419 = vld [vmem:[%s1 + $0x78] sm:$0xf]
        %v420 = vld [vmem:[%s1 + $0x7c] sm:$0xf]
        %v421 = vld [vmem:[%s1 + $0x80] sm:$0xf]
        %v422 = vld [vmem:[%s1 + $0x84] sm:$0xf]
        %v423 = vld [vmem:[%s1 + $0x88] sm:$0xf]
        %v424 = vld [vmem:[%s1 + $0x8c] sm:$0xf]
        %v425 = vld [vmem:[%s1 + $0x90] sm:$0xf]
        %v426 = vld [vmem:[%s1 + $0x94] sm:$0xf]
        %v427 = vld [vmem:[%s1 + $0x98] sm:$0xf]
        %v428 = vld [vmem:[%s1 + $0x9c] sm:$0xf]
        %v429 = vld [vmem:[%s1 + $0xa0] sm:$0xf]
        %v430 = vld [vmem:[%s1 + $0xa4] sm:$0xf]
        %v431 = vld [vmem:[%s1 + $0xa8] sm:$0xf]
        %v432 = vld [vmem:[%s1 + $0xac] sm:$0xf]
        %v433 = vld [vmem:[%s1 + $0xb0] sm:$0xf]
        %v434 = vld [vmem:[%s1 + $0xb4] sm:$0xf]
        %v435 = vld [vmem:[%s1 + $0xb8] sm:$0xf]
        %v436 = vld [vmem:[%s1 + $0xbc] sm:$0xf]
        %v437 = vld [vmem:[%s1 + $0xc0] sm:$0xf]
        %v438 = vld [vmem:[%s1 + $0xc4] sm:$0xf]
        %v439 = vld [vmem:[%s1 + $0xc8] sm:$0xf]
        %v440 = vld [vmem:[%s1 + $0xcc] sm:$0xf]
        %v441 = vld [vmem:[%s1 + $0xd0] sm:$0xf]
        %v442 = vld [vmem:[%s1 + $0xd4] sm:$0xf]
        %v443 = vld [vmem:[%s1 + $0xd8] sm:$0xf]
        %v444 = vld [vmem:[%s1 + $0xdc] sm:$0xf]
        %v445 = vld [vmem:[%s1 + $0xe0] sm:$0xf]
        %v446 = vld [vmem:[%s1 + $0xe4] sm:$0xf]
        %v447 = vld [vmem:[%s1 + $0xe8] sm:$0xf]
        %v448 = vld [vmem:[%s1 + $0xec] sm:$0xf]
        %v449 = vld [vmem:[%s1 + $0xf0] sm:$0xf]
        %v450 = vld [vmem:[%s1 + $0xf4] sm:$0xf]
        %v451 = vld [vmem:[%s1 + $0xf8] sm:$0xf]
        %v452 = vld [vmem:[%s1 + $0xfc] sm:$0xf]
        %v453 = vld [vmem:[%s1 + $0x100] sm:$0xf]
        %v454 = vld [vmem:[%s1 + $0x104] sm:$0xf]
        %v455 = vld [vmem:[%s1 + $0x108] sm:$0xf]
        %v456 = vld [vmem:[%s1 + $0x10c] sm:$0xf]
        %v457 = vld [vmem:[%s1 + $0x110] sm:$0xf]
        %v458 = vld [vmem:[%s1 + $0x114] sm:$0xf]
        %v459 = vld [vmem:[%s1 + $0x118] sm:$0xf]
        %v460 = vld [vmem:[%s1 + $0x11c] sm:$0xf]
        %v461 = vld [vmem:[%s1 + $0x120] sm:$0xf]
        %v462 = vld [vmem:[%s1 + $0x124] sm:$0xf]
        %v463 = vld [vmem:[%s1 + $0x128] sm:$0xf]
        %v464 = vld [vmem:[%s1 + $0x12c] sm:$0xf]
        %v465 = vld [vmem:[%s1 + $0x130] sm:$0xf]
        %v466 = vld [vmem:[%s1 + $0x134] sm:$0xf]
        %v467 = vld [vmem:[%s1 + $0x138] sm:$0xf]
        %v468 = vld [vmem:[%s1 + $0x13c] sm:$0xf]
        %v469 = vld [vmem:[%s1 + $0x140] sm:$0xf]
        %v470 = vld [vmem:[%s1 + $0x144] sm:$0xf]
        %v471 = vld [vmem:[%s1 + $0x148] sm:$0xf]
        %v472 = vld [vmem:[%s1 + $0x14c] sm:$0xf]
        %v473 = vld [vmem:[%s1 + $0x150] sm:$0xf]
        %v474 = vld [vmem:[%s1 + $0x154] sm:$0xf]
        %v475 = vld [vmem:[%s1 + $0x158] sm:$0xf]
        %v476 = vld [vmem:[%s1 + $0x15c] sm:$0xf]
        %v477 = vld [vmem:[%s1 + $0x160] sm:$0xf]
        %v478 = vld [vmem:[%s1 + $0x164] sm:$0xf]
        %v479 = vld [vmem:[%s1 + $0x168] sm:$0xf]
        %v480 = vld [vmem:[%s1 + $0x16c] sm:$0xf]
        %v481 = vld [vmem:[%s1 + $0x170] sm:$0xf]
        %v482 = vld [vmem:[%s1 + $0x174] sm:$0xf]
        %v483 = vld [vmem:[%s1 + $0x178] sm:$0xf]
        %v484 = vld [vmem:[%s1 + $0x17c] sm:$0xf]
        %v485 = vld [vmem:[%s1 + $0x180] sm:$0xf]
        %v486 = vld [vmem:[%s1 + $0x184] sm:$0xf]
        %v487 = vld [vmem:[%s1 + $0x188] sm:$0xf]
        %v488 = vld [vmem:[%s1 + $0x18c] sm:$0xf]
        %v489 = vld [vmem:[%s1 + $0x190] sm:$0xf]
        %v490 = vld [vmem:[%s1 + $0x194] sm:$0xf]
        %v491 = vld [vmem:[%s1 + $0x198] sm:$0xf]
        %v492 = vld [vmem:[%s1 + $0x19c] sm:$0xf]
        %v493 = vld [vmem:[%s1 + $0x1a0] sm:$0xf]
        %v494 = vld [vmem:[%s1 + $0x1a4] sm:$0xf]
        %v495 = vld [vmem:[%s1 + $0x1a8] sm:$0xf]
        %v496 = vld [vmem:[%s1 + $0x1ac] sm:$0xf]
        %v497 = vld [vmem:[%s1 + $0x1b0] sm:$0xf]
        %v498 = vld [vmem:[%s1 + $0x1b4] sm:$0xf]
        %v499 = vld [vmem:[%s1 + $0x1b8] sm:$0xf]
        %v500 = vld [vmem:[%s1 + $0x1bc] sm:$0xf]
        %v501 = vld [vmem:[%s1 + $0x1c0] sm:$0xf]
        %v502 = vld [vmem:[%s1 + $0x1c4] sm:$0xf]
        %v503 = vld [vmem:[%s1 + $0x1c8] sm:$0xf]
        %v504 = vld [vmem:[%s1 + $0x1cc] sm:$0xf]
        %v505 = vld [vmem:[%s1 + $0x1d0] sm:$0xf]
        %v506 = vld [vmem:[%s1 + $0x1d4] sm:$0xf]
        %v507 = vld [vmem:[%s1 + $0x1d8] sm:$0xf]
        %v508 = vld [vmem:[%s1 + $0x1dc] sm:$0xf]
        %v509 = vld [vmem:[%s1 + $0x1e0] sm:$0xf]
        %v510 = vld [vmem:[%s1 + $0x1e4] sm:$0xf]
        %v511 = vld [vmem:[%s1 + $0x1e8] sm:$0xf]
        %v512 = vld [vmem:[%s1 + $0x1ec] sm:$0xf]
        %v513 = vld [vmem:[%s1 + $0x1f0] sm:$0xf]
        %v514 = vld [vmem:[%s1 + $0x1f4] sm:$0xf]
        %v515 = vld [vmem:[%s1 + $0x1f8] sm:$0xf]
        %v516 = vld [vmem:[%s1 + $0x1fc] sm:$0xf]
        %v517 = vld [vmem:[%s1 + $0x200] sm:$0xf]
        %v518 = vld [vmem:[%s1 + $0x204] sm:$0xf]
        %v519 = vld [vmem:[%s1 + $0x208] sm:$0xf]
        %v520 = vld [vmem:[%s1 + $0x20c] sm:$0xf]
        %v521 = vld [vmem:[%s1 + $0x210] sm:$0xf]
        %v522 = vld [vmem:[%s1 + $0x214] sm:$0xf]
        %v523 = vld [vmem:[%s1 + $0x218] sm:$0xf]
        %v524 = vld [vmem:[%s1 + $0x21c] sm:$0xf]
        %v525 = vld [vmem:[%s1 + $0x220] sm:$0xf]
        %v526 = vld [vmem:[%s1 + $0x224] sm:$0xf]
        %v527 = vld [vmem:[%s1 + $0x228] sm:$0xf]
        %v528 = vld [vmem:[%s1 + $0x22c] sm:$0xf]
        %v529 = vld [vmem:[%s1 + $0x230] sm:$0xf]
        %v530 = vld [vmem:[%s1 + $0x234] sm:$0xf]
        %v531 = vld [vmem:[%s1 + $0x238] sm:$0xf]
        %v532 = vld [vmem:[%s1 + $0x23c] sm:$0xf]
        %v533 = vld [vmem:[%s1 + $0x240] sm:$0xf]
        %v534 = vld [vmem:[%s1 + $0x244] sm:$0xf]
        %v535 = vld [vmem:[%s1 + $0x248] sm:$0xf]
        %v536 = vld [vmem:[%s1 + $0x24c] sm:$0xf]
        %v537 = vld [vmem:[%s1 + $0x250] sm:$0xf]
        %v538 = vld [vmem:[%s1 + $0x254] sm:$0xf]
        %v539 = vld [vmem:[%s1 + $0x258] sm:$0xf]
        %v540 = vld [vmem:[%s1 + $0x25c] sm:$0xf]
        %v541 = vld [vmem:[%s1 + $0x260] sm:$0xf]
        %v542 = vld [vmem:[%s1 + $0x264] sm:$0xf]
        %v543 = vld [vmem:[%s1 + $0x268] sm:$0xf]
        %v544 = vld [vmem:[%s1 + $0x26c] sm:$0xf]
        %v545 = vld [vmem:[%s1 + $0x270] sm:$0xf]
        %v546 = vld [vmem:[%s1 + $0x274] sm:$0xf]
        %v547 = vld [vmem:[%s1 + $0x278] sm:$0xf]
        %v548 = vld [vmem:[%s1 + $0x27c] sm:$0xf]
        %v549 = vld [vmem:[%s3] sm:$0xf]
        %v550 = vld [vmem:[%s3 + $0x4] sm:$0xf]
        %v551 = vld [vmem:[%s3 + $0x8] sm:$0xf]
        %v552 = vld [vmem:[%s3 + $0xc] sm:$0xf]
        %v553 = vld [vmem:[%s3 + $0x10] sm:$0xf]
        %v554 = vld [vmem:[%s3 + $0x14] sm:$0xf]
        %v555 = vld [vmem:[%s3 + $0x18] sm:$0xf]
        %v556 = vld [vmem:[%s3 + $0x1c] sm:$0xf]
        %v557 = vld [vmem:[%s3 + $0x20] sm:$0xf]
        %v558 = vld [vmem:[%s3 + $0x24] sm:$0xf]
        %v559 = vld [vmem:[%s3 + $0x28] sm:$0xf]
        %v560 = vld [vmem:[%s3 + $0x2c] sm:$0xf]
        %v561 = vld [vmem:[%s3 + $0x30] sm:$0xf]
        %v562 = vld [vmem:[%s3 + $0x34] sm:$0xf]
        %v563 = vld [vmem:[%s3 + $0x38] sm:$0xf]
        %v564 = vld [vmem:[%s3 + $0x3c] sm:$0xf]
        %v565 = vld [vmem:[%s3 + $0x40] sm:$0xf]
        %v566 = vld [vmem:[%s3 + $0x44] sm:$0xf]
        %v567 = vld [vmem:[%s3 + $0x48] sm:$0xf]
        %v568 = vld [vmem:[%s3 + $0x4c] sm:$0xf]
        %v569 = vld [vmem:[%s3 + $0x50] sm:$0xf]
        %v570 = vld [vmem:[%s3 + $0x54] sm:$0xf]
        %v571 = vld [vmem:[%s3 + $0x58] sm:$0xf]
        %v572 = vld [vmem:[%s3 + $0x5c] sm:$0xf]
        %v573 = vld [vmem:[%s3 + $0x60] sm:$0xf]
        %v574 = vld [vmem:[%s3 + $0x64] sm:$0xf]
        %v575 = vld [vmem:[%s3 + $0x68] sm:$0xf]
        %v576 = vld [vmem:[%s3 + $0x6c] sm:$0xf]
        %v577 = vld [vmem:[%s3 + $0x70] sm:$0xf]
        %v578 = vld [vmem:[%s3 + $0x74] sm:$0xf]
        %v579 = vld [vmem:[%s3 + $0x78] sm:$0xf]
        %v580 = vld [vmem:[%s3 + $0x7c] sm:$0xf]
        %v581 = vld [vmem:[%s3 + $0x80] sm:$0xf]
        %v582 = vld [vmem:[%s3 + $0x84] sm:$0xf]
        %v583 = vld [vmem:[%s3 + $0x88] sm:$0xf]
        %v584 = vld [vmem:[%s3 + $0x8c] sm:$0xf]
        %v585 = vld [vmem:[%s3 + $0x90] sm:$0xf]
        %v586 = vld [vmem:[%s3 + $0x94] sm:$0xf]
        %v587 = vld [vmem:[%s3 + $0x98] sm:$0xf]
        %v588 = vld [vmem:[%s3 + $0x9c] sm:$0xf]
        %v589 = vld [vmem:[%s3 + $0xa0] sm:$0xf]
        %v590 = vld [vmem:[%s3 + $0xa4] sm:$0xf]
        %v591 = vld [vmem:[%s3 + $0xa8] sm:$0xf]
        %v592 = vld [vmem:[%s3 + $0xac] sm:$0xf]
        %v593 = vld [vmem:[%s3 + $0xb0] sm:$0xf]
        %v594 = vld [vmem:[%s3 + $0xb4] sm:$0xf]
        %v595 = vld [vmem:[%s3 + $0xb8] sm:$0xf]
        %v596 = vld [vmem:[%s3 + $0xbc] sm:$0xf]
        %v597 = vld [vmem:[%s3 + $0xc0] sm:$0xf]
        %v598 = vld [vmem:[%s3 + $0xc4] sm:$0xf]
        %v599 = vld [vmem:[%s3 + $0xc8] sm:$0xf]
        %v600 = vld [vmem:[%s3 + $0xcc] sm:$0xf]
        %v601 = vld [vmem:[%s3 + $0xd0] sm:$0xf]
        %v602 = vld [vmem:[%s3 + $0xd4] sm:$0xf]
        %v603 = vld [vmem:[%s3 + $0xd8] sm:$0xf]
        %v604 = vld [vmem:[%s3 + $0xdc] sm:$0xf]
        %v605 = vld [vmem:[%s3 + $0xe0] sm:$0xf]
        %v606 = vld [vmem:[%s3 + $0xe4] sm:$0xf]
        %v607 = vld [vmem:[%s3 + $0xe8] sm:$0xf]
        %v608 = vld [vmem:[%s3 + $0xec] sm:$0xf]
        %v609 = vld [vmem:[%s3 + $0xf0] sm:$0xf]
        %v610 = vld [vmem:[%s3 + $0xf4] sm:$0xf]
        %v611 = vld [vmem:[%s3 + $0xf8] sm:$0xf]
        %v612 = vld [vmem:[%s3 + $0xfc] sm:$0xf]
        %v613 = vld [vmem:[%s3 + $0x100] sm:$0xf]
        %v614 = vld [vmem:[%s3 + $0x104] sm:$0xf]
        %v615 = vld [vmem:[%s3 + $0x108] sm:$0xf]
        %v616 = vld [vmem:[%s3 + $0x10c] sm:$0xf]
        %v617 = vld [vmem:[%s3 + $0x110] sm:$0xf]
        %v618 = vld [vmem:[%s3 + $0x114] sm:$0xf]
        %v619 = vld [vmem:[%s3 + $0x118] sm:$0xf]
        %v620 = vld [vmem:[%s3 + $0x11c] sm:$0xf]
        %v621 = vld [vmem:[%s3 + $0x120] sm:$0xf]
        %v622 = vld [vmem:[%s3 + $0x124] sm:$0xf]
        %v623 = vld [vmem:[%s3 + $0x128] sm:$0xf]
        %v624 = vld [vmem:[%s3 + $0x12c] sm:$0xf]
        %v625 = vld [vmem:[%s3 + $0x130] sm:$0xf]
        %v626 = vld [vmem:[%s3 + $0x134] sm:$0xf]
        %v627 = vld [vmem:[%s3 + $0x138] sm:$0xf]
        %v628 = vld [vmem:[%s3 + $0x13c] sm:$0xf]
        %v629 = vld [vmem:[%s3 + $0x140] sm:$0xf]
        %v630 = vld [vmem:[%s3 + $0x144] sm:$0xf]
        %v631 = vld [vmem:[%s3 + $0x148] sm:$0xf]
        %v632 = vld [vmem:[%s3 + $0x14c] sm:$0xf]
        %v633 = vld [vmem:[%s3 + $0x150] sm:$0xf]
        %v634 = vld [vmem:[%s3 + $0x154] sm:$0xf]
        %v635 = vld [vmem:[%s3 + $0x158] sm:$0xf]
        %v636 = vld [vmem:[%s3 + $0x15c] sm:$0xf]
        %v637 = vld [vmem:[%s3 + $0x160] sm:$0xf]
        %v638 = vld [vmem:[%s3 + $0x164] sm:$0xf]
        %v639 = vld [vmem:[%s3 + $0x168] sm:$0xf]
        %v640 = vld [vmem:[%s3 + $0x16c] sm:$0xf]
        %v641 = vld [vmem:[%s3 + $0x170] sm:$0xf]
        %v642 = vld [vmem:[%s3 + $0x174] sm:$0xf]
        %v643 = vld [vmem:[%s3 + $0x178] sm:$0xf]
        %v644 = vld [vmem:[%s3 + $0x17c] sm:$0xf]
        %v645 = vld [vmem:[%s3 + $0x180] sm:$0xf]
        %v646 = vld [vmem:[%s3 + $0x184] sm:$0xf]
        %v647 = vld [vmem:[%s3 + $0x188] sm:$0xf]
        %v648 = vld [vmem:[%s3 + $0x18c] sm:$0xf]
        %v649 = vld [vmem:[%s3 + $0x190] sm:$0xf]
        %v650 = vld [vmem:[%s3 + $0x194] sm:$0xf]
        %v651 = vld [vmem:[%s3 + $0x198] sm:$0xf]
        %v652 = vld [vmem:[%s3 + $0x19c] sm:$0xf]
        %v653 = vld [vmem:[%s3 + $0x1a0] sm:$0xf]
        %v654 = vld [vmem:[%s3 + $0x1a4] sm:$0xf]
        %v655 = vld [vmem:[%s3 + $0x1a8] sm:$0xf]
        %v656 = vld [vmem:[%s3 + $0x1ac] sm:$0xf]
        %v657 = vld [vmem:[%s3 + $0x1b0] sm:$0xf]
        %v658 = vld [vmem:[%s3 + $0x1b4] sm:$0xf]
        %v659 = vld [vmem:[%s3 + $0x1b8] sm:$0xf]
        %v660 = vld [vmem:[%s3 + $0x1bc] sm:$0xf]
        %v661 = vld [vmem:[%s3 + $0x1c0] sm:$0xf]
        %v662 = vld [vmem:[%s3 + $0x1c4] sm:$0xf]
        %v663 = vld [vmem:[%s3 + $0x1c8] sm:$0xf]
        %v664 = vld [vmem:[%s3 + $0x1cc] sm:$0xf]
        %v665 = vld [vmem:[%s3 + $0x1d0] sm:$0xf]
        %v666 = vld [vmem:[%s3 + $0x1d4] sm:$0xf]
        %v667 = vld [vmem:[%s3 + $0x1d8] sm:$0xf]
        %v668 = vld [vmem:[%s3 + $0x1dc] sm:$0xf]
        %v669 = vld [vmem:[%s3 + $0x1e0] sm:$0xf]
        %v670 = vld [vmem:[%s3 + $0x1e4] sm:$0xf]
        %v671 = vld [vmem:[%s3 + $0x1e8] sm:$0xf]
        %v672 = vld [vmem:[%s3 + $0x1ec] sm:$0xf]
        %v673 = vld [vmem:[%s3 + $0x1f0] sm:$0xf]
        %v674 = vld [vmem:[%s3 + $0x1f4] sm:$0xf]
        %v675 = vld [vmem:[%s3 + $0x1f8] sm:$0xf]
        %v676 = vld [vmem:[%s3 + $0x1fc] sm:$0xf]
        %v677 = vld [vmem:[%s3 + $0x200] sm:$0xf]
        %v678 = vld [vmem:[%s3 + $0x204] sm:$0xf]
        %v679 = vld [vmem:[%s3 + $0x208] sm:$0xf]
        %v680 = vld [vmem:[%s3 + $0x20c] sm:$0xf]
        %v681 = vld [vmem:[%s3 + $0x210] sm:$0xf]
        %v682 = vld [vmem:[%s3 + $0x214] sm:$0xf]
        %v683 = vld [vmem:[%s3 + $0x218] sm:$0xf]
        %v684 = vld [vmem:[%s3 + $0x21c] sm:$0xf]
        %v685 = vld [vmem:[%s3 + $0x220] sm:$0xf]
        %v686 = vld [vmem:[%s3 + $0x224] sm:$0xf]
        %v687 = vld [vmem:[%s3 + $0x228] sm:$0xf]
        %v688 = vld [vmem:[%s3 + $0x22c] sm:$0xf]
        %v689 = vld [vmem:[%s3 + $0x230] sm:$0xf]
        %v690 = vld [vmem:[%s3 + $0x234] sm:$0xf]
        %v691 = vld [vmem:[%s3 + $0x238] sm:$0xf]
        %v692 = vld [vmem:[%s3 + $0x23c] sm:$0xf]
        %v693 = vld [vmem:[%s3 + $0x240] sm:$0xf]
        %v694 = vld [vmem:[%s3 + $0x244] sm:$0xf]
        %v695 = vld [vmem:[%s3 + $0x248] sm:$0xf]
        %v696 = vld [vmem:[%s3 + $0x24c] sm:$0xf]
        %v697 = vld [vmem:[%s3 + $0x250] sm:$0xf]
        %v698 = vld [vmem:[%s3 + $0x254] sm:$0xf]
        %v699 = vld [vmem:[%s3 + $0x258] sm:$0xf]
        %v700 = vld [vmem:[%s3 + $0x25c] sm:$0xf]
        %v701 = vld [vmem:[%s3 + $0x260] sm:$0xf]
        %v702 = vld [vmem:[%s3 + $0x264] sm:$0xf]
        %v703 = vld [vmem:[%s3 + $0x268] sm:$0xf]
        %v704 = vld [vmem:[%s3 + $0x26c] sm:$0xf]
        %v705 = vld [vmem:[%s3 + $0x270] sm:$0xf]
        %v706 = vld [vmem:[%s3 + $0x274] sm:$0xf]
        %v707 = vld [vmem:[%s3 + $0x278] sm:$0xf]
        %v708 = vld [vmem:[%s3 + $0x27c] sm:$0xf]
        %v709 = vld [vmem:[%s5] sm:$0xf]
        %v710 = vld [vmem:[%s5 + $0x4] sm:$0xf]
        %v711 = vld [vmem:[%s5 + $0x8] sm:$0xf]
        %v712 = vld [vmem:[%s5 + $0xc] sm:$0xf]
        %v713 = vld [vmem:[%s5 + $0x10] sm:$0xf]
        %v714 = vld [vmem:[%s5 + $0x14] sm:$0xf]
        %v715 = vld [vmem:[%s5 + $0x18] sm:$0xf]
        %v716 = vld [vmem:[%s5 + $0x1c] sm:$0xf]
        %v717 = vld [vmem:[%s5 + $0x20] sm:$0xf]
        %v718 = vld [vmem:[%s5 + $0x24] sm:$0xf]
        %v719 = vld [vmem:[%s5 + $0x28] sm:$0xf]
        %v720 = vld [vmem:[%s5 + $0x2c] sm:$0xf]
        %v721 = vld [vmem:[%s5 + $0x30] sm:$0xf]
        %v722 = vld [vmem:[%s5 + $0x34] sm:$0xf]
        %v723 = vld [vmem:[%s5 + $0x38] sm:$0xf]
        %v724 = vld [vmem:[%s5 + $0x3c] sm:$0xf]
        %v725 = vld [vmem:[%s5 + $0x40] sm:$0xf]
        %v726 = vld [vmem:[%s5 + $0x44] sm:$0xf]
        %v727 = vld [vmem:[%s5 + $0x48] sm:$0xf]
        %v728 = vld [vmem:[%s5 + $0x4c] sm:$0xf]
        %v729 = vld [vmem:[%s5 + $0x50] sm:$0xf]
        %v730 = vld [vmem:[%s5 + $0x54] sm:$0xf]
        %v731 = vld [vmem:[%s5 + $0x58] sm:$0xf]
        %v732 = vld [vmem:[%s5 + $0x5c] sm:$0xf]
        %v733 = vld [vmem:[%s5 + $0x60] sm:$0xf]
        %v734 = vld [vmem:[%s5 + $0x64] sm:$0xf]
        %v735 = vld [vmem:[%s5 + $0x68] sm:$0xf]
        %v736 = vld [vmem:[%s5 + $0x6c] sm:$0xf]
        %v737 = vld [vmem:[%s5 + $0x70] sm:$0xf]
        %v738 = vld [vmem:[%s5 + $0x74] sm:$0xf]
        %v739 = vld [vmem:[%s5 + $0x78] sm:$0xf]
        %v740 = vld [vmem:[%s5 + $0x7c] sm:$0xf]
        %v741 = vld [vmem:[%s5 + $0x80] sm:$0xf]
        %v742 = vld [vmem:[%s5 + $0x84] sm:$0xf]
        %v743 = vld [vmem:[%s5 + $0x88] sm:$0xf]
        %v744 = vld [vmem:[%s5 + $0x8c] sm:$0xf]
        %v745 = vld [vmem:[%s5 + $0x90] sm:$0xf]
        %v746 = vld [vmem:[%s5 + $0x94] sm:$0xf]
        %v747 = vld [vmem:[%s5 + $0x98] sm:$0xf]
        %v748 = vld [vmem:[%s5 + $0x9c] sm:$0xf]
        %v749 = vld [vmem:[%s5 + $0xa0] sm:$0xf]
        %v750 = vld [vmem:[%s5 + $0xa4] sm:$0xf]
        %v751 = vld [vmem:[%s5 + $0xa8] sm:$0xf]
        %v752 = vld [vmem:[%s5 + $0xac] sm:$0xf]
        %v753 = vld [vmem:[%s5 + $0xb0] sm:$0xf]
        %v754 = vld [vmem:[%s5 + $0xb4] sm:$0xf]
        %v755 = vld [vmem:[%s5 + $0xb8] sm:$0xf]
        %v756 = vld [vmem:[%s5 + $0xbc] sm:$0xf]
        %v757 = vld [vmem:[%s5 + $0xc0] sm:$0xf]
        %v758 = vld [vmem:[%s5 + $0xc4] sm:$0xf]
        %v759 = vld [vmem:[%s5 + $0xc8] sm:$0xf]
        %v760 = vld [vmem:[%s5 + $0xcc] sm:$0xf]
        %v761 = vld [vmem:[%s5 + $0xd0] sm:$0xf]
        %v762 = vld [vmem:[%s5 + $0xd4] sm:$0xf]
        %v763 = vld [vmem:[%s5 + $0xd8] sm:$0xf]
        %v764 = vld [vmem:[%s5 + $0xdc] sm:$0xf]
        %v765 = vld [vmem:[%s5 + $0xe0] sm:$0xf]
        %v766 = vld [vmem:[%s5 + $0xe4] sm:$0xf]
        %v767 = vld [vmem:[%s5 + $0xe8] sm:$0xf]
        %v768 = vld [vmem:[%s5 + $0xec] sm:$0xf]
        %v769 = vld [vmem:[%s5 + $0xf0] sm:$0xf]
        %v770 = vld [vmem:[%s5 + $0xf4] sm:$0xf]
        %v771 = vld [vmem:[%s5 + $0xf8] sm:$0xf]
        %v772 = vld [vmem:[%s5 + $0xfc] sm:$0xf]
        %v773 = vld [vmem:[%s5 + $0x100] sm:$0xf]
        %v774 = vld [vmem:[%s5 + $0x104] sm:$0xf]
        %v775 = vld [vmem:[%s5 + $0x108] sm:$0xf]
        %v776 = vld [vmem:[%s5 + $0x10c] sm:$0xf]
        %v777 = vld [vmem:[%s5 + $0x110] sm:$0xf]
        %v778 = vld [vmem:[%s5 + $0x114] sm:$0xf]
        %v779 = vld [vmem:[%s5 + $0x118] sm:$0xf]
        %v780 = vld [vmem:[%s5 + $0x11c] sm:$0xf]
        %v781 = vld [vmem:[%s5 + $0x120] sm:$0xf]
        %v782 = vld [vmem:[%s5 + $0x124] sm:$0xf]
        %v783 = vld [vmem:[%s5 + $0x128] sm:$0xf]
        %v784 = vld [vmem:[%s5 + $0x12c] sm:$0xf]
        %v785 = vld [vmem:[%s5 + $0x130] sm:$0xf]
        %v786 = vld [vmem:[%s5 + $0x134] sm:$0xf]
        %v787 = vld [vmem:[%s5 + $0x138] sm:$0xf]
        %v788 = vld [vmem:[%s5 + $0x13c] sm:$0xf]
        %v805 = vunpack.c.l.b16 %v405
        %v806 = vunpack.c.l.b16 %v406
        %v807 = vunpack.c.l.b16 %v407
        %v808 = vunpack.c.l.b16 %v408
        %v809 = vunpack.c.l.b16 %v409
        %v810 = vunpack.c.l.b16 %v410
        %v811 = vunpack.c.l.b16 %v411
        %v812 = vunpack.c.l.b16 %v412
        %v813 = vunpack.c.l.b16 %v413
        %v814 = vunpack.c.l.b16 %v414
        %v815 = vunpack.c.l.b16 %v415
        %v816 = vunpack.c.l.b16 %v416
        %v817 = vunpack.c.l.b16 %v417
        %v818 = vunpack.c.l.b16 %v418
        %v819 = vunpack.c.l.b16 %v419
        %v820 = vunpack.c.l.b16 %v420
        %v821 = vpack.c.b16 %v806, %v805
        %v822 = vpack.c.b16 %v808, %v807
        %v823 = vpack.c.b16 %v810, %v809
        %v824 = vpack.c.b16 %v812, %v811
        %v825 = vpack.c.b16 %v814, %v813
        %v826 = vpack.c.b16 %v816, %v815
        %v827 = vpack.c.b16 %v818, %v817
        %v828 = vpack.c.b16 %v820, %v819
        %837 = vmatprep.subr.bf16.mxu0 0
        %838 = vmatpush1.bf16.msra.mxu0 %v828
        %839 = vmatprep.subr.bf16.mxu0 0
        %840 = vmatpush1.bf16.msra.mxu0 %v827
        %841 = vmatprep.subr.bf16.mxu0 0
        %842 = vmatpush1.bf16.msra.mxu0 %v826
        %843 = vmatprep.subr.bf16.mxu0 0
        %844 = vmatpush1.bf16.msra.mxu0 %v825
        %845 = vmatprep.subr.bf16.mxu0 0
        %846 = vmatpush1.bf16.msra.mxu0 %v824
        %847 = vmatprep.subr.bf16.mxu0 0
        %848 = vmatpush1.bf16.msra.mxu0 %v823
        %849 = vmatprep.subr.bf16.mxu0 0
        %850 = vmatpush1.bf16.msra.mxu0 %v822
        %851 = vmatprep.subr.bf16.mxu0 0
        %852 = vmatpush1.bf16.msra.mxu0 %v821
        %853 = vmatprep.subr.bf16.mxu0 0
        %854 = vmatpush2.bf16.msra.mxu0 0
        %855 = vmatprep.subr.bf16.mxu0 0
        %856 = vmatpush2.bf16.msra.mxu0 0
        %857 = vmatprep.subr.bf16.mxu0 0
        %858 = vmatpush2.bf16.msra.mxu0 0
        %859 = vmatprep.subr.bf16.mxu0 0
        %860 = vmatpush2.bf16.msra.mxu0 0
        %861 = vmatprep.subr.bf16.mxu0 0
        %862 = vmatpush2.bf16.msra.mxu0 0
        %863 = vmatprep.subr.bf16.mxu0 0
        %864 = vmatpush2.bf16.msra.mxu0 0
        %865 = vmatprep.subr.bf16.mxu0 0
        %866 = vmatpush2.bf16.msra.mxu0 0
        %867 = vmatprep.subr.bf16.mxu0 0
        %868 = vmatpush2.bf16.msra.mxu0 0
        %869 = vmatprep.mubr.bf16.mxu0 0
        %870 = vmatmul.mubr.bf16.gmra.mxu0 %v386
        %v871 = vpop.f32.mrf.mxu0
        %v872 = vadd.f32 0.0, %v871
        %v873 = vpop.f32.mrf.mxu0
        %v874 = vpop.f32.mrf.mxu0
        %v875 = vpop.f32.mrf.mxu0
        %876 = vdwg.mxu0
        %v893 = vunpack.c.l.b16 %v389
        %v894 = vunpack.c.l.b16 %v390
        %v895 = vunpack.c.l.b16 %v391
        %v896 = vunpack.c.l.b16 %v392
        %v897 = vunpack.c.l.b16 %v393
        %v898 = vunpack.c.l.b16 %v394
        %v899 = vunpack.c.l.b16 %v395
        %v900 = vunpack.c.l.b16 %v396
        %v901 = vunpack.c.l.b16 %v397
        %v902 = vunpack.c.l.b16 %v398
        %v903 = vunpack.c.l.b16 %v399
        %v904 = vunpack.c.l.b16 %v400
        %v905 = vunpack.c.l.b16 %v401
        %v906 = vunpack.c.l.b16 %v402
        %v907 = vunpack.c.l.b16 %v403
        %v908 = vunpack.c.l.b16 %v404
        %v909 = vpack.c.b16 %v894, %v893
        %v910 = vpack.c.b16 %v896, %v895
        %v911 = vpack.c.b16 %v898, %v897
        %v912 = vpack.c.b16 %v900, %v899
        %v913 = vpack.c.b16 %v902, %v901
        %v914 = vpack.c.b16 %v904, %v903
        %v915 = vpack.c.b16 %v906, %v905
        %v916 = vpack.c.b16 %v908, %v907
        %925 = vmatprep.subr.bf16.mxu0 0
        %926 = vmatpush1.bf16.msra.mxu0 %v916
        %927 = vmatprep.subr.bf16.mxu0 0
        %928 = vmatpush1.bf16.msra.mxu0 %v915
        %929 = vmatprep.subr.bf16.mxu0 0
        %930 = vmatpush1.bf16.msra.mxu0 %v914
        %931 = vmatprep.subr.bf16.mxu0 0
        %932 = vmatpush1.bf16.msra.mxu0 %v913
        %933 = vmatprep.subr.bf16.mxu0 0
        %934 = vmatpush1.bf16.msra.mxu0 %v912
        %935 = vmatprep.subr.bf16.mxu0 0
        %936 = vmatpush1.bf16.msra.mxu0 %v911
        %937 = vmatprep.subr.bf16.mxu0 0
        %938 = vmatpush1.bf16.msra.mxu0 %v910
        %939 = vmatprep.subr.bf16.mxu0 0
        %940 = vmatpush1.bf16.msra.mxu0 %v909
        %941 = vmatprep.subr.bf16.mxu0 0
        %942 = vmatpush2.bf16.msra.mxu0 0
        %943 = vmatprep.subr.bf16.mxu0 0
        %944 = vmatpush2.bf16.msra.mxu0 0
        %945 = vmatprep.subr.bf16.mxu0 0
        %946 = vmatpush2.bf16.msra.mxu0 0
        %947 = vmatprep.subr.bf16.mxu0 0
        %948 = vmatpush2.bf16.msra.mxu0 0
        %949 = vmatprep.subr.bf16.mxu0 0
        %950 = vmatpush2.bf16.msra.mxu0 0
        %951 = vmatprep.subr.bf16.mxu0 0
        %952 = vmatpush2.bf16.msra.mxu0 0
        %953 = vmatprep.subr.bf16.mxu0 0
        %954 = vmatpush2.bf16.msra.mxu0 0
        %955 = vmatprep.subr.bf16.mxu0 0
        %956 = vmatpush2.bf16.msra.mxu0 0
        %957 = vmatprep.mubr.bf16.mxu0 0
        %958 = vmatmul.mubr.bf16.gmra.mxu0 %v385
        %v959 = vpop.f32.mrf.mxu0
        %v960 = vadd.f32 %v872, %v959
        %v961 = vpop.f32.mrf.mxu0
        %v962 = vpop.f32.mrf.mxu0
        %v963 = vpop.f32.mrf.mxu0
        %964 = vdwg.mxu0
        %v981 = vunpack.c.l.b16 %v421
        %v982 = vunpack.c.l.b16 %v422
        %v983 = vunpack.c.l.b16 %v423
        %v984 = vunpack.c.l.b16 %v424
        %v985 = vunpack.c.l.b16 %v425
        %v986 = vunpack.c.l.b16 %v426
        %v987 = vunpack.c.l.b16 %v427
        %v988 = vunpack.c.l.b16 %v428
        %v989 = vunpack.c.l.b16 %v429
        %v990 = vunpack.c.l.b16 %v430
        %v991 = vunpack.c.l.b16 %v431
        %v992 = vunpack.c.l.b16 %v432
        %v993 = vunpack.c.l.b16 %v433
        %v994 = vunpack.c.l.b16 %v434
        %v995 = vunpack.c.l.b16 %v435
        %v996 = vunpack.c.l.b16 %v436
        %v997 = vpack.c.b16 %v982, %v981
        %v998 = vpack.c.b16 %v984, %v983
        %v999 = vpack.c.b16 %v986, %v985
        %v1000 = vpack.c.b16 %v988, %v987
        %v1001 = vpack.c.b16 %v990, %v989
        %v1002 = vpack.c.b16 %v992, %v991
        %v1003 = vpack.c.b16 %v994, %v993
        %v1004 = vpack.c.b16 %v996, %v995
        %1013 = vmatprep.subr.bf16.mxu0 0
        %1014 = vmatpush1.bf16.msra.mxu0 %v1004
        %1015 = vmatprep.subr.bf16.mxu0 0
        %1016 = vmatpush1.bf16.msra.mxu0 %v1003
        %1017 = vmatprep.subr.bf16.mxu0 0
        %1018 = vmatpush1.bf16.msra.mxu0 %v1002
        %1019 = vmatprep.subr.bf16.mxu0 0
        %1020 = vmatpush1.bf16.msra.mxu0 %v1001
        %1021 = vmatprep.subr.bf16.mxu0 0
        %1022 = vmatpush1.bf16.msra.mxu0 %v1000
        %1023 = vmatprep.subr.bf16.mxu0 0
        %1024 = vmatpush1.bf16.msra.mxu0 %v999
        %1025 = vmatprep.subr.bf16.mxu0 0
        %1026 = vmatpush1.bf16.msra.mxu0 %v998
        %1027 = vmatprep.subr.bf16.mxu0 0
        %1028 = vmatpush1.bf16.msra.mxu0 %v997
        %1029 = vmatprep.subr.bf16.mxu0 0
        %1030 = vmatpush2.bf16.msra.mxu0 0
        %1031 = vmatprep.subr.bf16.mxu0 0
        %1032 = vmatpush2.bf16.msra.mxu0 0
        %1033 = vmatprep.subr.bf16.mxu0 0
        %1034 = vmatpush2.bf16.msra.mxu0 0
        %1035 = vmatprep.subr.bf16.mxu0 0
        %1036 = vmatpush2.bf16.msra.mxu0 0
        %1037 = vmatprep.subr.bf16.mxu0 0
        %1038 = vmatpush2.bf16.msra.mxu0 0
        %1039 = vmatprep.subr.bf16.mxu0 0
        %1040 = vmatpush2.bf16.msra.mxu0 0
        %1041 = vmatprep.subr.bf16.mxu0 0
        %1042 = vmatpush2.bf16.msra.mxu0 0
        %1043 = vmatprep.subr.bf16.mxu0 0
        %1044 = vmatpush2.bf16.msra.mxu0 0
        %1045 = vmatprep.mubr.bf16.mxu0 0
        %1046 = vmatmul.mubr.bf16.gmra.mxu0 %v387
        %v1047 = vpop.f32.mrf.mxu0
        %v1048 = vadd.f32 0.0, %v1047
        %v1049 = vpop.f32.mrf.mxu0
        %v1050 = vpop.f32.mrf.mxu0
        %v1051 = vpop.f32.mrf.mxu0
        %1052 = vdwg.mxu0
        %v1053 = vadd.f32 %v960, %v1048
        %v1070 = vunpack.c.l.b16 %v437
        %v1071 = vunpack.c.l.b16 %v438
        %v1072 = vunpack.c.l.b16 %v439
        %v1073 = vunpack.c.l.b16 %v440
        %v1074 = vunpack.c.l.b16 %v441
        %v1075 = vunpack.c.l.b16 %v442
        %v1076 = vunpack.c.l.b16 %v443
        %v1077 = vunpack.c.l.b16 %v444
        %v1078 = vunpack.c.l.b16 %v445
        %v1079 = vunpack.c.l.b16 %v446
        %v1080 = vunpack.c.l.b16 %v447
        %v1081 = vunpack.c.l.b16 %v448
        %v1082 = vunpack.c.l.b16 %v449
        %v1083 = vunpack.c.l.b16 %v450
        %v1084 = vunpack.c.l.b16 %v451
        %v1085 = vunpack.c.l.b16 %v452
        %v1086 = vpack.c.b16 %v1071, %v1070
        %v1087 = vpack.c.b16 %v1073, %v1072
        %v1088 = vpack.c.b16 %v1075, %v1074
        %v1089 = vpack.c.b16 %v1077, %v1076
        %v1090 = vpack.c.b16 %v1079, %v1078
        %v1091 = vpack.c.b16 %v1081, %v1080
        %v1092 = vpack.c.b16 %v1083, %v1082
        %v1093 = vpack.c.b16 %v1085, %v1084
        %1102 = vmatprep.subr.bf16.mxu0 0
        %1103 = vmatpush1.bf16.msra.mxu0 %v1093
        %1104 = vmatprep.subr.bf16.mxu0 0
        %1105 = vmatpush1.bf16.msra.mxu0 %v1092
        %1106 = vmatprep.subr.bf16.mxu0 0
        %1107 = vmatpush1.bf16.msra.mxu0 %v1091
        %1108 = vmatprep.subr.bf16.mxu0 0
        %1109 = vmatpush1.bf16.msra.mxu0 %v1090
        %1110 = vmatprep.subr.bf16.mxu0 0
        %1111 = vmatpush1.bf16.msra.mxu0 %v1089
        %1112 = vmatprep.subr.bf16.mxu0 0
        %1113 = vmatpush1.bf16.msra.mxu0 %v1088
        %1114 = vmatprep.subr.bf16.mxu0 0
        %1115 = vmatpush1.bf16.msra.mxu0 %v1087
        %1116 = vmatprep.subr.bf16.mxu0 0
        %1117 = vmatpush1.bf16.msra.mxu0 %v1086
        %1118 = vmatprep.subr.bf16.mxu0 0
        %1119 = vmatpush2.bf16.msra.mxu0 0
        %1120 = vmatprep.subr.bf16.mxu0 0
        %1121 = vmatpush2.bf16.msra.mxu0 0
        %1122 = vmatprep.subr.bf16.mxu0 0
        %1123 = vmatpush2.bf16.msra.mxu0 0
        %1124 = vmatprep.subr.bf16.mxu0 0
        %1125 = vmatpush2.bf16.msra.mxu0 0
        %1126 = vmatprep.subr.bf16.mxu0 0
        %1127 = vmatpush2.bf16.msra.mxu0 0
        %1128 = vmatprep.subr.bf16.mxu0 0
        %1129 = vmatpush2.bf16.msra.mxu0 0
        %1130 = vmatprep.subr.bf16.mxu0 0
        %1131 = vmatpush2.bf16.msra.mxu0 0
        %1132 = vmatprep.subr.bf16.mxu0 0
        %1133 = vmatpush2.bf16.msra.mxu0 0
        %1134 = vmatprep.mubr.bf16.mxu0 0
        %1135 = vmatmul.mubr.bf16.gmra.mxu0 %v388
        %v1136 = vpop.f32.mrf.mxu0
        %v1137 = vadd.f32 0.0, %v1136
        %v1138 = vpop.f32.mrf.mxu0
        %v1139 = vpop.f32.mrf.mxu0
        %v1140 = vpop.f32.mrf.mxu0
        %1141 = vdwg.mxu0
        %v1142 = vadd.f32 %v1053, %v1137
        %v1144 = vunpack.c.l.b16 %v385
        %v1145 = vpack.c.b16 %v1144, %v1144
        %v1147 = vshrl.u32 %v1145, 16
        %v1149 = vshll.u32 %v1145, 16
        %v1151 = vrot.slane %v1149, 1
        %v1152 = vor.u32 %v1147, %v1151
        %v1170 = vunpack.c.l.b16 %v453
        %v1171 = vunpack.c.l.b16 %v454
        %v1172 = vunpack.c.l.b16 %v455
        %v1173 = vunpack.c.l.b16 %v456
        %v1174 = vunpack.c.l.b16 %v457
        %v1175 = vunpack.c.l.b16 %v458
        %v1176 = vunpack.c.l.b16 %v459
        %v1177 = vunpack.c.l.b16 %v460
        %v1178 = vunpack.c.l.b16 %v461
        %v1179 = vunpack.c.l.b16 %v462
        %v1180 = vunpack.c.l.b16 %v463
        %v1181 = vunpack.c.l.b16 %v464
        %v1182 = vunpack.c.l.b16 %v465
        %v1183 = vunpack.c.l.b16 %v466
        %v1184 = vunpack.c.l.b16 %v467
        %v1185 = vunpack.c.l.b16 %v468
        %v1186 = vpack.c.b16 %v1171, %v1170
        %v1187 = vpack.c.b16 %v1173, %v1172
        %v1188 = vpack.c.b16 %v1175, %v1174
        %v1189 = vpack.c.b16 %v1177, %v1176
        %v1190 = vpack.c.b16 %v1179, %v1178
        %v1191 = vpack.c.b16 %v1181, %v1180
        %v1192 = vpack.c.b16 %v1183, %v1182
        %v1193 = vpack.c.b16 %v1185, %v1184
        %1202 = vmatprep.subr.bf16.mxu0 0
        %1203 = vmatpush1.bf16.msra.mxu0 %v1193
        %1204 = vmatprep.subr.bf16.mxu0 0
        %1205 = vmatpush1.bf16.msra.mxu0 %v1192
        %1206 = vmatprep.subr.bf16.mxu0 0
        %1207 = vmatpush1.bf16.msra.mxu0 %v1191
        %1208 = vmatprep.subr.bf16.mxu0 0
        %1209 = vmatpush1.bf16.msra.mxu0 %v1190
        %1210 = vmatprep.subr.bf16.mxu0 0
        %1211 = vmatpush1.bf16.msra.mxu0 %v1189
        %1212 = vmatprep.subr.bf16.mxu0 0
        %1213 = vmatpush1.bf16.msra.mxu0 %v1188
        %1214 = vmatprep.subr.bf16.mxu0 0
        %1215 = vmatpush1.bf16.msra.mxu0 %v1187
        %1216 = vmatprep.subr.bf16.mxu0 0
        %1217 = vmatpush1.bf16.msra.mxu0 %v1186
        %1218 = vmatprep.subr.bf16.mxu0 0
        %1219 = vmatpush2.bf16.msra.mxu0 0
        %1220 = vmatprep.subr.bf16.mxu0 0
        %1221 = vmatpush2.bf16.msra.mxu0 0
        %1222 = vmatprep.subr.bf16.mxu0 0
        %1223 = vmatpush2.bf16.msra.mxu0 0
        %1224 = vmatprep.subr.bf16.mxu0 0
        %1225 = vmatpush2.bf16.msra.mxu0 0
        %1226 = vmatprep.subr.bf16.mxu0 0
        %1227 = vmatpush2.bf16.msra.mxu0 0
        %1228 = vmatprep.subr.bf16.mxu0 0
        %1229 = vmatpush2.bf16.msra.mxu0 0
        %1230 = vmatprep.subr.bf16.mxu0 0
        %1231 = vmatpush2.bf16.msra.mxu0 0
        %1232 = vmatprep.subr.bf16.mxu0 0
        %1233 = vmatpush2.bf16.msra.mxu0 0
        %1234 = vmatprep.mubr.bf16.mxu0 0
        %1235 = vmatmul.mubr.bf16.gmra.mxu0 %v1152
        %v1236 = vpop.f32.mrf.mxu0
        %v1237 = vadd.f32 0.0, %v1236
        %v1238 = vpop.f32.mrf.mxu0
        %v1239 = vpop.f32.mrf.mxu0
        %v1240 = vpop.f32.mrf.mxu0
        %1241 = vdwg.mxu0
        %v1242 = vadd.f32 %v1142, %v1237
        %v1259 = vunpack.c.l.b16 %v485
        %v1260 = vunpack.c.l.b16 %v486
        %v1261 = vunpack.c.l.b16 %v487
        %v1262 = vunpack.c.l.b16 %v488
        %v1263 = vunpack.c.l.b16 %v489
        %v1264 = vunpack.c.l.b16 %v490
        %v1265 = vunpack.c.l.b16 %v491
        %v1266 = vunpack.c.l.b16 %v492
        %v1267 = vunpack.c.l.b16 %v493
        %v1268 = vunpack.c.l.b16 %v494
        %v1269 = vunpack.c.l.b16 %v495
        %v1270 = vunpack.c.l.b16 %v496
        %v1271 = vunpack.c.l.b16 %v497
        %v1272 = vunpack.c.l.b16 %v498
        %v1273 = vunpack.c.l.b16 %v499
        %v1274 = vunpack.c.l.b16 %v500
        %v1275 = vpack.c.b16 %v1260, %v1259
        %v1276 = vpack.c.b16 %v1262, %v1261
        %v1277 = vpack.c.b16 %v1264, %v1263
        %v1278 = vpack.c.b16 %v1266, %v1265
        %v1279 = vpack.c.b16 %v1268, %v1267
        %v1280 = vpack.c.b16 %v1270, %v1269
        %v1281 = vpack.c.b16 %v1272, %v1271
        %v1282 = vpack.c.b16 %v1274, %v1273
        %1291 = vmatprep.subr.bf16.mxu0 0
        %1292 = vmatpush1.bf16.msra.mxu0 %v1282
        %1293 = vmatprep.subr.bf16.mxu0 0
        %1294 = vmatpush1.bf16.msra.mxu0 %v1281
        %1295 = vmatprep.subr.bf16.mxu0 0
        %1296 = vmatpush1.bf16.msra.mxu0 %v1280
        %1297 = vmatprep.subr.bf16.mxu0 0
        %1298 = vmatpush1.bf16.msra.mxu0 %v1279
        %1299 = vmatprep.subr.bf16.mxu0 0
        %1300 = vmatpush1.bf16.msra.mxu0 %v1278
        %1301 = vmatprep.subr.bf16.mxu0 0
        %1302 = vmatpush1.bf16.msra.mxu0 %v1277
        %1303 = vmatprep.subr.bf16.mxu0 0
        %1304 = vmatpush1.bf16.msra.mxu0 %v1276
        %1305 = vmatprep.subr.bf16.mxu0 0
        %1306 = vmatpush1.bf16.msra.mxu0 %v1275
        %1307 = vmatprep.subr.bf16.mxu0 0
        %1308 = vmatpush2.bf16.msra.mxu0 0
        %1309 = vmatprep.subr.bf16.mxu0 0
        %1310 = vmatpush2.bf16.msra.mxu0 0
        %1311 = vmatprep.subr.bf16.mxu0 0
        %1312 = vmatpush2.bf16.msra.mxu0 0
        %1313 = vmatprep.subr.bf16.mxu0 0
        %1314 = vmatpush2.bf16.msra.mxu0 0
        %1315 = vmatprep.subr.bf16.mxu0 0
        %1316 = vmatpush2.bf16.msra.mxu0 0
        %1317 = vmatprep.subr.bf16.mxu0 0
        %1318 = vmatpush2.bf16.msra.mxu0 0
        %1319 = vmatprep.subr.bf16.mxu0 0
        %1320 = vmatpush2.bf16.msra.mxu0 0
        %1321 = vmatprep.subr.bf16.mxu0 0
        %1322 = vmatpush2.bf16.msra.mxu0 0
        %1323 = vmatprep.mubr.bf16.mxu0 0
        %1324 = vmatmul.mubr.bf16.gmra.mxu0 %v386
        %v1325 = vpop.f32.mrf.mxu0
        %v1326 = vadd.f32 0.0, %v1325
        %v1327 = vpop.f32.mrf.mxu0
        %v1328 = vpop.f32.mrf.mxu0
        %v1329 = vpop.f32.mrf.mxu0
        %1330 = vdwg.mxu0
        %v1347 = vunpack.c.l.b16 %v469
        %v1348 = vunpack.c.l.b16 %v470
        %v1349 = vunpack.c.l.b16 %v471
        %v1350 = vunpack.c.l.b16 %v472
        %v1351 = vunpack.c.l.b16 %v473
        %v1352 = vunpack.c.l.b16 %v474
        %v1353 = vunpack.c.l.b16 %v475
        %v1354 = vunpack.c.l.b16 %v476
        %v1355 = vunpack.c.l.b16 %v477
        %v1356 = vunpack.c.l.b16 %v478
        %v1357 = vunpack.c.l.b16 %v479
        %v1358 = vunpack.c.l.b16 %v480
        %v1359 = vunpack.c.l.b16 %v481
        %v1360 = vunpack.c.l.b16 %v482
        %v1361 = vunpack.c.l.b16 %v483
        %v1362 = vunpack.c.l.b16 %v484
        %v1363 = vpack.c.b16 %v1348, %v1347
        %v1364 = vpack.c.b16 %v1350, %v1349
        %v1365 = vpack.c.b16 %v1352, %v1351
        %v1366 = vpack.c.b16 %v1354, %v1353
        %v1367 = vpack.c.b16 %v1356, %v1355
        %v1368 = vpack.c.b16 %v1358, %v1357
        %v1369 = vpack.c.b16 %v1360, %v1359
        %v1370 = vpack.c.b16 %v1362, %v1361
        %1379 = vmatprep.subr.bf16.mxu0 0
        %1380 = vmatpush1.bf16.msra.mxu0 %v1370
        %1381 = vmatprep.subr.bf16.mxu0 0
        %1382 = vmatpush1.bf16.msra.mxu0 %v1369
        %1383 = vmatprep.subr.bf16.mxu0 0
        %1384 = vmatpush1.bf16.msra.mxu0 %v1368
        %1385 = vmatprep.subr.bf16.mxu0 0
        %1386 = vmatpush1.bf16.msra.mxu0 %v1367
        %1387 = vmatprep.subr.bf16.mxu0 0
        %1388 = vmatpush1.bf16.msra.mxu0 %v1366
        %1389 = vmatprep.subr.bf16.mxu0 0
        %1390 = vmatpush1.bf16.msra.mxu0 %v1365
        %1391 = vmatprep.subr.bf16.mxu0 0
        %1392 = vmatpush1.bf16.msra.mxu0 %v1364
        %1393 = vmatprep.subr.bf16.mxu0 0
        %1394 = vmatpush1.bf16.msra.mxu0 %v1363
        %1395 = vmatprep.subr.bf16.mxu0 0
        %1396 = vmatpush2.bf16.msra.mxu0 0
        %1397 = vmatprep.subr.bf16.mxu0 0
        %1398 = vmatpush2.bf16.msra.mxu0 0
        %1399 = vmatprep.subr.bf16.mxu0 0
        %1400 = vmatpush2.bf16.msra.mxu0 0
        %1401 = vmatprep.subr.bf16.mxu0 0
        %1402 = vmatpush2.bf16.msra.mxu0 0
        %1403 = vmatprep.subr.bf16.mxu0 0
        %1404 = vmatpush2.bf16.msra.mxu0 0
        %1405 = vmatprep.subr.bf16.mxu0 0
        %1406 = vmatpush2.bf16.msra.mxu0 0
        %1407 = vmatprep.subr.bf16.mxu0 0
        %1408 = vmatpush2.bf16.msra.mxu0 0
        %1409 = vmatprep.subr.bf16.mxu0 0
        %1410 = vmatpush2.bf16.msra.mxu0 0
        %1411 = vmatprep.mubr.bf16.mxu0 0
        %1412 = vmatmul.mubr.bf16.gmra.mxu0 %v385
        %v1413 = vpop.f32.mrf.mxu0
        %v1414 = vadd.f32 %v1326, %v1413
        %v1415 = vpop.f32.mrf.mxu0
        %v1416 = vpop.f32.mrf.mxu0
        %v1417 = vpop.f32.mrf.mxu0
        %1418 = vdwg.mxu0
        %v1435 = vunpack.c.l.b16 %v501
        %v1436 = vunpack.c.l.b16 %v502
        %v1437 = vunpack.c.l.b16 %v503
        %v1438 = vunpack.c.l.b16 %v504
        %v1439 = vunpack.c.l.b16 %v505
        %v1440 = vunpack.c.l.b16 %v506
        %v1441 = vunpack.c.l.b16 %v507
        %v1442 = vunpack.c.l.b16 %v508
        %v1443 = vunpack.c.l.b16 %v509
        %v1444 = vunpack.c.l.b16 %v510
        %v1445 = vunpack.c.l.b16 %v511
        %v1446 = vunpack.c.l.b16 %v512
        %v1447 = vunpack.c.l.b16 %v513
        %v1448 = vunpack.c.l.b16 %v514
        %v1449 = vunpack.c.l.b16 %v515
        %v1450 = vunpack.c.l.b16 %v516
        %v1451 = vpack.c.b16 %v1436, %v1435
        %v1452 = vpack.c.b16 %v1438, %v1437
        %v1453 = vpack.c.b16 %v1440, %v1439
        %v1454 = vpack.c.b16 %v1442, %v1441
        %v1455 = vpack.c.b16 %v1444, %v1443
        %v1456 = vpack.c.b16 %v1446, %v1445
        %v1457 = vpack.c.b16 %v1448, %v1447
        %v1458 = vpack.c.b16 %v1450, %v1449
        %1467 = vmatprep.subr.bf16.mxu0 0
        %1468 = vmatpush1.bf16.msra.mxu0 %v1458
        %1469 = vmatprep.subr.bf16.mxu0 0
        %1470 = vmatpush1.bf16.msra.mxu0 %v1457
        %1471 = vmatprep.subr.bf16.mxu0 0
        %1472 = vmatpush1.bf16.msra.mxu0 %v1456
        %1473 = vmatprep.subr.bf16.mxu0 0
        %1474 = vmatpush1.bf16.msra.mxu0 %v1455
        %1475 = vmatprep.subr.bf16.mxu0 0
        %1476 = vmatpush1.bf16.msra.mxu0 %v1454
        %1477 = vmatprep.subr.bf16.mxu0 0
        %1478 = vmatpush1.bf16.msra.mxu0 %v1453
        %1479 = vmatprep.subr.bf16.mxu0 0
        %1480 = vmatpush1.bf16.msra.mxu0 %v1452
        %1481 = vmatprep.subr.bf16.mxu0 0
        %1482 = vmatpush1.bf16.msra.mxu0 %v1451
        %1483 = vmatprep.subr.bf16.mxu0 0
        %1484 = vmatpush2.bf16.msra.mxu0 0
        %1485 = vmatprep.subr.bf16.mxu0 0
        %1486 = vmatpush2.bf16.msra.mxu0 0
        %1487 = vmatprep.subr.bf16.mxu0 0
        %1488 = vmatpush2.bf16.msra.mxu0 0
        %1489 = vmatprep.subr.bf16.mxu0 0
        %1490 = vmatpush2.bf16.msra.mxu0 0
        %1491 = vmatprep.subr.bf16.mxu0 0
        %1492 = vmatpush2.bf16.msra.mxu0 0
        %1493 = vmatprep.subr.bf16.mxu0 0
        %1494 = vmatpush2.bf16.msra.mxu0 0
        %1495 = vmatprep.subr.bf16.mxu0 0
        %1496 = vmatpush2.bf16.msra.mxu0 0
        %1497 = vmatprep.subr.bf16.mxu0 0
        %1498 = vmatpush2.bf16.msra.mxu0 0
        %1499 = vmatprep.mubr.bf16.mxu0 0
        %1500 = vmatmul.mubr.bf16.gmra.mxu0 %v387
        %v1501 = vpop.f32.mrf.mxu0
        %v1502 = vadd.f32 0.0, %v1501
        %v1503 = vpop.f32.mrf.mxu0
        %v1504 = vpop.f32.mrf.mxu0
        %v1505 = vpop.f32.mrf.mxu0
        %1506 = vdwg.mxu0
        %v1507 = vadd.f32 %v1414, %v1502
        %v1524 = vunpack.c.l.b16 %v517
        %v1525 = vunpack.c.l.b16 %v518
        %v1526 = vunpack.c.l.b16 %v519
        %v1527 = vunpack.c.l.b16 %v520
        %v1528 = vunpack.c.l.b16 %v521
        %v1529 = vunpack.c.l.b16 %v522
        %v1530 = vunpack.c.l.b16 %v523
        %v1531 = vunpack.c.l.b16 %v524
        %v1532 = vunpack.c.l.b16 %v525
        %v1533 = vunpack.c.l.b16 %v526
        %v1534 = vunpack.c.l.b16 %v527
        %v1535 = vunpack.c.l.b16 %v528
        %v1536 = vunpack.c.l.b16 %v529
        %v1537 = vunpack.c.l.b16 %v530
        %v1538 = vunpack.c.l.b16 %v531
        %v1539 = vunpack.c.l.b16 %v532
        %v1540 = vpack.c.b16 %v1525, %v1524
        %v1541 = vpack.c.b16 %v1527, %v1526
        %v1542 = vpack.c.b16 %v1529, %v1528
        %v1543 = vpack.c.b16 %v1531, %v1530
        %v1544 = vpack.c.b16 %v1533, %v1532
        %v1545 = vpack.c.b16 %v1535, %v1534
        %v1546 = vpack.c.b16 %v1537, %v1536
        %v1547 = vpack.c.b16 %v1539, %v1538
        %1556 = vmatprep.subr.bf16.mxu0 0
        %1557 = vmatpush1.bf16.msra.mxu0 %v1547
        %1558 = vmatprep.subr.bf16.mxu0 0
        %1559 = vmatpush1.bf16.msra.mxu0 %v1546
        %1560 = vmatprep.subr.bf16.mxu0 0
        %1561 = vmatpush1.bf16.msra.mxu0 %v1545
        %1562 = vmatprep.subr.bf16.mxu0 0
        %1563 = vmatpush1.bf16.msra.mxu0 %v1544
        %1564 = vmatprep.subr.bf16.mxu0 0
        %1565 = vmatpush1.bf16.msra.mxu0 %v1543
        %1566 = vmatprep.subr.bf16.mxu0 0
        %1567 = vmatpush1.bf16.msra.mxu0 %v1542
        %1568 = vmatprep.subr.bf16.mxu0 0
        %1569 = vmatpush1.bf16.msra.mxu0 %v1541
        %1570 = vmatprep.subr.bf16.mxu0 0
        %1571 = vmatpush1.bf16.msra.mxu0 %v1540
        %1572 = vmatprep.subr.bf16.mxu0 0
        %1573 = vmatpush2.bf16.msra.mxu0 0
        %1574 = vmatprep.subr.bf16.mxu0 0
        %1575 = vmatpush2.bf16.msra.mxu0 0
        %1576 = vmatprep.subr.bf16.mxu0 0
        %1577 = vmatpush2.bf16.msra.mxu0 0
        %1578 = vmatprep.subr.bf16.mxu0 0
        %1579 = vmatpush2.bf16.msra.mxu0 0
        %1580 = vmatprep.subr.bf16.mxu0 0
        %1581 = vmatpush2.bf16.msra.mxu0 0
        %1582 = vmatprep.subr.bf16.mxu0 0
        %1583 = vmatpush2.bf16.msra.mxu0 0
        %1584 = vmatprep.subr.bf16.mxu0 0
        %1585 = vmatpush2.bf16.msra.mxu0 0
        %1586 = vmatprep.subr.bf16.mxu0 0
        %1587 = vmatpush2.bf16.msra.mxu0 0
        %1588 = vmatprep.mubr.bf16.mxu0 0
        %1589 = vmatmul.mubr.bf16.gmra.mxu0 %v388
        %v1590 = vpop.f32.mrf.mxu0
        %v1591 = vadd.f32 0.0, %v1590
        %v1592 = vpop.f32.mrf.mxu0
        %v1593 = vpop.f32.mrf.mxu0
        %v1594 = vpop.f32.mrf.mxu0
        %1595 = vdwg.mxu0
        %v1596 = vadd.f32 %v1507, %v1591
        %v1613 = vunpack.c.l.b16 %v533
        %v1614 = vunpack.c.l.b16 %v534
        %v1615 = vunpack.c.l.b16 %v535
        %v1616 = vunpack.c.l.b16 %v536
        %v1617 = vunpack.c.l.b16 %v537
        %v1618 = vunpack.c.l.b16 %v538
        %v1619 = vunpack.c.l.b16 %v539
        %v1620 = vunpack.c.l.b16 %v540
        %v1621 = vunpack.c.l.b16 %v541
        %v1622 = vunpack.c.l.b16 %v542
        %v1623 = vunpack.c.l.b16 %v543
        %v1624 = vunpack.c.l.b16 %v544
        %v1625 = vunpack.c.l.b16 %v545
        %v1626 = vunpack.c.l.b16 %v546
        %v1627 = vunpack.c.l.b16 %v547
        %v1628 = vunpack.c.l.b16 %v548
        %v1629 = vpack.c.b16 %v1614, %v1613
        %v1630 = vpack.c.b16 %v1616, %v1615
        %v1631 = vpack.c.b16 %v1618, %v1617
        %v1632 = vpack.c.b16 %v1620, %v1619
        %v1633 = vpack.c.b16 %v1622, %v1621
        %v1634 = vpack.c.b16 %v1624, %v1623
        %v1635 = vpack.c.b16 %v1626, %v1625
        %v1636 = vpack.c.b16 %v1628, %v1627
        %1645 = vmatprep.subr.bf16.mxu0 0
        %1646 = vmatpush1.bf16.msra.mxu0 %v1636
        %1647 = vmatprep.subr.bf16.mxu0 0
        %1648 = vmatpush1.bf16.msra.mxu0 %v1635
        %1649 = vmatprep.subr.bf16.mxu0 0
        %1650 = vmatpush1.bf16.msra.mxu0 %v1634
        %1651 = vmatprep.subr.bf16.mxu0 0
        %1652 = vmatpush1.bf16.msra.mxu0 %v1633
        %1653 = vmatprep.subr.bf16.mxu0 0
        %1654 = vmatpush1.bf16.msra.mxu0 %v1632
        %1655 = vmatprep.subr.bf16.mxu0 0
        %1656 = vmatpush1.bf16.msra.mxu0 %v1631
        %1657 = vmatprep.subr.bf16.mxu0 0
        %1658 = vmatpush1.bf16.msra.mxu0 %v1630
        %1659 = vmatprep.subr.bf16.mxu0 0
        %1660 = vmatpush1.bf16.msra.mxu0 %v1629
        %1661 = vmatprep.subr.bf16.mxu0 0
        %1662 = vmatpush2.bf16.msra.mxu0 0
        %1663 = vmatprep.subr.bf16.mxu0 0
        %1664 = vmatpush2.bf16.msra.mxu0 0
        %1665 = vmatprep.subr.bf16.mxu0 0
        %1666 = vmatpush2.bf16.msra.mxu0 0
        %1667 = vmatprep.subr.bf16.mxu0 0
        %1668 = vmatpush2.bf16.msra.mxu0 0
        %1669 = vmatprep.subr.bf16.mxu0 0
        %1670 = vmatpush2.bf16.msra.mxu0 0
        %1671 = vmatprep.subr.bf16.mxu0 0
        %1672 = vmatpush2.bf16.msra.mxu0 0
        %1673 = vmatprep.subr.bf16.mxu0 0
        %1674 = vmatpush2.bf16.msra.mxu0 0
        %1675 = vmatprep.subr.bf16.mxu0 0
        %1676 = vmatpush2.bf16.msra.mxu0 0
        %1677 = vmatprep.mubr.bf16.mxu0 0
        %1678 = vmatmul.mubr.bf16.gmra.mxu0 %v1152
        %v1679 = vpop.f32.mrf.mxu0
        %v1680 = vadd.f32 0.0, %v1679
        %v1681 = vpop.f32.mrf.mxu0
        %v1682 = vpop.f32.mrf.mxu0
        %v1683 = vpop.f32.mrf.mxu0
        %1684 = vdwg.mxu0
        %v1685 = vadd.f32 %v1596, %v1680
        %v1686 = vmax.f32 %v1242, %v1685
        %1687 = vmatprep.subr.bf16.mxu0 0
        %1688 = vmatpush1.bf16.msra.mxu0 %v828
        %1689 = vmatprep.subr.bf16.mxu0 0
        %1690 = vmatpush1.bf16.msra.mxu0 %v827
        %1691 = vmatprep.subr.bf16.mxu0 0
        %1692 = vmatpush1.bf16.msra.mxu0 %v826
        %1693 = vmatprep.subr.bf16.mxu0 0
        %1694 = vmatpush1.bf16.msra.mxu0 %v825
        %1695 = vmatprep.subr.bf16.mxu0 0
        %1696 = vmatpush1.bf16.msra.mxu0 %v824
        %1697 = vmatprep.subr.bf16.mxu0 0
        %1698 = vmatpush1.bf16.msra.mxu0 %v823
        %1699 = vmatprep.subr.bf16.mxu0 0
        %1700 = vmatpush1.bf16.msra.mxu0 %v822
        %1701 = vmatprep.subr.bf16.mxu0 0
        %1702 = vmatpush1.bf16.msra.mxu0 %v821
        %1703 = vmatprep.subr.bf16.mxu0 0
        %1704 = vmatpush2.bf16.msra.mxu0 0
        %1705 = vmatprep.subr.bf16.mxu0 0
        %1706 = vmatpush2.bf16.msra.mxu0 0
        %1707 = vmatprep.subr.bf16.mxu0 0
        %1708 = vmatpush2.bf16.msra.mxu0 0
        %1709 = vmatprep.subr.bf16.mxu0 0
        %1710 = vmatpush2.bf16.msra.mxu0 0
        %1711 = vmatprep.subr.bf16.mxu0 0
        %1712 = vmatpush2.bf16.msra.mxu0 0
        %1713 = vmatprep.subr.bf16.mxu0 0
        %1714 = vmatpush2.bf16.msra.mxu0 0
        %1715 = vmatprep.subr.bf16.mxu0 0
        %1716 = vmatpush2.bf16.msra.mxu0 0
        %1717 = vmatprep.subr.bf16.mxu0 0
        %1718 = vmatpush2.bf16.msra.mxu0 0
        %1719 = vmatprep.mubr.bf16.mxu0 0
        %1720 = vmatmul.mubr.bf16.gmra.mxu0 %v387
        %v1721 = vpop.f32.mrf.mxu0
        %v1722 = vadd.f32 0.0, %v1721
        %v1723 = vpop.f32.mrf.mxu0
        %v1724 = vpop.f32.mrf.mxu0
        %v1725 = vpop.f32.mrf.mxu0
        %1726 = vdwg.mxu0
        %1727 = vmatprep.subr.bf16.mxu0 0
        %1728 = vmatpush1.bf16.msra.mxu0 %v916
        %1729 = vmatprep.subr.bf16.mxu0 0
        %1730 = vmatpush1.bf16.msra.mxu0 %v915
        %1731 = vmatprep.subr.bf16.mxu0 0
        %1732 = vmatpush1.bf16.msra.mxu0 %v914
        %1733 = vmatprep.subr.bf16.mxu0 0
        %1734 = vmatpush1.bf16.msra.mxu0 %v913
        %1735 = vmatprep.subr.bf16.mxu0 0
        %1736 = vmatpush1.bf16.msra.mxu0 %v912
        %1737 = vmatprep.subr.bf16.mxu0 0
        %1738 = vmatpush1.bf16.msra.mxu0 %v911
        %1739 = vmatprep.subr.bf16.mxu0 0
        %1740 = vmatpush1.bf16.msra.mxu0 %v910
        %1741 = vmatprep.subr.bf16.mxu0 0
        %1742 = vmatpush1.bf16.msra.mxu0 %v909
        %1743 = vmatprep.subr.bf16.mxu0 0
        %1744 = vmatpush2.bf16.msra.mxu0 0
        %1745 = vmatprep.subr.bf16.mxu0 0
        %1746 = vmatpush2.bf16.msra.mxu0 0
        %1747 = vmatprep.subr.bf16.mxu0 0
        %1748 = vmatpush2.bf16.msra.mxu0 0
        %1749 = vmatprep.subr.bf16.mxu0 0
        %1750 = vmatpush2.bf16.msra.mxu0 0
        %1751 = vmatprep.subr.bf16.mxu0 0
        %1752 = vmatpush2.bf16.msra.mxu0 0
        %1753 = vmatprep.subr.bf16.mxu0 0
        %1754 = vmatpush2.bf16.msra.mxu0 0
        %1755 = vmatprep.subr.bf16.mxu0 0
        %1756 = vmatpush2.bf16.msra.mxu0 0
        %1757 = vmatprep.subr.bf16.mxu0 0
        %1758 = vmatpush2.bf16.msra.mxu0 0
        %1759 = vmatprep.mubr.bf16.mxu0 0
        %1760 = vmatmul.mubr.bf16.gmra.mxu0 %v386
        %v1761 = vpop.f32.mrf.mxu0
        %v1762 = vadd.f32 %v1722, %v1761
        %v1763 = vpop.f32.mrf.mxu0
        %v1764 = vpop.f32.mrf.mxu0
        %v1765 = vpop.f32.mrf.mxu0
        %1766 = vdwg.mxu0
        %1767 = vmatprep.subr.bf16.mxu0 0
        %1768 = vmatpush1.bf16.msra.mxu0 %v1004
        %1769 = vmatprep.subr.bf16.mxu0 0
        %1770 = vmatpush1.bf16.msra.mxu0 %v1003
        %1771 = vmatprep.subr.bf16.mxu0 0
        %1772 = vmatpush1.bf16.msra.mxu0 %v1002
        %1773 = vmatprep.subr.bf16.mxu0 0
        %1774 = vmatpush1.bf16.msra.mxu0 %v1001
        %1775 = vmatprep.subr.bf16.mxu0 0
        %1776 = vmatpush1.bf16.msra.mxu0 %v1000
        %1777 = vmatprep.subr.bf16.mxu0 0
        %1778 = vmatpush1.bf16.msra.mxu0 %v999
        %1779 = vmatprep.subr.bf16.mxu0 0
        %1780 = vmatpush1.bf16.msra.mxu0 %v998
        %1781 = vmatprep.subr.bf16.mxu0 0
        %1782 = vmatpush1.bf16.msra.mxu0 %v997
        %1783 = vmatprep.subr.bf16.mxu0 0
        %1784 = vmatpush2.bf16.msra.mxu0 0
        %1785 = vmatprep.subr.bf16.mxu0 0
        %1786 = vmatpush2.bf16.msra.mxu0 0
        %1787 = vmatprep.subr.bf16.mxu0 0
        %1788 = vmatpush2.bf16.msra.mxu0 0
        %1789 = vmatprep.subr.bf16.mxu0 0
        %1790 = vmatpush2.bf16.msra.mxu0 0
        %1791 = vmatprep.subr.bf16.mxu0 0
        %1792 = vmatpush2.bf16.msra.mxu0 0
        %1793 = vmatprep.subr.bf16.mxu0 0
        %1794 = vmatpush2.bf16.msra.mxu0 0
        %1795 = vmatprep.subr.bf16.mxu0 0
        %1796 = vmatpush2.bf16.msra.mxu0 0
        %1797 = vmatprep.subr.bf16.mxu0 0
        %1798 = vmatpush2.bf16.msra.mxu0 0
        %1799 = vmatprep.mubr.bf16.mxu0 0
        %1800 = vmatmul.mubr.bf16.gmra.mxu0 %v388
        %v1801 = vpop.f32.mrf.mxu0
        %v1802 = vadd.f32 0.0, %v1801
        %v1803 = vpop.f32.mrf.mxu0
        %v1804 = vpop.f32.mrf.mxu0
        %v1805 = vpop.f32.mrf.mxu0
        %1806 = vdwg.mxu0
        %v1807 = vadd.f32 %v1762, %v1802
        %1808 = vmatprep.subr.bf16.mxu0 0
        %1809 = vmatpush1.bf16.msra.mxu0 %v1093
        %1810 = vmatprep.subr.bf16.mxu0 0
        %1811 = vmatpush1.bf16.msra.mxu0 %v1092
        %1812 = vmatprep.subr.bf16.mxu0 0
        %1813 = vmatpush1.bf16.msra.mxu0 %v1091
        %1814 = vmatprep.subr.bf16.mxu0 0
        %1815 = vmatpush1.bf16.msra.mxu0 %v1090
        %1816 = vmatprep.subr.bf16.mxu0 0
        %1817 = vmatpush1.bf16.msra.mxu0 %v1089
        %1818 = vmatprep.subr.bf16.mxu0 0
        %1819 = vmatpush1.bf16.msra.mxu0 %v1088
        %1820 = vmatprep.subr.bf16.mxu0 0
        %1821 = vmatpush1.bf16.msra.mxu0 %v1087
        %1822 = vmatprep.subr.bf16.mxu0 0
        %1823 = vmatpush1.bf16.msra.mxu0 %v1086
        %1824 = vmatprep.subr.bf16.mxu0 0
        %1825 = vmatpush2.bf16.msra.mxu0 0
        %1826 = vmatprep.subr.bf16.mxu0 0
        %1827 = vmatpush2.bf16.msra.mxu0 0
        %1828 = vmatprep.subr.bf16.mxu0 0
        %1829 = vmatpush2.bf16.msra.mxu0 0
        %1830 = vmatprep.subr.bf16.mxu0 0
        %1831 = vmatpush2.bf16.msra.mxu0 0
        %1832 = vmatprep.subr.bf16.mxu0 0
        %1833 = vmatpush2.bf16.msra.mxu0 0
        %1834 = vmatprep.subr.bf16.mxu0 0
        %1835 = vmatpush2.bf16.msra.mxu0 0
        %1836 = vmatprep.subr.bf16.mxu0 0
        %1837 = vmatpush2.bf16.msra.mxu0 0
        %1838 = vmatprep.subr.bf16.mxu0 0
        %1839 = vmatpush2.bf16.msra.mxu0 0
        %1840 = vmatprep.mubr.bf16.mxu0 0
        %1841 = vmatmul.mubr.bf16.gmra.mxu0 %v1152
        %v1842 = vpop.f32.mrf.mxu0
        %v1843 = vadd.f32 0.0, %v1842
        %v1844 = vpop.f32.mrf.mxu0
        %v1845 = vpop.f32.mrf.mxu0
        %v1846 = vpop.f32.mrf.mxu0
        %1847 = vdwg.mxu0
        %v1848 = vadd.f32 %v1807, %v1843
        %v1850 = vunpack.c.l.b16 %v386
        %v1851 = vpack.c.b16 %v1850, %v1850
        %v1853 = vshrl.u32 %v1851, 16
        %v1855 = vshll.u32 %v1851, 16
        %v1857 = vrot.slane %v1855, 1
        %v1858 = vor.u32 %v1853, %v1857
        %1860 = vmatprep.subr.bf16.mxu0 0
        %1861 = vmatpush1.bf16.msra.mxu0 %v1193
        %1862 = vmatprep.subr.bf16.mxu0 0
        %1863 = vmatpush1.bf16.msra.mxu0 %v1192
        %1864 = vmatprep.subr.bf16.mxu0 0
        %1865 = vmatpush1.bf16.msra.mxu0 %v1191
        %1866 = vmatprep.subr.bf16.mxu0 0
        %1867 = vmatpush1.bf16.msra.mxu0 %v1190
        %1868 = vmatprep.subr.bf16.mxu0 0
        %1869 = vmatpush1.bf16.msra.mxu0 %v1189
        %1870 = vmatprep.subr.bf16.mxu0 0
        %1871 = vmatpush1.bf16.msra.mxu0 %v1188
        %1872 = vmatprep.subr.bf16.mxu0 0
        %1873 = vmatpush1.bf16.msra.mxu0 %v1187
        %1874 = vmatprep.subr.bf16.mxu0 0
        %1875 = vmatpush1.bf16.msra.mxu0 %v1186
        %1876 = vmatprep.subr.bf16.mxu0 0
        %1877 = vmatpush2.bf16.msra.mxu0 0
        %1878 = vmatprep.subr.bf16.mxu0 0
        %1879 = vmatpush2.bf16.msra.mxu0 0
        %1880 = vmatprep.subr.bf16.mxu0 0
        %1881 = vmatpush2.bf16.msra.mxu0 0
        %1882 = vmatprep.subr.bf16.mxu0 0
        %1883 = vmatpush2.bf16.msra.mxu0 0
        %1884 = vmatprep.subr.bf16.mxu0 0
        %1885 = vmatpush2.bf16.msra.mxu0 0
        %1886 = vmatprep.subr.bf16.mxu0 0
        %1887 = vmatpush2.bf16.msra.mxu0 0
        %1888 = vmatprep.subr.bf16.mxu0 0
        %1889 = vmatpush2.bf16.msra.mxu0 0
        %1890 = vmatprep.subr.bf16.mxu0 0
        %1891 = vmatpush2.bf16.msra.mxu0 0
        %1892 = vmatprep.mubr.bf16.mxu0 0
        %1893 = vmatmul.mubr.bf16.gmra.mxu0 %v1858
        %v1894 = vpop.f32.mrf.mxu0
        %v1895 = vadd.f32 0.0, %v1894
        %v1896 = vpop.f32.mrf.mxu0
        %v1897 = vpop.f32.mrf.mxu0
        %v1898 = vpop.f32.mrf.mxu0
        %1899 = vdwg.mxu0
        %v1900 = vadd.f32 %v1848, %v1895
        %v1901 = vmax.f32 %v1686, %v1900
        %1902 = vmatprep.subr.bf16.mxu0 0
        %1903 = vmatpush1.bf16.msra.mxu0 %v1282
        %1904 = vmatprep.subr.bf16.mxu0 0
        %1905 = vmatpush1.bf16.msra.mxu0 %v1281
        %1906 = vmatprep.subr.bf16.mxu0 0
        %1907 = vmatpush1.bf16.msra.mxu0 %v1280
        %1908 = vmatprep.subr.bf16.mxu0 0
        %1909 = vmatpush1.bf16.msra.mxu0 %v1279
        %1910 = vmatprep.subr.bf16.mxu0 0
        %1911 = vmatpush1.bf16.msra.mxu0 %v1278
        %1912 = vmatprep.subr.bf16.mxu0 0
        %1913 = vmatpush1.bf16.msra.mxu0 %v1277
        %1914 = vmatprep.subr.bf16.mxu0 0
        %1915 = vmatpush1.bf16.msra.mxu0 %v1276
        %1916 = vmatprep.subr.bf16.mxu0 0
        %1917 = vmatpush1.bf16.msra.mxu0 %v1275
        %1918 = vmatprep.subr.bf16.mxu0 0
        %1919 = vmatpush2.bf16.msra.mxu0 0
        %1920 = vmatprep.subr.bf16.mxu0 0
        %1921 = vmatpush2.bf16.msra.mxu0 0
        %1922 = vmatprep.subr.bf16.mxu0 0
        %1923 = vmatpush2.bf16.msra.mxu0 0
        %1924 = vmatprep.subr.bf16.mxu0 0
        %1925 = vmatpush2.bf16.msra.mxu0 0
        %1926 = vmatprep.subr.bf16.mxu0 0
        %1927 = vmatpush2.bf16.msra.mxu0 0
        %1928 = vmatprep.subr.bf16.mxu0 0
        %1929 = vmatpush2.bf16.msra.mxu0 0
        %1930 = vmatprep.subr.bf16.mxu0 0
        %1931 = vmatpush2.bf16.msra.mxu0 0
        %1932 = vmatprep.subr.bf16.mxu0 0
        %1933 = vmatpush2.bf16.msra.mxu0 0
        %1934 = vmatprep.mubr.bf16.mxu0 0
        %1935 = vmatmul.mubr.bf16.gmra.mxu0 %v387
        %v1936 = vpop.f32.mrf.mxu0
        %v1937 = vadd.f32 0.0, %v1936
        %v1938 = vpop.f32.mrf.mxu0
        %v1939 = vpop.f32.mrf.mxu0
        %v1940 = vpop.f32.mrf.mxu0
        %1941 = vdwg.mxu0
        %1942 = vmatprep.subr.bf16.mxu0 0
        %1943 = vmatpush1.bf16.msra.mxu0 %v1370
        %1944 = vmatprep.subr.bf16.mxu0 0
        %1945 = vmatpush1.bf16.msra.mxu0 %v1369
        %1946 = vmatprep.subr.bf16.mxu0 0
        %1947 = vmatpush1.bf16.msra.mxu0 %v1368
        %1948 = vmatprep.subr.bf16.mxu0 0
        %1949 = vmatpush1.bf16.msra.mxu0 %v1367
        %1950 = vmatprep.subr.bf16.mxu0 0
        %1951 = vmatpush1.bf16.msra.mxu0 %v1366
        %1952 = vmatprep.subr.bf16.mxu0 0
        %1953 = vmatpush1.bf16.msra.mxu0 %v1365
        %1954 = vmatprep.subr.bf16.mxu0 0
        %1955 = vmatpush1.bf16.msra.mxu0 %v1364
        %1956 = vmatprep.subr.bf16.mxu0 0
        %1957 = vmatpush1.bf16.msra.mxu0 %v1363
        %1958 = vmatprep.subr.bf16.mxu0 0
        %1959 = vmatpush2.bf16.msra.mxu0 0
        %1960 = vmatprep.subr.bf16.mxu0 0
        %1961 = vmatpush2.bf16.msra.mxu0 0
        %1962 = vmatprep.subr.bf16.mxu0 0
        %1963 = vmatpush2.bf16.msra.mxu0 0
        %1964 = vmatprep.subr.bf16.mxu0 0
        %1965 = vmatpush2.bf16.msra.mxu0 0
        %1966 = vmatprep.subr.bf16.mxu0 0
        %1967 = vmatpush2.bf16.msra.mxu0 0
        %1968 = vmatprep.subr.bf16.mxu0 0
        %1969 = vmatpush2.bf16.msra.mxu0 0
        %1970 = vmatprep.subr.bf16.mxu0 0
        %1971 = vmatpush2.bf16.msra.mxu0 0
        %1972 = vmatprep.subr.bf16.mxu0 0
        %1973 = vmatpush2.bf16.msra.mxu0 0
        %1974 = vmatprep.mubr.bf16.mxu0 0
        %1975 = vmatmul.mubr.bf16.gmra.mxu0 %v386
        %v1976 = vpop.f32.mrf.mxu0
        %v1977 = vadd.f32 %v1937, %v1976
        %v1978 = vpop.f32.mrf.mxu0
        %v1979 = vpop.f32.mrf.mxu0
        %v1980 = vpop.f32.mrf.mxu0
        %1981 = vdwg.mxu0
        %1982 = vmatprep.subr.bf16.mxu0 0
        %1983 = vmatpush1.bf16.msra.mxu0 %v1458
        %1984 = vmatprep.subr.bf16.mxu0 0
        %1985 = vmatpush1.bf16.msra.mxu0 %v1457
        %1986 = vmatprep.subr.bf16.mxu0 0
        %1987 = vmatpush1.bf16.msra.mxu0 %v1456
        %1988 = vmatprep.subr.bf16.mxu0 0
        %1989 = vmatpush1.bf16.msra.mxu0 %v1455
        %1990 = vmatprep.subr.bf16.mxu0 0
        %1991 = vmatpush1.bf16.msra.mxu0 %v1454
        %1992 = vmatprep.subr.bf16.mxu0 0
        %1993 = vmatpush1.bf16.msra.mxu0 %v1453
        %1994 = vmatprep.subr.bf16.mxu0 0
        %1995 = vmatpush1.bf16.msra.mxu0 %v1452
        %1996 = vmatprep.subr.bf16.mxu0 0
        %1997 = vmatpush1.bf16.msra.mxu0 %v1451
        %1998 = vmatprep.subr.bf16.mxu0 0
        %1999 = vmatpush2.bf16.msra.mxu0 0
        %2000 = vmatprep.subr.bf16.mxu0 0
        %2001 = vmatpush2.bf16.msra.mxu0 0
        %2002 = vmatprep.subr.bf16.mxu0 0
        %2003 = vmatpush2.bf16.msra.mxu0 0
        %2004 = vmatprep.subr.bf16.mxu0 0
        %2005 = vmatpush2.bf16.msra.mxu0 0
        %2006 = vmatprep.subr.bf16.mxu0 0
        %2007 = vmatpush2.bf16.msra.mxu0 0
        %2008 = vmatprep.subr.bf16.mxu0 0
        %2009 = vmatpush2.bf16.msra.mxu0 0
        %2010 = vmatprep.subr.bf16.mxu0 0
        %2011 = vmatpush2.bf16.msra.mxu0 0
        %2012 = vmatprep.subr.bf16.mxu0 0
        %2013 = vmatpush2.bf16.msra.mxu0 0
        %2014 = vmatprep.mubr.bf16.mxu0 0
        %2015 = vmatmul.mubr.bf16.gmra.mxu0 %v388
        %v2016 = vpop.f32.mrf.mxu0
        %v2017 = vadd.f32 0.0, %v2016
        %v2018 = vpop.f32.mrf.mxu0
        %v2019 = vpop.f32.mrf.mxu0
        %v2020 = vpop.f32.mrf.mxu0
        %2021 = vdwg.mxu0
        %v2022 = vadd.f32 %v1977, %v2017
        %2023 = vmatprep.subr.bf16.mxu0 0
        %2024 = vmatpush1.bf16.msra.mxu0 %v1547
        %2025 = vmatprep.subr.bf16.mxu0 0
        %2026 = vmatpush1.bf16.msra.mxu0 %v1546
        %2027 = vmatprep.subr.bf16.mxu0 0
        %2028 = vmatpush1.bf16.msra.mxu0 %v1545
        %2029 = vmatprep.subr.bf16.mxu0 0
        %2030 = vmatpush1.bf16.msra.mxu0 %v1544
        %2031 = vmatprep.subr.bf16.mxu0 0
        %2032 = vmatpush1.bf16.msra.mxu0 %v1543
        %2033 = vmatprep.subr.bf16.mxu0 0
        %2034 = vmatpush1.bf16.msra.mxu0 %v1542
        %2035 = vmatprep.subr.bf16.mxu0 0
        %2036 = vmatpush1.bf16.msra.mxu0 %v1541
        %2037 = vmatprep.subr.bf16.mxu0 0
        %2038 = vmatpush1.bf16.msra.mxu0 %v1540
        %2039 = vmatprep.subr.bf16.mxu0 0
        %2040 = vmatpush2.bf16.msra.mxu0 0
        %2041 = vmatprep.subr.bf16.mxu0 0
        %2042 = vmatpush2.bf16.msra.mxu0 0
        %2043 = vmatprep.subr.bf16.mxu0 0
        %2044 = vmatpush2.bf16.msra.mxu0 0
        %2045 = vmatprep.subr.bf16.mxu0 0
        %2046 = vmatpush2.bf16.msra.mxu0 0
        %2047 = vmatprep.subr.bf16.mxu0 0
        %2048 = vmatpush2.bf16.msra.mxu0 0
        %2049 = vmatprep.subr.bf16.mxu0 0
        %2050 = vmatpush2.bf16.msra.mxu0 0
        %2051 = vmatprep.subr.bf16.mxu0 0
        %2052 = vmatpush2.bf16.msra.mxu0 0
        %2053 = vmatprep.subr.bf16.mxu0 0
        %2054 = vmatpush2.bf16.msra.mxu0 0
        %2055 = vmatprep.mubr.bf16.mxu0 0
        %2056 = vmatmul.mubr.bf16.gmra.mxu0 %v1152
        %v2057 = vpop.f32.mrf.mxu0
        %v2058 = vadd.f32 0.0, %v2057
        %v2059 = vpop.f32.mrf.mxu0
        %v2060 = vpop.f32.mrf.mxu0
        %v2061 = vpop.f32.mrf.mxu0
        %2062 = vdwg.mxu0
        %v2063 = vadd.f32 %v2022, %v2058
        %2064 = vmatprep.subr.bf16.mxu0 0
        %2065 = vmatpush1.bf16.msra.mxu0 %v1636
        %2066 = vmatprep.subr.bf16.mxu0 0
        %2067 = vmatpush1.bf16.msra.mxu0 %v1635
        %2068 = vmatprep.subr.bf16.mxu0 0
        %2069 = vmatpush1.bf16.msra.mxu0 %v1634
        %2070 = vmatprep.subr.bf16.mxu0 0
        %2071 = vmatpush1.bf16.msra.mxu0 %v1633
        %2072 = vmatprep.subr.bf16.mxu0 0
        %2073 = vmatpush1.bf16.msra.mxu0 %v1632
        %2074 = vmatprep.subr.bf16.mxu0 0
        %2075 = vmatpush1.bf16.msra.mxu0 %v1631
        %2076 = vmatprep.subr.bf16.mxu0 0
        %2077 = vmatpush1.bf16.msra.mxu0 %v1630
        %2078 = vmatprep.subr.bf16.mxu0 0
        %2079 = vmatpush1.bf16.msra.mxu0 %v1629
        %2080 = vmatprep.subr.bf16.mxu0 0
        %2081 = vmatpush2.bf16.msra.mxu0 0
        %2082 = vmatprep.subr.bf16.mxu0 0
        %2083 = vmatpush2.bf16.msra.mxu0 0
        %2084 = vmatprep.subr.bf16.mxu0 0
        %2085 = vmatpush2.bf16.msra.mxu0 0
        %2086 = vmatprep.subr.bf16.mxu0 0
        %2087 = vmatpush2.bf16.msra.mxu0 0
        %2088 = vmatprep.subr.bf16.mxu0 0
        %2089 = vmatpush2.bf16.msra.mxu0 0
        %2090 = vmatprep.subr.bf16.mxu0 0
        %2091 = vmatpush2.bf16.msra.mxu0 0
        %2092 = vmatprep.subr.bf16.mxu0 0
        %2093 = vmatpush2.bf16.msra.mxu0 0
        %2094 = vmatprep.subr.bf16.mxu0 0
        %2095 = vmatpush2.bf16.msra.mxu0 0
        %2096 = vmatprep.mubr.bf16.mxu0 0
        %2097 = vmatmul.mubr.bf16.gmra.mxu0 %v1858
        %v2098 = vpop.f32.mrf.mxu0
        %v2099 = vadd.f32 0.0, %v2098
        %v2100 = vpop.f32.mrf.mxu0
        %v2101 = vpop.f32.mrf.mxu0
        %v2102 = vpop.f32.mrf.mxu0
        %2103 = vdwg.mxu0
        %v2104 = vadd.f32 %v2063, %v2099
        %v2105 = vmax.f32 %v1901, %v2104
        %v2106 = vld [vmem:[%s2] sm:$0x1]
        %v2108 = vlaneseq
        %v2109 = vshrl.u32 %v2108, 7
        %v2110 = vsub.s32 0, %v2109
        %v2111 = vrot.slane %v2106, %v2110
        %v2113 = vadd.f32 %v2105, %v2111
        %v2114 = vmax.f32 %v2113, 0.0
        %v2115 = vpack.c.bf16 %v2114, %v2114
        %2116 = vmatprep.subr.bf16.mxu0 0
        %2117 = vmatpush1.bf16.msra.mxu0 %v828
        %2118 = vmatprep.subr.bf16.mxu0 0
        %2119 = vmatpush1.bf16.msra.mxu0 %v827
        %2120 = vmatprep.subr.bf16.mxu0 0
        %2121 = vmatpush1.bf16.msra.mxu0 %v826
        %2122 = vmatprep.subr.bf16.mxu0 0
        %2123 = vmatpush1.bf16.msra.mxu0 %v825
        %2124 = vmatprep.subr.bf16.mxu0 0
        %2125 = vmatpush1.bf16.msra.mxu0 %v824
        %2126 = vmatprep.subr.bf16.mxu0 0
        %2127 = vmatpush1.bf16.msra.mxu0 %v823
        %2128 = vmatprep.subr.bf16.mxu0 0
        %2129 = vmatpush1.bf16.msra.mxu0 %v822
        %2130 = vmatprep.subr.bf16.mxu0 0
        %2131 = vmatpush1.bf16.msra.mxu0 %v821
        %2132 = vmatprep.subr.bf16.mxu0 0
        %2133 = vmatpush2.bf16.msra.mxu0 0
        %2134 = vmatprep.subr.bf16.mxu0 0
        %2135 = vmatpush2.bf16.msra.mxu0 0
        %2136 = vmatprep.subr.bf16.mxu0 0
        %2137 = vmatpush2.bf16.msra.mxu0 0
        %2138 = vmatprep.subr.bf16.mxu0 0
        %2139 = vmatpush2.bf16.msra.mxu0 0
        %2140 = vmatprep.subr.bf16.mxu0 0
        %2141 = vmatpush2.bf16.msra.mxu0 0
        %2142 = vmatprep.subr.bf16.mxu0 0
        %2143 = vmatpush2.bf16.msra.mxu0 0
        %2144 = vmatprep.subr.bf16.mxu0 0
        %2145 = vmatpush2.bf16.msra.mxu0 0
        %2146 = vmatprep.subr.bf16.mxu0 0
        %2147 = vmatpush2.bf16.msra.mxu0 0
        %2148 = vmatprep.mubr.bf16.mxu0 0
        %2149 = vmatmul.mubr.bf16.gmra.mxu0 %v388
        %v2150 = vpop.f32.mrf.mxu0
        %v2151 = vadd.f32 0.0, %v2150
        %v2152 = vpop.f32.mrf.mxu0
        %v2153 = vpop.f32.mrf.mxu0
        %v2154 = vpop.f32.mrf.mxu0
        %2155 = vdwg.mxu0
        %2156 = vmatprep.subr.bf16.mxu0 0
        %2157 = vmatpush1.bf16.msra.mxu0 %v916
        %2158 = vmatprep.subr.bf16.mxu0 0
        %2159 = vmatpush1.bf16.msra.mxu0 %v915
        %2160 = vmatprep.subr.bf16.mxu0 0
        %2161 = vmatpush1.bf16.msra.mxu0 %v914
        %2162 = vmatprep.subr.bf16.mxu0 0
        %2163 = vmatpush1.bf16.msra.mxu0 %v913
        %2164 = vmatprep.subr.bf16.mxu0 0
        %2165 = vmatpush1.bf16.msra.mxu0 %v912
        %2166 = vmatprep.subr.bf16.mxu0 0
        %2167 = vmatpush1.bf16.msra.mxu0 %v911
        %2168 = vmatprep.subr.bf16.mxu0 0
        %2169 = vmatpush1.bf16.msra.mxu0 %v910
        %2170 = vmatprep.subr.bf16.mxu0 0
        %2171 = vmatpush1.bf16.msra.mxu0 %v909
        %2172 = vmatprep.subr.bf16.mxu0 0
        %2173 = vmatpush2.bf16.msra.mxu0 0
        %2174 = vmatprep.subr.bf16.mxu0 0
        %2175 = vmatpush2.bf16.msra.mxu0 0
        %2176 = vmatprep.subr.bf16.mxu0 0
        %2177 = vmatpush2.bf16.msra.mxu0 0
        %2178 = vmatprep.subr.bf16.mxu0 0
        %2179 = vmatpush2.bf16.msra.mxu0 0
        %2180 = vmatprep.subr.bf16.mxu0 0
        %2181 = vmatpush2.bf16.msra.mxu0 0
        %2182 = vmatprep.subr.bf16.mxu0 0
        %2183 = vmatpush2.bf16.msra.mxu0 0
        %2184 = vmatprep.subr.bf16.mxu0 0
        %2185 = vmatpush2.bf16.msra.mxu0 0
        %2186 = vmatprep.subr.bf16.mxu0 0
        %2187 = vmatpush2.bf16.msra.mxu0 0
        %2188 = vmatprep.mubr.bf16.mxu0 0
        %2189 = vmatmul.mubr.bf16.gmra.mxu0 %v387
        %v2190 = vpop.f32.mrf.mxu0
        %v2191 = vadd.f32 %v2151, %v2190
        %v2192 = vpop.f32.mrf.mxu0
        %v2193 = vpop.f32.mrf.mxu0
        %v2194 = vpop.f32.mrf.mxu0
        %2195 = vdwg.mxu0
        %2196 = vmatprep.subr.bf16.mxu0 0
        %2197 = vmatpush1.bf16.msra.mxu0 %v1004
        %2198 = vmatprep.subr.bf16.mxu0 0
        %2199 = vmatpush1.bf16.msra.mxu0 %v1003
        %2200 = vmatprep.subr.bf16.mxu0 0
        %2201 = vmatpush1.bf16.msra.mxu0 %v1002
        %2202 = vmatprep.subr.bf16.mxu0 0
        %2203 = vmatpush1.bf16.msra.mxu0 %v1001
        %2204 = vmatprep.subr.bf16.mxu0 0
        %2205 = vmatpush1.bf16.msra.mxu0 %v1000
        %2206 = vmatprep.subr.bf16.mxu0 0
        %2207 = vmatpush1.bf16.msra.mxu0 %v999
        %2208 = vmatprep.subr.bf16.mxu0 0
        %2209 = vmatpush1.bf16.msra.mxu0 %v998
        %2210 = vmatprep.subr.bf16.mxu0 0
        %2211 = vmatpush1.bf16.msra.mxu0 %v997
        %2212 = vmatprep.subr.bf16.mxu0 0
        %2213 = vmatpush2.bf16.msra.mxu0 0
        %2214 = vmatprep.subr.bf16.mxu0 0
        %2215 = vmatpush2.bf16.msra.mxu0 0
        %2216 = vmatprep.subr.bf16.mxu0 0
        %2217 = vmatpush2.bf16.msra.mxu0 0
        %2218 = vmatprep.subr.bf16.mxu0 0
        %2219 = vmatpush2.bf16.msra.mxu0 0
        %2220 = vmatprep.subr.bf16.mxu0 0
        %2221 = vmatpush2.bf16.msra.mxu0 0
        %2222 = vmatprep.subr.bf16.mxu0 0
        %2223 = vmatpush2.bf16.msra.mxu0 0
        %2224 = vmatprep.subr.bf16.mxu0 0
        %2225 = vmatpush2.bf16.msra.mxu0 0
        %2226 = vmatprep.subr.bf16.mxu0 0
        %2227 = vmatpush2.bf16.msra.mxu0 0
        %2228 = vmatprep.mubr.bf16.mxu0 0
        %2229 = vmatmul.mubr.bf16.gmra.mxu0 %v1152
        %v2230 = vpop.f32.mrf.mxu0
        %v2231 = vadd.f32 0.0, %v2230
        %v2232 = vpop.f32.mrf.mxu0
        %v2233 = vpop.f32.mrf.mxu0
        %v2234 = vpop.f32.mrf.mxu0
        %2235 = vdwg.mxu0
        %v2236 = vadd.f32 %v2191, %v2231
        %2237 = vmatprep.subr.bf16.mxu0 0
        %2238 = vmatpush1.bf16.msra.mxu0 %v1093
        %2239 = vmatprep.subr.bf16.mxu0 0
        %2240 = vmatpush1.bf16.msra.mxu0 %v1092
        %2241 = vmatprep.subr.bf16.mxu0 0
        %2242 = vmatpush1.bf16.msra.mxu0 %v1091
        %2243 = vmatprep.subr.bf16.mxu0 0
        %2244 = vmatpush1.bf16.msra.mxu0 %v1090
        %2245 = vmatprep.subr.bf16.mxu0 0
        %2246 = vmatpush1.bf16.msra.mxu0 %v1089
        %2247 = vmatprep.subr.bf16.mxu0 0
        %2248 = vmatpush1.bf16.msra.mxu0 %v1088
        %2249 = vmatprep.subr.bf16.mxu0 0
        %2250 = vmatpush1.bf16.msra.mxu0 %v1087
        %2251 = vmatprep.subr.bf16.mxu0 0
        %2252 = vmatpush1.bf16.msra.mxu0 %v1086
        %2253 = vmatprep.subr.bf16.mxu0 0
        %2254 = vmatpush2.bf16.msra.mxu0 0
        %2255 = vmatprep.subr.bf16.mxu0 0
        %2256 = vmatpush2.bf16.msra.mxu0 0
        %2257 = vmatprep.subr.bf16.mxu0 0
        %2258 = vmatpush2.bf16.msra.mxu0 0
        %2259 = vmatprep.subr.bf16.mxu0 0
        %2260 = vmatpush2.bf16.msra.mxu0 0
        %2261 = vmatprep.subr.bf16.mxu0 0
        %2262 = vmatpush2.bf16.msra.mxu0 0
        %2263 = vmatprep.subr.bf16.mxu0 0
        %2264 = vmatpush2.bf16.msra.mxu0 0
        %2265 = vmatprep.subr.bf16.mxu0 0
        %2266 = vmatpush2.bf16.msra.mxu0 0
        %2267 = vmatprep.subr.bf16.mxu0 0
        %2268 = vmatpush2.bf16.msra.mxu0 0
        %2269 = vmatprep.mubr.bf16.mxu0 0
        %2270 = vmatmul.mubr.bf16.gmra.mxu0 %v1858
        %v2271 = vpop.f32.mrf.mxu0
        %v2272 = vadd.f32 0.0, %v2271
        %v2273 = vpop.f32.mrf.mxu0
        %v2274 = vpop.f32.mrf.mxu0
        %v2275 = vpop.f32.mrf.mxu0
        %2276 = vdwg.mxu0
        %v2277 = vadd.f32 %v2236, %v2272
        %v2279 = vunpack.c.l.b16 %v387
        %v2280 = vpack.c.b16 %v2279, %v2279
        %v2282 = vshrl.u32 %v2280, 16
        %v2284 = vshll.u32 %v2280, 16
        %v2286 = vrot.slane %v2284, 1
        %v2287 = vor.u32 %v2282, %v2286
        %2289 = vmatprep.subr.bf16.mxu0 0
        %2290 = vmatpush1.bf16.msra.mxu0 %v1193
        %2291 = vmatprep.subr.bf16.mxu0 0
        %2292 = vmatpush1.bf16.msra.mxu0 %v1192
        %2293 = vmatprep.subr.bf16.mxu0 0
        %2294 = vmatpush1.bf16.msra.mxu0 %v1191
        %2295 = vmatprep.subr.bf16.mxu0 0
        %2296 = vmatpush1.bf16.msra.mxu0 %v1190
        %2297 = vmatprep.subr.bf16.mxu0 0
        %2298 = vmatpush1.bf16.msra.mxu0 %v1189
        %2299 = vmatprep.subr.bf16.mxu0 0
        %2300 = vmatpush1.bf16.msra.mxu0 %v1188
        %2301 = vmatprep.subr.bf16.mxu0 0
        %2302 = vmatpush1.bf16.msra.mxu0 %v1187
        %2303 = vmatprep.subr.bf16.mxu0 0
        %2304 = vmatpush1.bf16.msra.mxu0 %v1186
        %2305 = vmatprep.subr.bf16.mxu0 0
        %2306 = vmatpush2.bf16.msra.mxu0 0
        %2307 = vmatprep.subr.bf16.mxu0 0
        %2308 = vmatpush2.bf16.msra.mxu0 0
        %2309 = vmatprep.subr.bf16.mxu0 0
        %2310 = vmatpush2.bf16.msra.mxu0 0
        %2311 = vmatprep.subr.bf16.mxu0 0
        %2312 = vmatpush2.bf16.msra.mxu0 0
        %2313 = vmatprep.subr.bf16.mxu0 0
        %2314 = vmatpush2.bf16.msra.mxu0 0
        %2315 = vmatprep.subr.bf16.mxu0 0
        %2316 = vmatpush2.bf16.msra.mxu0 0
        %2317 = vmatprep.subr.bf16.mxu0 0
        %2318 = vmatpush2.bf16.msra.mxu0 0
        %2319 = vmatprep.subr.bf16.mxu0 0
        %2320 = vmatpush2.bf16.msra.mxu0 0
        %2321 = vmatprep.mubr.bf16.mxu0 0
        %2322 = vmatmul.mubr.bf16.gmra.mxu0 %v2287
        %v2323 = vpop.f32.mrf.mxu0
        %v2324 = vadd.f32 0.0, %v2323
        %v2325 = vpop.f32.mrf.mxu0
        %v2326 = vpop.f32.mrf.mxu0
        %v2327 = vpop.f32.mrf.mxu0
        %2328 = vdwg.mxu0
        %v2329 = vadd.f32 %v2277, %v2324
        %2330 = vmatprep.subr.bf16.mxu0 0
        %2331 = vmatpush1.bf16.msra.mxu0 %v1282
        %2332 = vmatprep.subr.bf16.mxu0 0
        %2333 = vmatpush1.bf16.msra.mxu0 %v1281
        %2334 = vmatprep.subr.bf16.mxu0 0
        %2335 = vmatpush1.bf16.msra.mxu0 %v1280
        %2336 = vmatprep.subr.bf16.mxu0 0
        %2337 = vmatpush1.bf16.msra.mxu0 %v1279
        %2338 = vmatprep.subr.bf16.mxu0 0
        %2339 = vmatpush1.bf16.msra.mxu0 %v1278
        %2340 = vmatprep.subr.bf16.mxu0 0
        %2341 = vmatpush1.bf16.msra.mxu0 %v1277
        %2342 = vmatprep.subr.bf16.mxu0 0
        %2343 = vmatpush1.bf16.msra.mxu0 %v1276
        %2344 = vmatprep.subr.bf16.mxu0 0
        %2345 = vmatpush1.bf16.msra.mxu0 %v1275
        %2346 = vmatprep.subr.bf16.mxu0 0
        %2347 = vmatpush2.bf16.msra.mxu0 0
        %2348 = vmatprep.subr.bf16.mxu0 0
        %2349 = vmatpush2.bf16.msra.mxu0 0
        %2350 = vmatprep.subr.bf16.mxu0 0
        %2351 = vmatpush2.bf16.msra.mxu0 0
        %2352 = vmatprep.subr.bf16.mxu0 0
        %2353 = vmatpush2.bf16.msra.mxu0 0
        %2354 = vmatprep.subr.bf16.mxu0 0
        %2355 = vmatpush2.bf16.msra.mxu0 0
        %2356 = vmatprep.subr.bf16.mxu0 0
        %2357 = vmatpush2.bf16.msra.mxu0 0
        %2358 = vmatprep.subr.bf16.mxu0 0
        %2359 = vmatpush2.bf16.msra.mxu0 0
        %2360 = vmatprep.subr.bf16.mxu0 0
        %2361 = vmatpush2.bf16.msra.mxu0 0
        %2362 = vmatprep.mubr.bf16.mxu0 0
        %2363 = vmatmul.mubr.bf16.gmra.mxu0 %v388
        %v2364 = vpop.f32.mrf.mxu0
        %v2365 = vadd.f32 0.0, %v2364
        %v2366 = vpop.f32.mrf.mxu0
        %v2367 = vpop.f32.mrf.mxu0
        %v2368 = vpop.f32.mrf.mxu0
        %2369 = vdwg.mxu0
        %2370 = vmatprep.subr.bf16.mxu0 0
        %2371 = vmatpush1.bf16.msra.mxu0 %v1370
        %2372 = vmatprep.subr.bf16.mxu0 0
        %2373 = vmatpush1.bf16.msra.mxu0 %v1369
        %2374 = vmatprep.subr.bf16.mxu0 0
        %2375 = vmatpush1.bf16.msra.mxu0 %v1368
        %2376 = vmatprep.subr.bf16.mxu0 0
        %2377 = vmatpush1.bf16.msra.mxu0 %v1367
        %2378 = vmatprep.subr.bf16.mxu0 0
        %2379 = vmatpush1.bf16.msra.mxu0 %v1366
        %2380 = vmatprep.subr.bf16.mxu0 0
        %2381 = vmatpush1.bf16.msra.mxu0 %v1365
        %2382 = vmatprep.subr.bf16.mxu0 0
        %2383 = vmatpush1.bf16.msra.mxu0 %v1364
        %2384 = vmatprep.subr.bf16.mxu0 0
        %2385 = vmatpush1.bf16.msra.mxu0 %v1363
        %2386 = vmatprep.subr.bf16.mxu0 0
        %2387 = vmatpush2.bf16.msra.mxu0 0
        %2388 = vmatprep.subr.bf16.mxu0 0
        %2389 = vmatpush2.bf16.msra.mxu0 0
        %2390 = vmatprep.subr.bf16.mxu0 0
        %2391 = vmatpush2.bf16.msra.mxu0 0
        %2392 = vmatprep.subr.bf16.mxu0 0
        %2393 = vmatpush2.bf16.msra.mxu0 0
        %2394 = vmatprep.subr.bf16.mxu0 0
        %2395 = vmatpush2.bf16.msra.mxu0 0
        %2396 = vmatprep.subr.bf16.mxu0 0
        %2397 = vmatpush2.bf16.msra.mxu0 0
        %2398 = vmatprep.subr.bf16.mxu0 0
        %2399 = vmatpush2.bf16.msra.mxu0 0
        %2400 = vmatprep.subr.bf16.mxu0 0
        %2401 = vmatpush2.bf16.msra.mxu0 0
        %2402 = vmatprep.mubr.bf16.mxu0 0
        %2403 = vmatmul.mubr.bf16.gmra.mxu0 %v387
        %v2404 = vpop.f32.mrf.mxu0
        %v2405 = vadd.f32 %v2365, %v2404
        %v2406 = vpop.f32.mrf.mxu0
        %v2407 = vpop.f32.mrf.mxu0
        %v2408 = vpop.f32.mrf.mxu0
        %2409 = vdwg.mxu0
        %2410 = vmatprep.subr.bf16.mxu0 0
        %2411 = vmatpush1.bf16.msra.mxu0 %v1458
        %2412 = vmatprep.subr.bf16.mxu0 0
        %2413 = vmatpush1.bf16.msra.mxu0 %v1457
        %2414 = vmatprep.subr.bf16.mxu0 0
        %2415 = vmatpush1.bf16.msra.mxu0 %v1456
        %2416 = vmatprep.subr.bf16.mxu0 0
        %2417 = vmatpush1.bf16.msra.mxu0 %v1455
        %2418 = vmatprep.subr.bf16.mxu0 0
        %2419 = vmatpush1.bf16.msra.mxu0 %v1454
        %2420 = vmatprep.subr.bf16.mxu0 0
        %2421 = vmatpush1.bf16.msra.mxu0 %v1453
        %2422 = vmatprep.subr.bf16.mxu0 0
        %2423 = vmatpush1.bf16.msra.mxu0 %v1452
        %2424 = vmatprep.subr.bf16.mxu0 0
        %2425 = vmatpush1.bf16.msra.mxu0 %v1451
        %2426 = vmatprep.subr.bf16.mxu0 0
        %2427 = vmatpush2.bf16.msra.mxu0 0
        %2428 = vmatprep.subr.bf16.mxu0 0
        %2429 = vmatpush2.bf16.msra.mxu0 0
        %2430 = vmatprep.subr.bf16.mxu0 0
        %2431 = vmatpush2.bf16.msra.mxu0 0
        %2432 = vmatprep.subr.bf16.mxu0 0
        %2433 = vmatpush2.bf16.msra.mxu0 0
        %2434 = vmatprep.subr.bf16.mxu0 0
        %2435 = vmatpush2.bf16.msra.mxu0 0
        %2436 = vmatprep.subr.bf16.mxu0 0
        %2437 = vmatpush2.bf16.msra.mxu0 0
        %2438 = vmatprep.subr.bf16.mxu0 0
        %2439 = vmatpush2.bf16.msra.mxu0 0
        %2440 = vmatprep.subr.bf16.mxu0 0
        %2441 = vmatpush2.bf16.msra.mxu0 0
        %2442 = vmatprep.mubr.bf16.mxu0 0
        %2443 = vmatmul.mubr.bf16.gmra.mxu0 %v1152
        %v2444 = vpop.f32.mrf.mxu0
        %v2445 = vadd.f32 0.0, %v2444
        %v2446 = vpop.f32.mrf.mxu0
        %v2447 = vpop.f32.mrf.mxu0
        %v2448 = vpop.f32.mrf.mxu0
        %2449 = vdwg.mxu0
        %v2450 = vadd.f32 %v2405, %v2445
        %2451 = vmatprep.subr.bf16.mxu0 0
        %2452 = vmatpush1.bf16.msra.mxu0 %v1547
        %2453 = vmatprep.subr.bf16.mxu0 0
        %2454 = vmatpush1.bf16.msra.mxu0 %v1546
        %2455 = vmatprep.subr.bf16.mxu0 0
        %2456 = vmatpush1.bf16.msra.mxu0 %v1545
        %2457 = vmatprep.subr.bf16.mxu0 0
        %2458 = vmatpush1.bf16.msra.mxu0 %v1544
        %2459 = vmatprep.subr.bf16.mxu0 0
        %2460 = vmatpush1.bf16.msra.mxu0 %v1543
        %2461 = vmatprep.subr.bf16.mxu0 0
        %2462 = vmatpush1.bf16.msra.mxu0 %v1542
        %2463 = vmatprep.subr.bf16.mxu0 0
        %2464 = vmatpush1.bf16.msra.mxu0 %v1541
        %2465 = vmatprep.subr.bf16.mxu0 0
        %2466 = vmatpush1.bf16.msra.mxu0 %v1540
        %2467 = vmatprep.subr.bf16.mxu0 0
        %2468 = vmatpush2.bf16.msra.mxu0 0
        %2469 = vmatprep.subr.bf16.mxu0 0
        %2470 = vmatpush2.bf16.msra.mxu0 0
        %2471 = vmatprep.subr.bf16.mxu0 0
        %2472 = vmatpush2.bf16.msra.mxu0 0
        %2473 = vmatprep.subr.bf16.mxu0 0
        %2474 = vmatpush2.bf16.msra.mxu0 0
        %2475 = vmatprep.subr.bf16.mxu0 0
        %2476 = vmatpush2.bf16.msra.mxu0 0
        %2477 = vmatprep.subr.bf16.mxu0 0
        %2478 = vmatpush2.bf16.msra.mxu0 0
        %2479 = vmatprep.subr.bf16.mxu0 0
        %2480 = vmatpush2.bf16.msra.mxu0 0
        %2481 = vmatprep.subr.bf16.mxu0 0
        %2482 = vmatpush2.bf16.msra.mxu0 0
        %2483 = vmatprep.mubr.bf16.mxu0 0
        %2484 = vmatmul.mubr.bf16.gmra.mxu0 %v1858
        %v2485 = vpop.f32.mrf.mxu0
        %v2486 = vadd.f32 0.0, %v2485
        %v2487 = vpop.f32.mrf.mxu0
        %v2488 = vpop.f32.mrf.mxu0
        %v2489 = vpop.f32.mrf.mxu0
        %2490 = vdwg.mxu0
        %v2491 = vadd.f32 %v2450, %v2486
        %2492 = vmatprep.subr.bf16.mxu0 0
        %2493 = vmatpush1.bf16.msra.mxu0 %v1636
        %2494 = vmatprep.subr.bf16.mxu0 0
        %2495 = vmatpush1.bf16.msra.mxu0 %v1635
        %2496 = vmatprep.subr.bf16.mxu0 0
        %2497 = vmatpush1.bf16.msra.mxu0 %v1634
        %2498 = vmatprep.subr.bf16.mxu0 0
        %2499 = vmatpush1.bf16.msra.mxu0 %v1633
        %2500 = vmatprep.subr.bf16.mxu0 0
        %2501 = vmatpush1.bf16.msra.mxu0 %v1632
        %2502 = vmatprep.subr.bf16.mxu0 0
        %2503 = vmatpush1.bf16.msra.mxu0 %v1631
        %2504 = vmatprep.subr.bf16.mxu0 0
        %2505 = vmatpush1.bf16.msra.mxu0 %v1630
        %2506 = vmatprep.subr.bf16.mxu0 0
        %2507 = vmatpush1.bf16.msra.mxu0 %v1629
        %2508 = vmatprep.subr.bf16.mxu0 0
        %2509 = vmatpush2.bf16.msra.mxu0 0
        %2510 = vmatprep.subr.bf16.mxu0 0
        %2511 = vmatpush2.bf16.msra.mxu0 0
        %2512 = vmatprep.subr.bf16.mxu0 0
        %2513 = vmatpush2.bf16.msra.mxu0 0
        %2514 = vmatprep.subr.bf16.mxu0 0
        %2515 = vmatpush2.bf16.msra.mxu0 0
        %2516 = vmatprep.subr.bf16.mxu0 0
        %2517 = vmatpush2.bf16.msra.mxu0 0
        %2518 = vmatprep.subr.bf16.mxu0 0
        %2519 = vmatpush2.bf16.msra.mxu0 0
        %2520 = vmatprep.subr.bf16.mxu0 0
        %2521 = vmatpush2.bf16.msra.mxu0 0
        %2522 = vmatprep.subr.bf16.mxu0 0
        %2523 = vmatpush2.bf16.msra.mxu0 0
        %2524 = vmatprep.mubr.bf16.mxu0 0
        %2525 = vmatmul.mubr.bf16.gmra.mxu0 %v2287
        %v2526 = vpop.f32.mrf.mxu0
        %v2527 = vadd.f32 0.0, %v2526
        %v2528 = vpop.f32.mrf.mxu0
        %v2529 = vpop.f32.mrf.mxu0
        %v2530 = vpop.f32.mrf.mxu0
        %2531 = vdwg.mxu0
        %v2532 = vadd.f32 %v2491, %v2527
        %v2533 = vmax.f32 %v2329, %v2532
        %2534 = vmatprep.subr.bf16.mxu0 0
        %2535 = vmatpush1.bf16.msra.mxu0 %v828
        %2536 = vmatprep.subr.bf16.mxu0 0
        %2537 = vmatpush1.bf16.msra.mxu0 %v827
        %2538 = vmatprep.subr.bf16.mxu0 0
        %2539 = vmatpush1.bf16.msra.mxu0 %v826
        %2540 = vmatprep.subr.bf16.mxu0 0
        %2541 = vmatpush1.bf16.msra.mxu0 %v825
        %2542 = vmatprep.subr.bf16.mxu0 0
        %2543 = vmatpush1.bf16.msra.mxu0 %v824
        %2544 = vmatprep.subr.bf16.mxu0 0
        %2545 = vmatpush1.bf16.msra.mxu0 %v823
        %2546 = vmatprep.subr.bf16.mxu0 0
        %2547 = vmatpush1.bf16.msra.mxu0 %v822
        %2548 = vmatprep.subr.bf16.mxu0 0
        %2549 = vmatpush1.bf16.msra.mxu0 %v821
        %2550 = vmatprep.subr.bf16.mxu0 0
        %2551 = vmatpush2.bf16.msra.mxu0 0
        %2552 = vmatprep.subr.bf16.mxu0 0
        %2553 = vmatpush2.bf16.msra.mxu0 0
        %2554 = vmatprep.subr.bf16.mxu0 0
        %2555 = vmatpush2.bf16.msra.mxu0 0
        %2556 = vmatprep.subr.bf16.mxu0 0
        %2557 = vmatpush2.bf16.msra.mxu0 0
        %2558 = vmatprep.subr.bf16.mxu0 0
        %2559 = vmatpush2.bf16.msra.mxu0 0
        %2560 = vmatprep.subr.bf16.mxu0 0
        %2561 = vmatpush2.bf16.msra.mxu0 0
        %2562 = vmatprep.subr.bf16.mxu0 0
        %2563 = vmatpush2.bf16.msra.mxu0 0
        %2564 = vmatprep.subr.bf16.mxu0 0
        %2565 = vmatpush2.bf16.msra.mxu0 0
        %2566 = vmatprep.mubr.bf16.mxu0 0
        %2567 = vmatmul.mubr.bf16.gmra.mxu0 %v1152
        %v2568 = vpop.f32.mrf.mxu0
        %v2569 = vadd.f32 0.0, %v2568
        %v2570 = vpop.f32.mrf.mxu0
        %v2571 = vpop.f32.mrf.mxu0
        %v2572 = vpop.f32.mrf.mxu0
        %2573 = vdwg.mxu0
        %2574 = vmatprep.subr.bf16.mxu0 0
        %2575 = vmatpush1.bf16.msra.mxu0 %v916
        %2576 = vmatprep.subr.bf16.mxu0 0
        %2577 = vmatpush1.bf16.msra.mxu0 %v915
        %2578 = vmatprep.subr.bf16.mxu0 0
        %2579 = vmatpush1.bf16.msra.mxu0 %v914
        %2580 = vmatprep.subr.bf16.mxu0 0
        %2581 = vmatpush1.bf16.msra.mxu0 %v913
        %2582 = vmatprep.subr.bf16.mxu0 0
        %2583 = vmatpush1.bf16.msra.mxu0 %v912
        %2584 = vmatprep.subr.bf16.mxu0 0
        %2585 = vmatpush1.bf16.msra.mxu0 %v911
        %2586 = vmatprep.subr.bf16.mxu0 0
        %2587 = vmatpush1.bf16.msra.mxu0 %v910
        %2588 = vmatprep.subr.bf16.mxu0 0
        %2589 = vmatpush1.bf16.msra.mxu0 %v909
        %2590 = vmatprep.subr.bf16.mxu0 0
        %2591 = vmatpush2.bf16.msra.mxu0 0
        %2592 = vmatprep.subr.bf16.mxu0 0
        %2593 = vmatpush2.bf16.msra.mxu0 0
        %2594 = vmatprep.subr.bf16.mxu0 0
        %2595 = vmatpush2.bf16.msra.mxu0 0
        %2596 = vmatprep.subr.bf16.mxu0 0
        %2597 = vmatpush2.bf16.msra.mxu0 0
        %2598 = vmatprep.subr.bf16.mxu0 0
        %2599 = vmatpush2.bf16.msra.mxu0 0
        %2600 = vmatprep.subr.bf16.mxu0 0
        %2601 = vmatpush2.bf16.msra.mxu0 0
        %2602 = vmatprep.subr.bf16.mxu0 0
        %2603 = vmatpush2.bf16.msra.mxu0 0
        %2604 = vmatprep.subr.bf16.mxu0 0
        %2605 = vmatpush2.bf16.msra.mxu0 0
        %2606 = vmatprep.mubr.bf16.mxu0 0
        %2607 = vmatmul.mubr.bf16.gmra.mxu0 %v388
        %v2608 = vpop.f32.mrf.mxu0
        %v2609 = vadd.f32 %v2569, %v2608
        %v2610 = vpop.f32.mrf.mxu0
        %v2611 = vpop.f32.mrf.mxu0
        %v2612 = vpop.f32.mrf.mxu0
        %2613 = vdwg.mxu0
        %2614 = vmatprep.subr.bf16.mxu0 0
        %2615 = vmatpush1.bf16.msra.mxu0 %v1004
        %2616 = vmatprep.subr.bf16.mxu0 0
        %2617 = vmatpush1.bf16.msra.mxu0 %v1003
        %2618 = vmatprep.subr.bf16.mxu0 0
        %2619 = vmatpush1.bf16.msra.mxu0 %v1002
        %2620 = vmatprep.subr.bf16.mxu0 0
        %2621 = vmatpush1.bf16.msra.mxu0 %v1001
        %2622 = vmatprep.subr.bf16.mxu0 0
        %2623 = vmatpush1.bf16.msra.mxu0 %v1000
        %2624 = vmatprep.subr.bf16.mxu0 0
        %2625 = vmatpush1.bf16.msra.mxu0 %v999
        %2626 = vmatprep.subr.bf16.mxu0 0
        %2627 = vmatpush1.bf16.msra.mxu0 %v998
        %2628 = vmatprep.subr.bf16.mxu0 0
        %2629 = vmatpush1.bf16.msra.mxu0 %v997
        %2630 = vmatprep.subr.bf16.mxu0 0
        %2631 = vmatpush2.bf16.msra.mxu0 0
        %2632 = vmatprep.subr.bf16.mxu0 0
        %2633 = vmatpush2.bf16.msra.mxu0 0
        %2634 = vmatprep.subr.bf16.mxu0 0
        %2635 = vmatpush2.bf16.msra.mxu0 0
        %2636 = vmatprep.subr.bf16.mxu0 0
        %2637 = vmatpush2.bf16.msra.mxu0 0
        %2638 = vmatprep.subr.bf16.mxu0 0
        %2639 = vmatpush2.bf16.msra.mxu0 0
        %2640 = vmatprep.subr.bf16.mxu0 0
        %2641 = vmatpush2.bf16.msra.mxu0 0
        %2642 = vmatprep.subr.bf16.mxu0 0
        %2643 = vmatpush2.bf16.msra.mxu0 0
        %2644 = vmatprep.subr.bf16.mxu0 0
        %2645 = vmatpush2.bf16.msra.mxu0 0
        %2646 = vmatprep.mubr.bf16.mxu0 0
        %2647 = vmatmul.mubr.bf16.gmra.mxu0 %v1858
        %v2648 = vpop.f32.mrf.mxu0
        %v2649 = vadd.f32 0.0, %v2648
        %v2650 = vpop.f32.mrf.mxu0
        %v2651 = vpop.f32.mrf.mxu0
        %v2652 = vpop.f32.mrf.mxu0
        %2653 = vdwg.mxu0
        %v2654 = vadd.f32 %v2609, %v2649
        %2655 = vmatprep.subr.bf16.mxu0 0
        %2656 = vmatpush1.bf16.msra.mxu0 %v1093
        %2657 = vmatprep.subr.bf16.mxu0 0
        %2658 = vmatpush1.bf16.msra.mxu0 %v1092
        %2659 = vmatprep.subr.bf16.mxu0 0
        %2660 = vmatpush1.bf16.msra.mxu0 %v1091
        %2661 = vmatprep.subr.bf16.mxu0 0
        %2662 = vmatpush1.bf16.msra.mxu0 %v1090
        %2663 = vmatprep.subr.bf16.mxu0 0
        %2664 = vmatpush1.bf16.msra.mxu0 %v1089
        %2665 = vmatprep.subr.bf16.mxu0 0
        %2666 = vmatpush1.bf16.msra.mxu0 %v1088
        %2667 = vmatprep.subr.bf16.mxu0 0
        %2668 = vmatpush1.bf16.msra.mxu0 %v1087
        %2669 = vmatprep.subr.bf16.mxu0 0
        %2670 = vmatpush1.bf16.msra.mxu0 %v1086
        %2671 = vmatprep.subr.bf16.mxu0 0
        %2672 = vmatpush2.bf16.msra.mxu0 0
        %2673 = vmatprep.subr.bf16.mxu0 0
        %2674 = vmatpush2.bf16.msra.mxu0 0
        %2675 = vmatprep.subr.bf16.mxu0 0
        %2676 = vmatpush2.bf16.msra.mxu0 0
        %2677 = vmatprep.subr.bf16.mxu0 0
        %2678 = vmatpush2.bf16.msra.mxu0 0
        %2679 = vmatprep.subr.bf16.mxu0 0
        %2680 = vmatpush2.bf16.msra.mxu0 0
        %2681 = vmatprep.subr.bf16.mxu0 0
        %2682 = vmatpush2.bf16.msra.mxu0 0
        %2683 = vmatprep.subr.bf16.mxu0 0
        %2684 = vmatpush2.bf16.msra.mxu0 0
        %2685 = vmatprep.subr.bf16.mxu0 0
        %2686 = vmatpush2.bf16.msra.mxu0 0
        %2687 = vmatprep.mubr.bf16.mxu0 0
        %2688 = vmatmul.mubr.bf16.gmra.mxu0 %v2287
        %v2689 = vpop.f32.mrf.mxu0
        %v2690 = vadd.f32 0.0, %v2689
        %v2691 = vpop.f32.mrf.mxu0
        %v2692 = vpop.f32.mrf.mxu0
        %v2693 = vpop.f32.mrf.mxu0
        %2694 = vdwg.mxu0
        %v2695 = vadd.f32 %v2654, %v2690
        %v2697 = vunpack.c.l.b16 %v388
        %v2698 = vpack.c.b16 %v2697, %v2697
        %v2700 = vshrl.u32 %v2698, 16
        %v2702 = vshll.u32 %v2698, 16
        %v2704 = vrot.slane %v2702, 1
        %v2705 = vor.u32 %v2700, %v2704
        %2707 = vmatprep.subr.bf16.mxu0 0
        %2708 = vmatpush1.bf16.msra.mxu0 %v1193
        %2709 = vmatprep.subr.bf16.mxu0 0
        %2710 = vmatpush1.bf16.msra.mxu0 %v1192
        %2711 = vmatprep.subr.bf16.mxu0 0
        %2712 = vmatpush1.bf16.msra.mxu0 %v1191
        %2713 = vmatprep.subr.bf16.mxu0 0
        %2714 = vmatpush1.bf16.msra.mxu0 %v1190
        %2715 = vmatprep.subr.bf16.mxu0 0
        %2716 = vmatpush1.bf16.msra.mxu0 %v1189
        %2717 = vmatprep.subr.bf16.mxu0 0
        %2718 = vmatpush1.bf16.msra.mxu0 %v1188
        %2719 = vmatprep.subr.bf16.mxu0 0
        %2720 = vmatpush1.bf16.msra.mxu0 %v1187
        %2721 = vmatprep.subr.bf16.mxu0 0
        %2722 = vmatpush1.bf16.msra.mxu0 %v1186
        %2723 = vmatprep.subr.bf16.mxu0 0
        %2724 = vmatpush2.bf16.msra.mxu0 0
        %2725 = vmatprep.subr.bf16.mxu0 0
        %2726 = vmatpush2.bf16.msra.mxu0 0
        %2727 = vmatprep.subr.bf16.mxu0 0
        %2728 = vmatpush2.bf16.msra.mxu0 0
        %2729 = vmatprep.subr.bf16.mxu0 0
        %2730 = vmatpush2.bf16.msra.mxu0 0
        %2731 = vmatprep.subr.bf16.mxu0 0
        %2732 = vmatpush2.bf16.msra.mxu0 0
        %2733 = vmatprep.subr.bf16.mxu0 0
        %2734 = vmatpush2.bf16.msra.mxu0 0
        %2735 = vmatprep.subr.bf16.mxu0 0
        %2736 = vmatpush2.bf16.msra.mxu0 0
        %2737 = vmatprep.subr.bf16.mxu0 0
        %2738 = vmatpush2.bf16.msra.mxu0 0
        %2739 = vmatprep.mubr.bf16.mxu0 0
        %2740 = vmatmul.mubr.bf16.gmra.mxu0 %v2705
        %v2741 = vpop.f32.mrf.mxu0
        %v2742 = vadd.f32 0.0, %v2741
        %v2743 = vpop.f32.mrf.mxu0
        %v2744 = vpop.f32.mrf.mxu0
        %v2745 = vpop.f32.mrf.mxu0
        %2746 = vdwg.mxu0
        %v2747 = vadd.f32 %v2695, %v2742
        %v2748 = vmax.f32 %v2533, %v2747
        %2749 = vmatprep.subr.bf16.mxu0 0
        %2750 = vmatpush1.bf16.msra.mxu0 %v1282
        %2751 = vmatprep.subr.bf16.mxu0 0
        %2752 = vmatpush1.bf16.msra.mxu0 %v1281
        %2753 = vmatprep.subr.bf16.mxu0 0
        %2754 = vmatpush1.bf16.msra.mxu0 %v1280
        %2755 = vmatprep.subr.bf16.mxu0 0
        %2756 = vmatpush1.bf16.msra.mxu0 %v1279
        %2757 = vmatprep.subr.bf16.mxu0 0
        %2758 = vmatpush1.bf16.msra.mxu0 %v1278
        %2759 = vmatprep.subr.bf16.mxu0 0
        %2760 = vmatpush1.bf16.msra.mxu0 %v1277
        %2761 = vmatprep.subr.bf16.mxu0 0
        %2762 = vmatpush1.bf16.msra.mxu0 %v1276
        %2763 = vmatprep.subr.bf16.mxu0 0
        %2764 = vmatpush1.bf16.msra.mxu0 %v1275
        %2765 = vmatprep.subr.bf16.mxu0 0
        %2766 = vmatpush2.bf16.msra.mxu0 0
        %2767 = vmatprep.subr.bf16.mxu0 0
        %2768 = vmatpush2.bf16.msra.mxu0 0
        %2769 = vmatprep.subr.bf16.mxu0 0
        %2770 = vmatpush2.bf16.msra.mxu0 0
        %2771 = vmatprep.subr.bf16.mxu0 0
        %2772 = vmatpush2.bf16.msra.mxu0 0
        %2773 = vmatprep.subr.bf16.mxu0 0
        %2774 = vmatpush2.bf16.msra.mxu0 0
        %2775 = vmatprep.subr.bf16.mxu0 0
        %2776 = vmatpush2.bf16.msra.mxu0 0
        %2777 = vmatprep.subr.bf16.mxu0 0
        %2778 = vmatpush2.bf16.msra.mxu0 0
        %2779 = vmatprep.subr.bf16.mxu0 0
        %2780 = vmatpush2.bf16.msra.mxu0 0
        %2781 = vmatprep.mubr.bf16.mxu0 0
        %2782 = vmatmul.mubr.bf16.gmra.mxu0 %v1152
        %v2783 = vpop.f32.mrf.mxu0
        %v2784 = vadd.f32 0.0, %v2783
        %v2785 = vpop.f32.mrf.mxu0
        %v2786 = vpop.f32.mrf.mxu0
        %v2787 = vpop.f32.mrf.mxu0
        %2788 = vdwg.mxu0
        %2789 = vmatprep.subr.bf16.mxu0 0
        %2790 = vmatpush1.bf16.msra.mxu0 %v1370
        %2791 = vmatprep.subr.bf16.mxu0 0
        %2792 = vmatpush1.bf16.msra.mxu0 %v1369
        %2793 = vmatprep.subr.bf16.mxu0 0
        %2794 = vmatpush1.bf16.msra.mxu0 %v1368
        %2795 = vmatprep.subr.bf16.mxu0 0
        %2796 = vmatpush1.bf16.msra.mxu0 %v1367
        %2797 = vmatprep.subr.bf16.mxu0 0
        %2798 = vmatpush1.bf16.msra.mxu0 %v1366
        %2799 = vmatprep.subr.bf16.mxu0 0
        %2800 = vmatpush1.bf16.msra.mxu0 %v1365
        %2801 = vmatprep.subr.bf16.mxu0 0
        %2802 = vmatpush1.bf16.msra.mxu0 %v1364
        %2803 = vmatprep.subr.bf16.mxu0 0
        %2804 = vmatpush1.bf16.msra.mxu0 %v1363
        %2805 = vmatprep.subr.bf16.mxu0 0
        %2806 = vmatpush2.bf16.msra.mxu0 0
        %2807 = vmatprep.subr.bf16.mxu0 0
        %2808 = vmatpush2.bf16.msra.mxu0 0
        %2809 = vmatprep.subr.bf16.mxu0 0
        %2810 = vmatpush2.bf16.msra.mxu0 0
        %2811 = vmatprep.subr.bf16.mxu0 0
        %2812 = vmatpush2.bf16.msra.mxu0 0
        %2813 = vmatprep.subr.bf16.mxu0 0
        %2814 = vmatpush2.bf16.msra.mxu0 0
        %2815 = vmatprep.subr.bf16.mxu0 0
        %2816 = vmatpush2.bf16.msra.mxu0 0
        %2817 = vmatprep.subr.bf16.mxu0 0
        %2818 = vmatpush2.bf16.msra.mxu0 0
        %2819 = vmatprep.subr.bf16.mxu0 0
        %2820 = vmatpush2.bf16.msra.mxu0 0
        %2821 = vmatprep.mubr.bf16.mxu0 0
        %2822 = vmatmul.mubr.bf16.gmra.mxu0 %v388
        %v2823 = vpop.f32.mrf.mxu0
        %v2824 = vadd.f32 %v2784, %v2823
        %v2825 = vpop.f32.mrf.mxu0
        %v2826 = vpop.f32.mrf.mxu0
        %v2827 = vpop.f32.mrf.mxu0
        %2828 = vdwg.mxu0
        %2829 = vmatprep.subr.bf16.mxu0 0
        %2830 = vmatpush1.bf16.msra.mxu0 %v1458
        %2831 = vmatprep.subr.bf16.mxu0 0
        %2832 = vmatpush1.bf16.msra.mxu0 %v1457
        %2833 = vmatprep.subr.bf16.mxu0 0
        %2834 = vmatpush1.bf16.msra.mxu0 %v1456
        %2835 = vmatprep.subr.bf16.mxu0 0
        %2836 = vmatpush1.bf16.msra.mxu0 %v1455
        %2837 = vmatprep.subr.bf16.mxu0 0
        %2838 = vmatpush1.bf16.msra.mxu0 %v1454
        %2839 = vmatprep.subr.bf16.mxu0 0
        %2840 = vmatpush1.bf16.msra.mxu0 %v1453
        %2841 = vmatprep.subr.bf16.mxu0 0
        %2842 = vmatpush1.bf16.msra.mxu0 %v1452
        %2843 = vmatprep.subr.bf16.mxu0 0
        %2844 = vmatpush1.bf16.msra.mxu0 %v1451
        %2845 = vmatprep.subr.bf16.mxu0 0
        %2846 = vmatpush2.bf16.msra.mxu0 0
        %2847 = vmatprep.subr.bf16.mxu0 0
        %2848 = vmatpush2.bf16.msra.mxu0 0
        %2849 = vmatprep.subr.bf16.mxu0 0
        %2850 = vmatpush2.bf16.msra.mxu0 0
        %2851 = vmatprep.subr.bf16.mxu0 0
        %2852 = vmatpush2.bf16.msra.mxu0 0
        %2853 = vmatprep.subr.bf16.mxu0 0
        %2854 = vmatpush2.bf16.msra.mxu0 0
        %2855 = vmatprep.subr.bf16.mxu0 0
        %2856 = vmatpush2.bf16.msra.mxu0 0
        %2857 = vmatprep.subr.bf16.mxu0 0
        %2858 = vmatpush2.bf16.msra.mxu0 0
        %2859 = vmatprep.subr.bf16.mxu0 0
        %2860 = vmatpush2.bf16.msra.mxu0 0
        %2861 = vmatprep.mubr.bf16.mxu0 0
        %2862 = vmatmul.mubr.bf16.gmra.mxu0 %v1858
        %v2863 = vpop.f32.mrf.mxu0
        %v2864 = vadd.f32 0.0, %v2863
        %v2865 = vpop.f32.mrf.mxu0
        %v2866 = vpop.f32.mrf.mxu0
        %v2867 = vpop.f32.mrf.mxu0
        %2868 = vdwg.mxu0
        %v2869 = vadd.f32 %v2824, %v2864
        %2870 = vmatprep.subr.bf16.mxu0 0
        %2871 = vmatpush1.bf16.msra.mxu0 %v1547
        %2872 = vmatprep.subr.bf16.mxu0 0
        %2873 = vmatpush1.bf16.msra.mxu0 %v1546
        %2874 = vmatprep.subr.bf16.mxu0 0
        %2875 = vmatpush1.bf16.msra.mxu0 %v1545
        %2876 = vmatprep.subr.bf16.mxu0 0
        %2877 = vmatpush1.bf16.msra.mxu0 %v1544
        %2878 = vmatprep.subr.bf16.mxu0 0
        %2879 = vmatpush1.bf16.msra.mxu0 %v1543
        %2880 = vmatprep.subr.bf16.mxu0 0
        %2881 = vmatpush1.bf16.msra.mxu0 %v1542
        %2882 = vmatprep.subr.bf16.mxu0 0
        %2883 = vmatpush1.bf16.msra.mxu0 %v1541
        %2884 = vmatprep.subr.bf16.mxu0 0
        %2885 = vmatpush1.bf16.msra.mxu0 %v1540
        %2886 = vmatprep.subr.bf16.mxu0 0
        %2887 = vmatpush2.bf16.msra.mxu0 0
        %2888 = vmatprep.subr.bf16.mxu0 0
        %2889 = vmatpush2.bf16.msra.mxu0 0
        %2890 = vmatprep.subr.bf16.mxu0 0
        %2891 = vmatpush2.bf16.msra.mxu0 0
        %2892 = vmatprep.subr.bf16.mxu0 0
        %2893 = vmatpush2.bf16.msra.mxu0 0
        %2894 = vmatprep.subr.bf16.mxu0 0
        %2895 = vmatpush2.bf16.msra.mxu0 0
        %2896 = vmatprep.subr.bf16.mxu0 0
        %2897 = vmatpush2.bf16.msra.mxu0 0
        %2898 = vmatprep.subr.bf16.mxu0 0
        %2899 = vmatpush2.bf16.msra.mxu0 0
        %2900 = vmatprep.subr.bf16.mxu0 0
        %2901 = vmatpush2.bf16.msra.mxu0 0
        %2902 = vmatprep.mubr.bf16.mxu0 0
        %2903 = vmatmul.mubr.bf16.gmra.mxu0 %v2287
        %v2904 = vpop.f32.mrf.mxu0
        %v2905 = vadd.f32 0.0, %v2904
        %v2906 = vpop.f32.mrf.mxu0
        %v2907 = vpop.f32.mrf.mxu0
        %v2908 = vpop.f32.mrf.mxu0
        %2909 = vdwg.mxu0
        %v2910 = vadd.f32 %v2869, %v2905
        %2911 = vmatprep.subr.bf16.mxu0 0
        %2912 = vmatpush1.bf16.msra.mxu0 %v1636
        %2913 = vmatprep.subr.bf16.mxu0 0
        %2914 = vmatpush1.bf16.msra.mxu0 %v1635
        %2915 = vmatprep.subr.bf16.mxu0 0
        %2916 = vmatpush1.bf16.msra.mxu0 %v1634
        %2917 = vmatprep.subr.bf16.mxu0 0
        %2918 = vmatpush1.bf16.msra.mxu0 %v1633
        %2919 = vmatprep.subr.bf16.mxu0 0
        %2920 = vmatpush1.bf16.msra.mxu0 %v1632
        %2921 = vmatprep.subr.bf16.mxu0 0
        %2922 = vmatpush1.bf16.msra.mxu0 %v1631
        %2923 = vmatprep.subr.bf16.mxu0 0
        %2924 = vmatpush1.bf16.msra.mxu0 %v1630
        %2925 = vmatprep.subr.bf16.mxu0 0
        %2926 = vmatpush1.bf16.msra.mxu0 %v1629
        %2927 = vmatprep.subr.bf16.mxu0 0
        %2928 = vmatpush2.bf16.msra.mxu0 0
        %2929 = vmatprep.subr.bf16.mxu0 0
        %2930 = vmatpush2.bf16.msra.mxu0 0
        %2931 = vmatprep.subr.bf16.mxu0 0
        %2932 = vmatpush2.bf16.msra.mxu0 0
        %2933 = vmatprep.subr.bf16.mxu0 0
        %2934 = vmatpush2.bf16.msra.mxu0 0
        %2935 = vmatprep.subr.bf16.mxu0 0
        %2936 = vmatpush2.bf16.msra.mxu0 0
        %2937 = vmatprep.subr.bf16.mxu0 0
        %2938 = vmatpush2.bf16.msra.mxu0 0
        %2939 = vmatprep.subr.bf16.mxu0 0
        %2940 = vmatpush2.bf16.msra.mxu0 0
        %2941 = vmatprep.subr.bf16.mxu0 0
        %2942 = vmatpush2.bf16.msra.mxu0 0
        %2943 = vmatprep.mubr.bf16.mxu0 0
        %2944 = vmatmul.mubr.bf16.gmra.mxu0 %v2705
        %v2945 = vpop.f32.mrf.mxu0
        %v2946 = vadd.f32 0.0, %v2945
        %v2947 = vpop.f32.mrf.mxu0
        %v2948 = vpop.f32.mrf.mxu0
        %v2949 = vpop.f32.mrf.mxu0
        %2950 = vdwg.mxu0
        %v2951 = vadd.f32 %v2910, %v2946
        %v2952 = vmax.f32 %v2748, %v2951
        %v2953 = vadd.f32 %v2952, %v2111
        %v2954 = vmax.f32 %v2953, 0.0
        %v2955 = vpack.c.bf16 %v2954, %v2954
        %v2972 = vunpack.c.l.b16 %v565
        %v2973 = vunpack.c.l.b16 %v566
        %v2974 = vunpack.c.l.b16 %v567
        %v2975 = vunpack.c.l.b16 %v568
        %v2976 = vunpack.c.l.b16 %v569
        %v2977 = vunpack.c.l.b16 %v570
        %v2978 = vunpack.c.l.b16 %v571
        %v2979 = vunpack.c.l.b16 %v572
        %v2980 = vunpack.c.l.b16 %v573
        %v2981 = vunpack.c.l.b16 %v574
        %v2982 = vunpack.c.l.b16 %v575
        %v2983 = vunpack.c.l.b16 %v576
        %v2984 = vunpack.c.l.b16 %v577
        %v2985 = vunpack.c.l.b16 %v578
        %v2986 = vunpack.c.l.b16 %v579
        %v2987 = vunpack.c.l.b16 %v580
        %v2988 = vpack.c.b16 %v2973, %v2972
        %v2989 = vpack.c.b16 %v2975, %v2974
        %v2990 = vpack.c.b16 %v2977, %v2976
        %v2991 = vpack.c.b16 %v2979, %v2978
        %v2992 = vpack.c.b16 %v2981, %v2980
        %v2993 = vpack.c.b16 %v2983, %v2982
        %v2994 = vpack.c.b16 %v2985, %v2984
        %v2995 = vpack.c.b16 %v2987, %v2986
        %3004 = vmatprep.subr.bf16.mxu0 0
        %3005 = vmatpush1.bf16.msra.mxu0 %v2995
        %3006 = vmatprep.subr.bf16.mxu0 0
        %3007 = vmatpush1.bf16.msra.mxu0 %v2994
        %3008 = vmatprep.subr.bf16.mxu0 0
        %3009 = vmatpush1.bf16.msra.mxu0 %v2993
        %3010 = vmatprep.subr.bf16.mxu0 0
        %3011 = vmatpush1.bf16.msra.mxu0 %v2992
        %3012 = vmatprep.subr.bf16.mxu0 0
        %3013 = vmatpush1.bf16.msra.mxu0 %v2991
        %3014 = vmatprep.subr.bf16.mxu0 0
        %3015 = vmatpush1.bf16.msra.mxu0 %v2990
        %3016 = vmatprep.subr.bf16.mxu0 0
        %3017 = vmatpush1.bf16.msra.mxu0 %v2989
        %3018 = vmatprep.subr.bf16.mxu0 0
        %3019 = vmatpush1.bf16.msra.mxu0 %v2988
        %3020 = vmatprep.subr.bf16.mxu0 0
        %3021 = vmatpush2.bf16.msra.mxu0 0
        %3022 = vmatprep.subr.bf16.mxu0 0
        %3023 = vmatpush2.bf16.msra.mxu0 0
        %3024 = vmatprep.subr.bf16.mxu0 0
        %3025 = vmatpush2.bf16.msra.mxu0 0
        %3026 = vmatprep.subr.bf16.mxu0 0
        %3027 = vmatpush2.bf16.msra.mxu0 0
        %3028 = vmatprep.subr.bf16.mxu0 0
        %3029 = vmatpush2.bf16.msra.mxu0 0
        %3030 = vmatprep.subr.bf16.mxu0 0
        %3031 = vmatpush2.bf16.msra.mxu0 0
        %3032 = vmatprep.subr.bf16.mxu0 0
        %3033 = vmatpush2.bf16.msra.mxu0 0
        %3034 = vmatprep.subr.bf16.mxu0 0
        %3035 = vmatpush2.bf16.msra.mxu0 0
        %3036 = vmatprep.mubr.bf16.mxu0 0
        %3037 = vmatmul.mubr.bf16.gmra.mxu0 %v2955
        %v3038 = vpop.f32.mrf.mxu0
        %v3039 = vadd.f32 0.0, %v3038
        %v3040 = vpop.f32.mrf.mxu0
        %v3041 = vpop.f32.mrf.mxu0
        %v3042 = vpop.f32.mrf.mxu0
        %3043 = vdwg.mxu0
        %v3060 = vunpack.c.l.b16 %v549
        %v3061 = vunpack.c.l.b16 %v550
        %v3062 = vunpack.c.l.b16 %v551
        %v3063 = vunpack.c.l.b16 %v552
        %v3064 = vunpack.c.l.b16 %v553
        %v3065 = vunpack.c.l.b16 %v554
        %v3066 = vunpack.c.l.b16 %v555
        %v3067 = vunpack.c.l.b16 %v556
        %v3068 = vunpack.c.l.b16 %v557
        %v3069 = vunpack.c.l.b16 %v558
        %v3070 = vunpack.c.l.b16 %v559
        %v3071 = vunpack.c.l.b16 %v560
        %v3072 = vunpack.c.l.b16 %v561
        %v3073 = vunpack.c.l.b16 %v562
        %v3074 = vunpack.c.l.b16 %v563
        %v3075 = vunpack.c.l.b16 %v564
        %v3076 = vpack.c.b16 %v3061, %v3060
        %v3077 = vpack.c.b16 %v3063, %v3062
        %v3078 = vpack.c.b16 %v3065, %v3064
        %v3079 = vpack.c.b16 %v3067, %v3066
        %v3080 = vpack.c.b16 %v3069, %v3068
        %v3081 = vpack.c.b16 %v3071, %v3070
        %v3082 = vpack.c.b16 %v3073, %v3072
        %v3083 = vpack.c.b16 %v3075, %v3074
        %3092 = vmatprep.subr.bf16.mxu0 0
        %3093 = vmatpush1.bf16.msra.mxu0 %v3083
        %3094 = vmatprep.subr.bf16.mxu0 0
        %3095 = vmatpush1.bf16.msra.mxu0 %v3082
        %3096 = vmatprep.subr.bf16.mxu0 0
        %3097 = vmatpush1.bf16.msra.mxu0 %v3081
        %3098 = vmatprep.subr.bf16.mxu0 0
        %3099 = vmatpush1.bf16.msra.mxu0 %v3080
        %3100 = vmatprep.subr.bf16.mxu0 0
        %3101 = vmatpush1.bf16.msra.mxu0 %v3079
        %3102 = vmatprep.subr.bf16.mxu0 0
        %3103 = vmatpush1.bf16.msra.mxu0 %v3078
        %3104 = vmatprep.subr.bf16.mxu0 0
        %3105 = vmatpush1.bf16.msra.mxu0 %v3077
        %3106 = vmatprep.subr.bf16.mxu0 0
        %3107 = vmatpush1.bf16.msra.mxu0 %v3076
        %3108 = vmatprep.subr.bf16.mxu0 0
        %3109 = vmatpush2.bf16.msra.mxu0 0
        %3110 = vmatprep.subr.bf16.mxu0 0
        %3111 = vmatpush2.bf16.msra.mxu0 0
        %3112 = vmatprep.subr.bf16.mxu0 0
        %3113 = vmatpush2.bf16.msra.mxu0 0
        %3114 = vmatprep.subr.bf16.mxu0 0
        %3115 = vmatpush2.bf16.msra.mxu0 0
        %3116 = vmatprep.subr.bf16.mxu0 0
        %3117 = vmatpush2.bf16.msra.mxu0 0
        %3118 = vmatprep.subr.bf16.mxu0 0
        %3119 = vmatpush2.bf16.msra.mxu0 0
        %3120 = vmatprep.subr.bf16.mxu0 0
        %3121 = vmatpush2.bf16.msra.mxu0 0
        %3122 = vmatprep.subr.bf16.mxu0 0
        %3123 = vmatpush2.bf16.msra.mxu0 0
        %3124 = vmatprep.mubr.bf16.mxu0 0
        %3125 = vmatmul.mubr.bf16.gmra.mxu0 %v2115
        %v3126 = vpop.f32.mrf.mxu0
        %v3127 = vadd.f32 %v3039, %v3126
        %v3128 = vpop.f32.mrf.mxu0
        %v3129 = vpop.f32.mrf.mxu0
        %v3130 = vpop.f32.mrf.mxu0
        %3131 = vdwg.mxu0
        %v3133 = vshrl.u32 %v2115, 16
        %v3135 = vshll.u32 %v2115, 16
        %v3137 = vrot.slane %v3135, 1
        %v3138 = vor.u32 %v3133, %v3137
        %v3156 = vunpack.c.l.b16 %v581
        %v3157 = vunpack.c.l.b16 %v582
        %v3158 = vunpack.c.l.b16 %v583
        %v3159 = vunpack.c.l.b16 %v584
        %v3160 = vunpack.c.l.b16 %v585
        %v3161 = vunpack.c.l.b16 %v586
        %v3162 = vunpack.c.l.b16 %v587
        %v3163 = vunpack.c.l.b16 %v588
        %v3164 = vunpack.c.l.b16 %v589
        %v3165 = vunpack.c.l.b16 %v590
        %v3166 = vunpack.c.l.b16 %v591
        %v3167 = vunpack.c.l.b16 %v592
        %v3168 = vunpack.c.l.b16 %v593
        %v3169 = vunpack.c.l.b16 %v594
        %v3170 = vunpack.c.l.b16 %v595
        %v3171 = vunpack.c.l.b16 %v596
        %v3172 = vpack.c.b16 %v3157, %v3156
        %v3173 = vpack.c.b16 %v3159, %v3158
        %v3174 = vpack.c.b16 %v3161, %v3160
        %v3175 = vpack.c.b16 %v3163, %v3162
        %v3176 = vpack.c.b16 %v3165, %v3164
        %v3177 = vpack.c.b16 %v3167, %v3166
        %v3178 = vpack.c.b16 %v3169, %v3168
        %v3179 = vpack.c.b16 %v3171, %v3170
        %3188 = vmatprep.subr.bf16.mxu0 0
        %3189 = vmatpush1.bf16.msra.mxu0 %v3179
        %3190 = vmatprep.subr.bf16.mxu0 0
        %3191 = vmatpush1.bf16.msra.mxu0 %v3178
        %3192 = vmatprep.subr.bf16.mxu0 0
        %3193 = vmatpush1.bf16.msra.mxu0 %v3177
        %3194 = vmatprep.subr.bf16.mxu0 0
        %3195 = vmatpush1.bf16.msra.mxu0 %v3176
        %3196 = vmatprep.subr.bf16.mxu0 0
        %3197 = vmatpush1.bf16.msra.mxu0 %v3175
        %3198 = vmatprep.subr.bf16.mxu0 0
        %3199 = vmatpush1.bf16.msra.mxu0 %v3174
        %3200 = vmatprep.subr.bf16.mxu0 0
        %3201 = vmatpush1.bf16.msra.mxu0 %v3173
        %3202 = vmatprep.subr.bf16.mxu0 0
        %3203 = vmatpush1.bf16.msra.mxu0 %v3172
        %3204 = vmatprep.subr.bf16.mxu0 0
        %3205 = vmatpush2.bf16.msra.mxu0 0
        %3206 = vmatprep.subr.bf16.mxu0 0
        %3207 = vmatpush2.bf16.msra.mxu0 0
        %3208 = vmatprep.subr.bf16.mxu0 0
        %3209 = vmatpush2.bf16.msra.mxu0 0
        %3210 = vmatprep.subr.bf16.mxu0 0
        %3211 = vmatpush2.bf16.msra.mxu0 0
        %3212 = vmatprep.subr.bf16.mxu0 0
        %3213 = vmatpush2.bf16.msra.mxu0 0
        %3214 = vmatprep.subr.bf16.mxu0 0
        %3215 = vmatpush2.bf16.msra.mxu0 0
        %3216 = vmatprep.subr.bf16.mxu0 0
        %3217 = vmatpush2.bf16.msra.mxu0 0
        %3218 = vmatprep.subr.bf16.mxu0 0
        %3219 = vmatpush2.bf16.msra.mxu0 0
        %3220 = vmatprep.mubr.bf16.mxu0 0
        %3221 = vmatmul.mubr.bf16.gmra.mxu0 %v3138
        %v3222 = vpop.f32.mrf.mxu0
        %v3223 = vadd.f32 0.0, %v3222
        %v3224 = vpop.f32.mrf.mxu0
        %v3225 = vpop.f32.mrf.mxu0
        %v3226 = vpop.f32.mrf.mxu0
        %3227 = vdwg.mxu0
        %v3228 = vadd.f32 %v3127, %v3223
        %v3230 = vshrl.u32 %v2955, 16
        %v3232 = vshll.u32 %v2955, 16
        %v3234 = vrot.slane %v3232, 1
        %v3235 = vor.u32 %v3230, %v3234
        %v3253 = vunpack.c.l.b16 %v597
        %v3254 = vunpack.c.l.b16 %v598
        %v3255 = vunpack.c.l.b16 %v599
        %v3256 = vunpack.c.l.b16 %v600
        %v3257 = vunpack.c.l.b16 %v601
        %v3258 = vunpack.c.l.b16 %v602
        %v3259 = vunpack.c.l.b16 %v603
        %v3260 = vunpack.c.l.b16 %v604
        %v3261 = vunpack.c.l.b16 %v605
        %v3262 = vunpack.c.l.b16 %v606
        %v3263 = vunpack.c.l.b16 %v607
        %v3264 = vunpack.c.l.b16 %v608
        %v3265 = vunpack.c.l.b16 %v609
        %v3266 = vunpack.c.l.b16 %v610
        %v3267 = vunpack.c.l.b16 %v611
        %v3268 = vunpack.c.l.b16 %v612
        %v3269 = vpack.c.b16 %v3254, %v3253
        %v3270 = vpack.c.b16 %v3256, %v3255
        %v3271 = vpack.c.b16 %v3258, %v3257
        %v3272 = vpack.c.b16 %v3260, %v3259
        %v3273 = vpack.c.b16 %v3262, %v3261
        %v3274 = vpack.c.b16 %v3264, %v3263
        %v3275 = vpack.c.b16 %v3266, %v3265
        %v3276 = vpack.c.b16 %v3268, %v3267
        %3285 = vmatprep.subr.bf16.mxu0 0
        %3286 = vmatpush1.bf16.msra.mxu0 %v3276
        %3287 = vmatprep.subr.bf16.mxu0 0
        %3288 = vmatpush1.bf16.msra.mxu0 %v3275
        %3289 = vmatprep.subr.bf16.mxu0 0
        %3290 = vmatpush1.bf16.msra.mxu0 %v3274
        %3291 = vmatprep.subr.bf16.mxu0 0
        %3292 = vmatpush1.bf16.msra.mxu0 %v3273
        %3293 = vmatprep.subr.bf16.mxu0 0
        %3294 = vmatpush1.bf16.msra.mxu0 %v3272
        %3295 = vmatprep.subr.bf16.mxu0 0
        %3296 = vmatpush1.bf16.msra.mxu0 %v3271
        %3297 = vmatprep.subr.bf16.mxu0 0
        %3298 = vmatpush1.bf16.msra.mxu0 %v3270
        %3299 = vmatprep.subr.bf16.mxu0 0
        %3300 = vmatpush1.bf16.msra.mxu0 %v3269
        %3301 = vmatprep.subr.bf16.mxu0 0
        %3302 = vmatpush2.bf16.msra.mxu0 0
        %3303 = vmatprep.subr.bf16.mxu0 0
        %3304 = vmatpush2.bf16.msra.mxu0 0
        %3305 = vmatprep.subr.bf16.mxu0 0
        %3306 = vmatpush2.bf16.msra.mxu0 0
        %3307 = vmatprep.subr.bf16.mxu0 0
        %3308 = vmatpush2.bf16.msra.mxu0 0
        %3309 = vmatprep.subr.bf16.mxu0 0
        %3310 = vmatpush2.bf16.msra.mxu0 0
        %3311 = vmatprep.subr.bf16.mxu0 0
        %3312 = vmatpush2.bf16.msra.mxu0 0
        %3313 = vmatprep.subr.bf16.mxu0 0
        %3314 = vmatpush2.bf16.msra.mxu0 0
        %3315 = vmatprep.subr.bf16.mxu0 0
        %3316 = vmatpush2.bf16.msra.mxu0 0
        %3317 = vmatprep.mubr.bf16.mxu0 0
        %3318 = vmatmul.mubr.bf16.gmra.mxu0 %v3235
        %v3319 = vpop.f32.mrf.mxu0
        %v3320 = vadd.f32 0.0, %v3319
        %v3321 = vpop.f32.mrf.mxu0
        %v3322 = vpop.f32.mrf.mxu0
        %v3323 = vpop.f32.mrf.mxu0
        %3324 = vdwg.mxu0
        %v3325 = vadd.f32 %v3228, %v3320
        %v3327 = vrot.slane %v2115, 1
        %v3345 = vunpack.c.l.b16 %v613
        %v3346 = vunpack.c.l.b16 %v614
        %v3347 = vunpack.c.l.b16 %v615
        %v3348 = vunpack.c.l.b16 %v616
        %v3349 = vunpack.c.l.b16 %v617
        %v3350 = vunpack.c.l.b16 %v618
        %v3351 = vunpack.c.l.b16 %v619
        %v3352 = vunpack.c.l.b16 %v620
        %v3353 = vunpack.c.l.b16 %v621
        %v3354 = vunpack.c.l.b16 %v622
        %v3355 = vunpack.c.l.b16 %v623
        %v3356 = vunpack.c.l.b16 %v624
        %v3357 = vunpack.c.l.b16 %v625
        %v3358 = vunpack.c.l.b16 %v626
        %v3359 = vunpack.c.l.b16 %v627
        %v3360 = vunpack.c.l.b16 %v628
        %v3361 = vpack.c.b16 %v3346, %v3345
        %v3362 = vpack.c.b16 %v3348, %v3347
        %v3363 = vpack.c.b16 %v3350, %v3349
        %v3364 = vpack.c.b16 %v3352, %v3351
        %v3365 = vpack.c.b16 %v3354, %v3353
        %v3366 = vpack.c.b16 %v3356, %v3355
        %v3367 = vpack.c.b16 %v3358, %v3357
        %v3368 = vpack.c.b16 %v3360, %v3359
        %3377 = vmatprep.subr.bf16.mxu0 0
        %3378 = vmatpush1.bf16.msra.mxu0 %v3368
        %3379 = vmatprep.subr.bf16.mxu0 0
        %3380 = vmatpush1.bf16.msra.mxu0 %v3367
        %3381 = vmatprep.subr.bf16.mxu0 0
        %3382 = vmatpush1.bf16.msra.mxu0 %v3366
        %3383 = vmatprep.subr.bf16.mxu0 0
        %3384 = vmatpush1.bf16.msra.mxu0 %v3365
        %3385 = vmatprep.subr.bf16.mxu0 0
        %3386 = vmatpush1.bf16.msra.mxu0 %v3364
        %3387 = vmatprep.subr.bf16.mxu0 0
        %3388 = vmatpush1.bf16.msra.mxu0 %v3363
        %3389 = vmatprep.subr.bf16.mxu0 0
        %3390 = vmatpush1.bf16.msra.mxu0 %v3362
        %3391 = vmatprep.subr.bf16.mxu0 0
        %3392 = vmatpush1.bf16.msra.mxu0 %v3361
        %3393 = vmatprep.subr.bf16.mxu0 0
        %3394 = vmatpush2.bf16.msra.mxu0 0
        %3395 = vmatprep.subr.bf16.mxu0 0
        %3396 = vmatpush2.bf16.msra.mxu0 0
        %3397 = vmatprep.subr.bf16.mxu0 0
        %3398 = vmatpush2.bf16.msra.mxu0 0
        %3399 = vmatprep.subr.bf16.mxu0 0
        %3400 = vmatpush2.bf16.msra.mxu0 0
        %3401 = vmatprep.subr.bf16.mxu0 0
        %3402 = vmatpush2.bf16.msra.mxu0 0
        %3403 = vmatprep.subr.bf16.mxu0 0
        %3404 = vmatpush2.bf16.msra.mxu0 0
        %3405 = vmatprep.subr.bf16.mxu0 0
        %3406 = vmatpush2.bf16.msra.mxu0 0
        %3407 = vmatprep.subr.bf16.mxu0 0
        %3408 = vmatpush2.bf16.msra.mxu0 0
        %3409 = vmatprep.mubr.bf16.mxu0 0
        %3410 = vmatmul.mubr.bf16.gmra.mxu0 %v3327
        %v3411 = vpop.f32.mrf.mxu0
        %v3412 = vadd.f32 0.0, %v3411
        %v3413 = vpop.f32.mrf.mxu0
        %v3414 = vpop.f32.mrf.mxu0
        %v3415 = vpop.f32.mrf.mxu0
        %3416 = vdwg.mxu0
        %v3417 = vadd.f32 %v3325, %v3412
        %v3434 = vunpack.c.l.b16 %v645
        %v3435 = vunpack.c.l.b16 %v646
        %v3436 = vunpack.c.l.b16 %v647
        %v3437 = vunpack.c.l.b16 %v648
        %v3438 = vunpack.c.l.b16 %v649
        %v3439 = vunpack.c.l.b16 %v650
        %v3440 = vunpack.c.l.b16 %v651
        %v3441 = vunpack.c.l.b16 %v652
        %v3442 = vunpack.c.l.b16 %v653
        %v3443 = vunpack.c.l.b16 %v654
        %v3444 = vunpack.c.l.b16 %v655
        %v3445 = vunpack.c.l.b16 %v656
        %v3446 = vunpack.c.l.b16 %v657
        %v3447 = vunpack.c.l.b16 %v658
        %v3448 = vunpack.c.l.b16 %v659
        %v3449 = vunpack.c.l.b16 %v660
        %v3450 = vpack.c.b16 %v3435, %v3434
        %v3451 = vpack.c.b16 %v3437, %v3436
        %v3452 = vpack.c.b16 %v3439, %v3438
        %v3453 = vpack.c.b16 %v3441, %v3440
        %v3454 = vpack.c.b16 %v3443, %v3442
        %v3455 = vpack.c.b16 %v3445, %v3444
        %v3456 = vpack.c.b16 %v3447, %v3446
        %v3457 = vpack.c.b16 %v3449, %v3448
        %3466 = vmatprep.subr.bf16.mxu0 0
        %3467 = vmatpush1.bf16.msra.mxu0 %v3457
        %3468 = vmatprep.subr.bf16.mxu0 0
        %3469 = vmatpush1.bf16.msra.mxu0 %v3456
        %3470 = vmatprep.subr.bf16.mxu0 0
        %3471 = vmatpush1.bf16.msra.mxu0 %v3455
        %3472 = vmatprep.subr.bf16.mxu0 0
        %3473 = vmatpush1.bf16.msra.mxu0 %v3454
        %3474 = vmatprep.subr.bf16.mxu0 0
        %3475 = vmatpush1.bf16.msra.mxu0 %v3453
        %3476 = vmatprep.subr.bf16.mxu0 0
        %3477 = vmatpush1.bf16.msra.mxu0 %v3452
        %3478 = vmatprep.subr.bf16.mxu0 0
        %3479 = vmatpush1.bf16.msra.mxu0 %v3451
        %3480 = vmatprep.subr.bf16.mxu0 0
        %3481 = vmatpush1.bf16.msra.mxu0 %v3450
        %3482 = vmatprep.subr.bf16.mxu0 0
        %3483 = vmatpush2.bf16.msra.mxu0 0
        %3484 = vmatprep.subr.bf16.mxu0 0
        %3485 = vmatpush2.bf16.msra.mxu0 0
        %3486 = vmatprep.subr.bf16.mxu0 0
        %3487 = vmatpush2.bf16.msra.mxu0 0
        %3488 = vmatprep.subr.bf16.mxu0 0
        %3489 = vmatpush2.bf16.msra.mxu0 0
        %3490 = vmatprep.subr.bf16.mxu0 0
        %3491 = vmatpush2.bf16.msra.mxu0 0
        %3492 = vmatprep.subr.bf16.mxu0 0
        %3493 = vmatpush2.bf16.msra.mxu0 0
        %3494 = vmatprep.subr.bf16.mxu0 0
        %3495 = vmatpush2.bf16.msra.mxu0 0
        %3496 = vmatprep.subr.bf16.mxu0 0
        %3497 = vmatpush2.bf16.msra.mxu0 0
        %3498 = vmatprep.mubr.bf16.mxu0 0
        %3499 = vmatmul.mubr.bf16.gmra.mxu0 %v2955
        %v3500 = vpop.f32.mrf.mxu0
        %v3501 = vadd.f32 0.0, %v3500
        %v3502 = vpop.f32.mrf.mxu0
        %v3503 = vpop.f32.mrf.mxu0
        %v3504 = vpop.f32.mrf.mxu0
        %3505 = vdwg.mxu0
        %v3522 = vunpack.c.l.b16 %v629
        %v3523 = vunpack.c.l.b16 %v630
        %v3524 = vunpack.c.l.b16 %v631
        %v3525 = vunpack.c.l.b16 %v632
        %v3526 = vunpack.c.l.b16 %v633
        %v3527 = vunpack.c.l.b16 %v634
        %v3528 = vunpack.c.l.b16 %v635
        %v3529 = vunpack.c.l.b16 %v636
        %v3530 = vunpack.c.l.b16 %v637
        %v3531 = vunpack.c.l.b16 %v638
        %v3532 = vunpack.c.l.b16 %v639
        %v3533 = vunpack.c.l.b16 %v640
        %v3534 = vunpack.c.l.b16 %v641
        %v3535 = vunpack.c.l.b16 %v642
        %v3536 = vunpack.c.l.b16 %v643
        %v3537 = vunpack.c.l.b16 %v644
        %v3538 = vpack.c.b16 %v3523, %v3522
        %v3539 = vpack.c.b16 %v3525, %v3524
        %v3540 = vpack.c.b16 %v3527, %v3526
        %v3541 = vpack.c.b16 %v3529, %v3528
        %v3542 = vpack.c.b16 %v3531, %v3530
        %v3543 = vpack.c.b16 %v3533, %v3532
        %v3544 = vpack.c.b16 %v3535, %v3534
        %v3545 = vpack.c.b16 %v3537, %v3536
        %3554 = vmatprep.subr.bf16.mxu0 0
        %3555 = vmatpush1.bf16.msra.mxu0 %v3545
        %3556 = vmatprep.subr.bf16.mxu0 0
        %3557 = vmatpush1.bf16.msra.mxu0 %v3544
        %3558 = vmatprep.subr.bf16.mxu0 0
        %3559 = vmatpush1.bf16.msra.mxu0 %v3543
        %3560 = vmatprep.subr.bf16.mxu0 0
        %3561 = vmatpush1.bf16.msra.mxu0 %v3542
        %3562 = vmatprep.subr.bf16.mxu0 0
        %3563 = vmatpush1.bf16.msra.mxu0 %v3541
        %3564 = vmatprep.subr.bf16.mxu0 0
        %3565 = vmatpush1.bf16.msra.mxu0 %v3540
        %3566 = vmatprep.subr.bf16.mxu0 0
        %3567 = vmatpush1.bf16.msra.mxu0 %v3539
        %3568 = vmatprep.subr.bf16.mxu0 0
        %3569 = vmatpush1.bf16.msra.mxu0 %v3538
        %3570 = vmatprep.subr.bf16.mxu0 0
        %3571 = vmatpush2.bf16.msra.mxu0 0
        %3572 = vmatprep.subr.bf16.mxu0 0
        %3573 = vmatpush2.bf16.msra.mxu0 0
        %3574 = vmatprep.subr.bf16.mxu0 0
        %3575 = vmatpush2.bf16.msra.mxu0 0
        %3576 = vmatprep.subr.bf16.mxu0 0
        %3577 = vmatpush2.bf16.msra.mxu0 0
        %3578 = vmatprep.subr.bf16.mxu0 0
        %3579 = vmatpush2.bf16.msra.mxu0 0
        %3580 = vmatprep.subr.bf16.mxu0 0
        %3581 = vmatpush2.bf16.msra.mxu0 0
        %3582 = vmatprep.subr.bf16.mxu0 0
        %3583 = vmatpush2.bf16.msra.mxu0 0
        %3584 = vmatprep.subr.bf16.mxu0 0
        %3585 = vmatpush2.bf16.msra.mxu0 0
        %3586 = vmatprep.mubr.bf16.mxu0 0
        %3587 = vmatmul.mubr.bf16.gmra.mxu0 %v2115
        %v3588 = vpop.f32.mrf.mxu0
        %v3589 = vadd.f32 %v3501, %v3588
        %v3590 = vpop.f32.mrf.mxu0
        %v3591 = vpop.f32.mrf.mxu0
        %v3592 = vpop.f32.mrf.mxu0
        %3593 = vdwg.mxu0
        %v3610 = vunpack.c.l.b16 %v661
        %v3611 = vunpack.c.l.b16 %v662
        %v3612 = vunpack.c.l.b16 %v663
        %v3613 = vunpack.c.l.b16 %v664
        %v3614 = vunpack.c.l.b16 %v665
        %v3615 = vunpack.c.l.b16 %v666
        %v3616 = vunpack.c.l.b16 %v667
        %v3617 = vunpack.c.l.b16 %v668
        %v3618 = vunpack.c.l.b16 %v669
        %v3619 = vunpack.c.l.b16 %v670
        %v3620 = vunpack.c.l.b16 %v671
        %v3621 = vunpack.c.l.b16 %v672
        %v3622 = vunpack.c.l.b16 %v673
        %v3623 = vunpack.c.l.b16 %v674
        %v3624 = vunpack.c.l.b16 %v675
        %v3625 = vunpack.c.l.b16 %v676
        %v3626 = vpack.c.b16 %v3611, %v3610
        %v3627 = vpack.c.b16 %v3613, %v3612
        %v3628 = vpack.c.b16 %v3615, %v3614
        %v3629 = vpack.c.b16 %v3617, %v3616
        %v3630 = vpack.c.b16 %v3619, %v3618
        %v3631 = vpack.c.b16 %v3621, %v3620
        %v3632 = vpack.c.b16 %v3623, %v3622
        %v3633 = vpack.c.b16 %v3625, %v3624
        %3642 = vmatprep.subr.bf16.mxu0 0
        %3643 = vmatpush1.bf16.msra.mxu0 %v3633
        %3644 = vmatprep.subr.bf16.mxu0 0
        %3645 = vmatpush1.bf16.msra.mxu0 %v3632
        %3646 = vmatprep.subr.bf16.mxu0 0
        %3647 = vmatpush1.bf16.msra.mxu0 %v3631
        %3648 = vmatprep.subr.bf16.mxu0 0
        %3649 = vmatpush1.bf16.msra.mxu0 %v3630
        %3650 = vmatprep.subr.bf16.mxu0 0
        %3651 = vmatpush1.bf16.msra.mxu0 %v3629
        %3652 = vmatprep.subr.bf16.mxu0 0
        %3653 = vmatpush1.bf16.msra.mxu0 %v3628
        %3654 = vmatprep.subr.bf16.mxu0 0
        %3655 = vmatpush1.bf16.msra.mxu0 %v3627
        %3656 = vmatprep.subr.bf16.mxu0 0
        %3657 = vmatpush1.bf16.msra.mxu0 %v3626
        %3658 = vmatprep.subr.bf16.mxu0 0
        %3659 = vmatpush2.bf16.msra.mxu0 0
        %3660 = vmatprep.subr.bf16.mxu0 0
        %3661 = vmatpush2.bf16.msra.mxu0 0
        %3662 = vmatprep.subr.bf16.mxu0 0
        %3663 = vmatpush2.bf16.msra.mxu0 0
        %3664 = vmatprep.subr.bf16.mxu0 0
        %3665 = vmatpush2.bf16.msra.mxu0 0
        %3666 = vmatprep.subr.bf16.mxu0 0
        %3667 = vmatpush2.bf16.msra.mxu0 0
        %3668 = vmatprep.subr.bf16.mxu0 0
        %3669 = vmatpush2.bf16.msra.mxu0 0
        %3670 = vmatprep.subr.bf16.mxu0 0
        %3671 = vmatpush2.bf16.msra.mxu0 0
        %3672 = vmatprep.subr.bf16.mxu0 0
        %3673 = vmatpush2.bf16.msra.mxu0 0
        %3674 = vmatprep.mubr.bf16.mxu0 0
        %3675 = vmatmul.mubr.bf16.gmra.mxu0 %v3138
        %v3676 = vpop.f32.mrf.mxu0
        %v3677 = vadd.f32 0.0, %v3676
        %v3678 = vpop.f32.mrf.mxu0
        %v3679 = vpop.f32.mrf.mxu0
        %v3680 = vpop.f32.mrf.mxu0
        %3681 = vdwg.mxu0
        %v3682 = vadd.f32 %v3589, %v3677
        %v3699 = vunpack.c.l.b16 %v677
        %v3700 = vunpack.c.l.b16 %v678
        %v3701 = vunpack.c.l.b16 %v679
        %v3702 = vunpack.c.l.b16 %v680
        %v3703 = vunpack.c.l.b16 %v681
        %v3704 = vunpack.c.l.b16 %v682
        %v3705 = vunpack.c.l.b16 %v683
        %v3706 = vunpack.c.l.b16 %v684
        %v3707 = vunpack.c.l.b16 %v685
        %v3708 = vunpack.c.l.b16 %v686
        %v3709 = vunpack.c.l.b16 %v687
        %v3710 = vunpack.c.l.b16 %v688
        %v3711 = vunpack.c.l.b16 %v689
        %v3712 = vunpack.c.l.b16 %v690
        %v3713 = vunpack.c.l.b16 %v691
        %v3714 = vunpack.c.l.b16 %v692
        %v3715 = vpack.c.b16 %v3700, %v3699
        %v3716 = vpack.c.b16 %v3702, %v3701
        %v3717 = vpack.c.b16 %v3704, %v3703
        %v3718 = vpack.c.b16 %v3706, %v3705
        %v3719 = vpack.c.b16 %v3708, %v3707
        %v3720 = vpack.c.b16 %v3710, %v3709
        %v3721 = vpack.c.b16 %v3712, %v3711
        %v3722 = vpack.c.b16 %v3714, %v3713
        %3731 = vmatprep.subr.bf16.mxu0 0
        %3732 = vmatpush1.bf16.msra.mxu0 %v3722
        %3733 = vmatprep.subr.bf16.mxu0 0
        %3734 = vmatpush1.bf16.msra.mxu0 %v3721
        %3735 = vmatprep.subr.bf16.mxu0 0
        %3736 = vmatpush1.bf16.msra.mxu0 %v3720
        %3737 = vmatprep.subr.bf16.mxu0 0
        %3738 = vmatpush1.bf16.msra.mxu0 %v3719
        %3739 = vmatprep.subr.bf16.mxu0 0
        %3740 = vmatpush1.bf16.msra.mxu0 %v3718
        %3741 = vmatprep.subr.bf16.mxu0 0
        %3742 = vmatpush1.bf16.msra.mxu0 %v3717
        %3743 = vmatprep.subr.bf16.mxu0 0
        %3744 = vmatpush1.bf16.msra.mxu0 %v3716
        %3745 = vmatprep.subr.bf16.mxu0 0
        %3746 = vmatpush1.bf16.msra.mxu0 %v3715
        %3747 = vmatprep.subr.bf16.mxu0 0
        %3748 = vmatpush2.bf16.msra.mxu0 0
        %3749 = vmatprep.subr.bf16.mxu0 0
        %3750 = vmatpush2.bf16.msra.mxu0 0
        %3751 = vmatprep.subr.bf16.mxu0 0
        %3752 = vmatpush2.bf16.msra.mxu0 0
        %3753 = vmatprep.subr.bf16.mxu0 0
        %3754 = vmatpush2.bf16.msra.mxu0 0
        %3755 = vmatprep.subr.bf16.mxu0 0
        %3756 = vmatpush2.bf16.msra.mxu0 0
        %3757 = vmatprep.subr.bf16.mxu0 0
        %3758 = vmatpush2.bf16.msra.mxu0 0
        %3759 = vmatprep.subr.bf16.mxu0 0
        %3760 = vmatpush2.bf16.msra.mxu0 0
        %3761 = vmatprep.subr.bf16.mxu0 0
        %3762 = vmatpush2.bf16.msra.mxu0 0
        %3763 = vmatprep.mubr.bf16.mxu0 0
        %3764 = vmatmul.mubr.bf16.gmra.mxu0 %v3235
        %v3765 = vpop.f32.mrf.mxu0
        %v3766 = vadd.f32 0.0, %v3765
        %v3767 = vpop.f32.mrf.mxu0
        %v3768 = vpop.f32.mrf.mxu0
        %v3769 = vpop.f32.mrf.mxu0
        %3770 = vdwg.mxu0
        %v3771 = vadd.f32 %v3682, %v3766
        %v3788 = vunpack.c.l.b16 %v693
        %v3789 = vunpack.c.l.b16 %v694
        %v3790 = vunpack.c.l.b16 %v695
        %v3791 = vunpack.c.l.b16 %v696
        %v3792 = vunpack.c.l.b16 %v697
        %v3793 = vunpack.c.l.b16 %v698
        %v3794 = vunpack.c.l.b16 %v699
        %v3795 = vunpack.c.l.b16 %v700
        %v3796 = vunpack.c.l.b16 %v701
        %v3797 = vunpack.c.l.b16 %v702
        %v3798 = vunpack.c.l.b16 %v703
        %v3799 = vunpack.c.l.b16 %v704
        %v3800 = vunpack.c.l.b16 %v705
        %v3801 = vunpack.c.l.b16 %v706
        %v3802 = vunpack.c.l.b16 %v707
        %v3803 = vunpack.c.l.b16 %v708
        %v3804 = vpack.c.b16 %v3789, %v3788
        %v3805 = vpack.c.b16 %v3791, %v3790
        %v3806 = vpack.c.b16 %v3793, %v3792
        %v3807 = vpack.c.b16 %v3795, %v3794
        %v3808 = vpack.c.b16 %v3797, %v3796
        %v3809 = vpack.c.b16 %v3799, %v3798
        %v3810 = vpack.c.b16 %v3801, %v3800
        %v3811 = vpack.c.b16 %v3803, %v3802
        %3820 = vmatprep.subr.bf16.mxu0 0
        %3821 = vmatpush1.bf16.msra.mxu0 %v3811
        %3822 = vmatprep.subr.bf16.mxu0 0
        %3823 = vmatpush1.bf16.msra.mxu0 %v3810
        %3824 = vmatprep.subr.bf16.mxu0 0
        %3825 = vmatpush1.bf16.msra.mxu0 %v3809
        %3826 = vmatprep.subr.bf16.mxu0 0
        %3827 = vmatpush1.bf16.msra.mxu0 %v3808
        %3828 = vmatprep.subr.bf16.mxu0 0
        %3829 = vmatpush1.bf16.msra.mxu0 %v3807
        %3830 = vmatprep.subr.bf16.mxu0 0
        %3831 = vmatpush1.bf16.msra.mxu0 %v3806
        %3832 = vmatprep.subr.bf16.mxu0 0
        %3833 = vmatpush1.bf16.msra.mxu0 %v3805
        %3834 = vmatprep.subr.bf16.mxu0 0
        %3835 = vmatpush1.bf16.msra.mxu0 %v3804
        %3836 = vmatprep.subr.bf16.mxu0 0
        %3837 = vmatpush2.bf16.msra.mxu0 0
        %3838 = vmatprep.subr.bf16.mxu0 0
        %3839 = vmatpush2.bf16.msra.mxu0 0
        %3840 = vmatprep.subr.bf16.mxu0 0
        %3841 = vmatpush2.bf16.msra.mxu0 0
        %3842 = vmatprep.subr.bf16.mxu0 0
        %3843 = vmatpush2.bf16.msra.mxu0 0
        %3844 = vmatprep.subr.bf16.mxu0 0
        %3845 = vmatpush2.bf16.msra.mxu0 0
        %3846 = vmatprep.subr.bf16.mxu0 0
        %3847 = vmatpush2.bf16.msra.mxu0 0
        %3848 = vmatprep.subr.bf16.mxu0 0
        %3849 = vmatpush2.bf16.msra.mxu0 0
        %3850 = vmatprep.subr.bf16.mxu0 0
        %3851 = vmatpush2.bf16.msra.mxu0 0
        %3852 = vmatprep.mubr.bf16.mxu0 0
        %3853 = vmatmul.mubr.bf16.gmra.mxu0 %v3327
        %v3854 = vpop.f32.mrf.mxu0
        %v3855 = vadd.f32 0.0, %v3854
        %v3856 = vpop.f32.mrf.mxu0
        %v3857 = vpop.f32.mrf.mxu0
        %v3858 = vpop.f32.mrf.mxu0
        %3859 = vdwg.mxu0
        %v3860 = vadd.f32 %v3771, %v3855
        %v3861 = vmax.f32 %v3417, %v3860
        %3862 = vmatprep.subr.bf16.mxu0 0
        %3863 = vmatpush1.bf16.msra.mxu0 %v2995
        %3864 = vmatprep.subr.bf16.mxu0 0
        %3865 = vmatpush1.bf16.msra.mxu0 %v2994
        %3866 = vmatprep.subr.bf16.mxu0 0
        %3867 = vmatpush1.bf16.msra.mxu0 %v2993
        %3868 = vmatprep.subr.bf16.mxu0 0
        %3869 = vmatpush1.bf16.msra.mxu0 %v2992
        %3870 = vmatprep.subr.bf16.mxu0 0
        %3871 = vmatpush1.bf16.msra.mxu0 %v2991
        %3872 = vmatprep.subr.bf16.mxu0 0
        %3873 = vmatpush1.bf16.msra.mxu0 %v2990
        %3874 = vmatprep.subr.bf16.mxu0 0
        %3875 = vmatpush1.bf16.msra.mxu0 %v2989
        %3876 = vmatprep.subr.bf16.mxu0 0
        %3877 = vmatpush1.bf16.msra.mxu0 %v2988
        %3878 = vmatprep.subr.bf16.mxu0 0
        %3879 = vmatpush2.bf16.msra.mxu0 0
        %3880 = vmatprep.subr.bf16.mxu0 0
        %3881 = vmatpush2.bf16.msra.mxu0 0
        %3882 = vmatprep.subr.bf16.mxu0 0
        %3883 = vmatpush2.bf16.msra.mxu0 0
        %3884 = vmatprep.subr.bf16.mxu0 0
        %3885 = vmatpush2.bf16.msra.mxu0 0
        %3886 = vmatprep.subr.bf16.mxu0 0
        %3887 = vmatpush2.bf16.msra.mxu0 0
        %3888 = vmatprep.subr.bf16.mxu0 0
        %3889 = vmatpush2.bf16.msra.mxu0 0
        %3890 = vmatprep.subr.bf16.mxu0 0
        %3891 = vmatpush2.bf16.msra.mxu0 0
        %3892 = vmatprep.subr.bf16.mxu0 0
        %3893 = vmatpush2.bf16.msra.mxu0 0
        %3894 = vmatprep.mubr.bf16.mxu0 0
        %3895 = vmatmul.mubr.bf16.gmra.mxu0 %v3138
        %v3896 = vpop.f32.mrf.mxu0
        %v3897 = vadd.f32 0.0, %v3896
        %v3898 = vpop.f32.mrf.mxu0
        %v3899 = vpop.f32.mrf.mxu0
        %v3900 = vpop.f32.mrf.mxu0
        %3901 = vdwg.mxu0
        %3902 = vmatprep.subr.bf16.mxu0 0
        %3903 = vmatpush1.bf16.msra.mxu0 %v3083
        %3904 = vmatprep.subr.bf16.mxu0 0
        %3905 = vmatpush1.bf16.msra.mxu0 %v3082
        %3906 = vmatprep.subr.bf16.mxu0 0
        %3907 = vmatpush1.bf16.msra.mxu0 %v3081
        %3908 = vmatprep.subr.bf16.mxu0 0
        %3909 = vmatpush1.bf16.msra.mxu0 %v3080
        %3910 = vmatprep.subr.bf16.mxu0 0
        %3911 = vmatpush1.bf16.msra.mxu0 %v3079
        %3912 = vmatprep.subr.bf16.mxu0 0
        %3913 = vmatpush1.bf16.msra.mxu0 %v3078
        %3914 = vmatprep.subr.bf16.mxu0 0
        %3915 = vmatpush1.bf16.msra.mxu0 %v3077
        %3916 = vmatprep.subr.bf16.mxu0 0
        %3917 = vmatpush1.bf16.msra.mxu0 %v3076
        %3918 = vmatprep.subr.bf16.mxu0 0
        %3919 = vmatpush2.bf16.msra.mxu0 0
        %3920 = vmatprep.subr.bf16.mxu0 0
        %3921 = vmatpush2.bf16.msra.mxu0 0
        %3922 = vmatprep.subr.bf16.mxu0 0
        %3923 = vmatpush2.bf16.msra.mxu0 0
        %3924 = vmatprep.subr.bf16.mxu0 0
        %3925 = vmatpush2.bf16.msra.mxu0 0
        %3926 = vmatprep.subr.bf16.mxu0 0
        %3927 = vmatpush2.bf16.msra.mxu0 0
        %3928 = vmatprep.subr.bf16.mxu0 0
        %3929 = vmatpush2.bf16.msra.mxu0 0
        %3930 = vmatprep.subr.bf16.mxu0 0
        %3931 = vmatpush2.bf16.msra.mxu0 0
        %3932 = vmatprep.subr.bf16.mxu0 0
        %3933 = vmatpush2.bf16.msra.mxu0 0
        %3934 = vmatprep.mubr.bf16.mxu0 0
        %3935 = vmatmul.mubr.bf16.gmra.mxu0 %v2955
        %v3936 = vpop.f32.mrf.mxu0
        %v3937 = vadd.f32 %v3897, %v3936
        %v3938 = vpop.f32.mrf.mxu0
        %v3939 = vpop.f32.mrf.mxu0
        %v3940 = vpop.f32.mrf.mxu0
        %3941 = vdwg.mxu0
        %3942 = vmatprep.subr.bf16.mxu0 0
        %3943 = vmatpush1.bf16.msra.mxu0 %v3179
        %3944 = vmatprep.subr.bf16.mxu0 0
        %3945 = vmatpush1.bf16.msra.mxu0 %v3178
        %3946 = vmatprep.subr.bf16.mxu0 0
        %3947 = vmatpush1.bf16.msra.mxu0 %v3177
        %3948 = vmatprep.subr.bf16.mxu0 0
        %3949 = vmatpush1.bf16.msra.mxu0 %v3176
        %3950 = vmatprep.subr.bf16.mxu0 0
        %3951 = vmatpush1.bf16.msra.mxu0 %v3175
        %3952 = vmatprep.subr.bf16.mxu0 0
        %3953 = vmatpush1.bf16.msra.mxu0 %v3174
        %3954 = vmatprep.subr.bf16.mxu0 0
        %3955 = vmatpush1.bf16.msra.mxu0 %v3173
        %3956 = vmatprep.subr.bf16.mxu0 0
        %3957 = vmatpush1.bf16.msra.mxu0 %v3172
        %3958 = vmatprep.subr.bf16.mxu0 0
        %3959 = vmatpush2.bf16.msra.mxu0 0
        %3960 = vmatprep.subr.bf16.mxu0 0
        %3961 = vmatpush2.bf16.msra.mxu0 0
        %3962 = vmatprep.subr.bf16.mxu0 0
        %3963 = vmatpush2.bf16.msra.mxu0 0
        %3964 = vmatprep.subr.bf16.mxu0 0
        %3965 = vmatpush2.bf16.msra.mxu0 0
        %3966 = vmatprep.subr.bf16.mxu0 0
        %3967 = vmatpush2.bf16.msra.mxu0 0
        %3968 = vmatprep.subr.bf16.mxu0 0
        %3969 = vmatpush2.bf16.msra.mxu0 0
        %3970 = vmatprep.subr.bf16.mxu0 0
        %3971 = vmatpush2.bf16.msra.mxu0 0
        %3972 = vmatprep.subr.bf16.mxu0 0
        %3973 = vmatpush2.bf16.msra.mxu0 0
        %3974 = vmatprep.mubr.bf16.mxu0 0
        %3975 = vmatmul.mubr.bf16.gmra.mxu0 %v3235
        %v3976 = vpop.f32.mrf.mxu0
        %v3977 = vadd.f32 0.0, %v3976
        %v3978 = vpop.f32.mrf.mxu0
        %v3979 = vpop.f32.mrf.mxu0
        %v3980 = vpop.f32.mrf.mxu0
        %3981 = vdwg.mxu0
        %v3982 = vadd.f32 %v3937, %v3977
        %3983 = vmatprep.subr.bf16.mxu0 0
        %3984 = vmatpush1.bf16.msra.mxu0 %v3276
        %3985 = vmatprep.subr.bf16.mxu0 0
        %3986 = vmatpush1.bf16.msra.mxu0 %v3275
        %3987 = vmatprep.subr.bf16.mxu0 0
        %3988 = vmatpush1.bf16.msra.mxu0 %v3274
        %3989 = vmatprep.subr.bf16.mxu0 0
        %3990 = vmatpush1.bf16.msra.mxu0 %v3273
        %3991 = vmatprep.subr.bf16.mxu0 0
        %3992 = vmatpush1.bf16.msra.mxu0 %v3272
        %3993 = vmatprep.subr.bf16.mxu0 0
        %3994 = vmatpush1.bf16.msra.mxu0 %v3271
        %3995 = vmatprep.subr.bf16.mxu0 0
        %3996 = vmatpush1.bf16.msra.mxu0 %v3270
        %3997 = vmatprep.subr.bf16.mxu0 0
        %3998 = vmatpush1.bf16.msra.mxu0 %v3269
        %3999 = vmatprep.subr.bf16.mxu0 0
        %4000 = vmatpush2.bf16.msra.mxu0 0
        %4001 = vmatprep.subr.bf16.mxu0 0
        %4002 = vmatpush2.bf16.msra.mxu0 0
        %4003 = vmatprep.subr.bf16.mxu0 0
        %4004 = vmatpush2.bf16.msra.mxu0 0
        %4005 = vmatprep.subr.bf16.mxu0 0
        %4006 = vmatpush2.bf16.msra.mxu0 0
        %4007 = vmatprep.subr.bf16.mxu0 0
        %4008 = vmatpush2.bf16.msra.mxu0 0
        %4009 = vmatprep.subr.bf16.mxu0 0
        %4010 = vmatpush2.bf16.msra.mxu0 0
        %4011 = vmatprep.subr.bf16.mxu0 0
        %4012 = vmatpush2.bf16.msra.mxu0 0
        %4013 = vmatprep.subr.bf16.mxu0 0
        %4014 = vmatpush2.bf16.msra.mxu0 0
        %4015 = vmatprep.mubr.bf16.mxu0 0
        %4016 = vmatmul.mubr.bf16.gmra.mxu0 %v3327
        %v4017 = vpop.f32.mrf.mxu0
        %v4018 = vadd.f32 0.0, %v4017
        %v4019 = vpop.f32.mrf.mxu0
        %v4020 = vpop.f32.mrf.mxu0
        %v4021 = vpop.f32.mrf.mxu0
        %4022 = vdwg.mxu0
        %v4023 = vadd.f32 %v3982, %v4018
        %v4025 = vrot.slane %v2955, 1
        %4027 = vmatprep.subr.bf16.mxu0 0
        %4028 = vmatpush1.bf16.msra.mxu0 %v3368
        %4029 = vmatprep.subr.bf16.mxu0 0
        %4030 = vmatpush1.bf16.msra.mxu0 %v3367
        %4031 = vmatprep.subr.bf16.mxu0 0
        %4032 = vmatpush1.bf16.msra.mxu0 %v3366
        %4033 = vmatprep.subr.bf16.mxu0 0
        %4034 = vmatpush1.bf16.msra.mxu0 %v3365
        %4035 = vmatprep.subr.bf16.mxu0 0
        %4036 = vmatpush1.bf16.msra.mxu0 %v3364
        %4037 = vmatprep.subr.bf16.mxu0 0
        %4038 = vmatpush1.bf16.msra.mxu0 %v3363
        %4039 = vmatprep.subr.bf16.mxu0 0
        %4040 = vmatpush1.bf16.msra.mxu0 %v3362
        %4041 = vmatprep.subr.bf16.mxu0 0
        %4042 = vmatpush1.bf16.msra.mxu0 %v3361
        %4043 = vmatprep.subr.bf16.mxu0 0
        %4044 = vmatpush2.bf16.msra.mxu0 0
        %4045 = vmatprep.subr.bf16.mxu0 0
        %4046 = vmatpush2.bf16.msra.mxu0 0
        %4047 = vmatprep.subr.bf16.mxu0 0
        %4048 = vmatpush2.bf16.msra.mxu0 0
        %4049 = vmatprep.subr.bf16.mxu0 0
        %4050 = vmatpush2.bf16.msra.mxu0 0
        %4051 = vmatprep.subr.bf16.mxu0 0
        %4052 = vmatpush2.bf16.msra.mxu0 0
        %4053 = vmatprep.subr.bf16.mxu0 0
        %4054 = vmatpush2.bf16.msra.mxu0 0
        %4055 = vmatprep.subr.bf16.mxu0 0
        %4056 = vmatpush2.bf16.msra.mxu0 0
        %4057 = vmatprep.subr.bf16.mxu0 0
        %4058 = vmatpush2.bf16.msra.mxu0 0
        %4059 = vmatprep.mubr.bf16.mxu0 0
        %4060 = vmatmul.mubr.bf16.gmra.mxu0 %v4025
        %v4061 = vpop.f32.mrf.mxu0
        %v4062 = vadd.f32 0.0, %v4061
        %v4063 = vpop.f32.mrf.mxu0
        %v4064 = vpop.f32.mrf.mxu0
        %v4065 = vpop.f32.mrf.mxu0
        %4066 = vdwg.mxu0
        %v4067 = vadd.f32 %v4023, %v4062
        %v4068 = vmax.f32 %v3861, %v4067
        %4069 = vmatprep.subr.bf16.mxu0 0
        %4070 = vmatpush1.bf16.msra.mxu0 %v3457
        %4071 = vmatprep.subr.bf16.mxu0 0
        %4072 = vmatpush1.bf16.msra.mxu0 %v3456
        %4073 = vmatprep.subr.bf16.mxu0 0
        %4074 = vmatpush1.bf16.msra.mxu0 %v3455
        %4075 = vmatprep.subr.bf16.mxu0 0
        %4076 = vmatpush1.bf16.msra.mxu0 %v3454
        %4077 = vmatprep.subr.bf16.mxu0 0
        %4078 = vmatpush1.bf16.msra.mxu0 %v3453
        %4079 = vmatprep.subr.bf16.mxu0 0
        %4080 = vmatpush1.bf16.msra.mxu0 %v3452
        %4081 = vmatprep.subr.bf16.mxu0 0
        %4082 = vmatpush1.bf16.msra.mxu0 %v3451
        %4083 = vmatprep.subr.bf16.mxu0 0
        %4084 = vmatpush1.bf16.msra.mxu0 %v3450
        %4085 = vmatprep.subr.bf16.mxu0 0
        %4086 = vmatpush2.bf16.msra.mxu0 0
        %4087 = vmatprep.subr.bf16.mxu0 0
        %4088 = vmatpush2.bf16.msra.mxu0 0
        %4089 = vmatprep.subr.bf16.mxu0 0
        %4090 = vmatpush2.bf16.msra.mxu0 0
        %4091 = vmatprep.subr.bf16.mxu0 0
        %4092 = vmatpush2.bf16.msra.mxu0 0
        %4093 = vmatprep.subr.bf16.mxu0 0
        %4094 = vmatpush2.bf16.msra.mxu0 0
        %4095 = vmatprep.subr.bf16.mxu0 0
        %4096 = vmatpush2.bf16.msra.mxu0 0
        %4097 = vmatprep.subr.bf16.mxu0 0
        %4098 = vmatpush2.bf16.msra.mxu0 0
        %4099 = vmatprep.subr.bf16.mxu0 0
        %4100 = vmatpush2.bf16.msra.mxu0 0
        %4101 = vmatprep.mubr.bf16.mxu0 0
        %4102 = vmatmul.mubr.bf16.gmra.mxu0 %v3138
        %v4103 = vpop.f32.mrf.mxu0
        %v4104 = vadd.f32 0.0, %v4103
        %v4105 = vpop.f32.mrf.mxu0
        %v4106 = vpop.f32.mrf.mxu0
        %v4107 = vpop.f32.mrf.mxu0
        %4108 = vdwg.mxu0
        %4109 = vmatprep.subr.bf16.mxu0 0
        %4110 = vmatpush1.bf16.msra.mxu0 %v3545
        %4111 = vmatprep.subr.bf16.mxu0 0
        %4112 = vmatpush1.bf16.msra.mxu0 %v3544
        %4113 = vmatprep.subr.bf16.mxu0 0
        %4114 = vmatpush1.bf16.msra.mxu0 %v3543
        %4115 = vmatprep.subr.bf16.mxu0 0
        %4116 = vmatpush1.bf16.msra.mxu0 %v3542
        %4117 = vmatprep.subr.bf16.mxu0 0
        %4118 = vmatpush1.bf16.msra.mxu0 %v3541
        %4119 = vmatprep.subr.bf16.mxu0 0
        %4120 = vmatpush1.bf16.msra.mxu0 %v3540
        %4121 = vmatprep.subr.bf16.mxu0 0
        %4122 = vmatpush1.bf16.msra.mxu0 %v3539
        %4123 = vmatprep.subr.bf16.mxu0 0
        %4124 = vmatpush1.bf16.msra.mxu0 %v3538
        %4125 = vmatprep.subr.bf16.mxu0 0
        %4126 = vmatpush2.bf16.msra.mxu0 0
        %4127 = vmatprep.subr.bf16.mxu0 0
        %4128 = vmatpush2.bf16.msra.mxu0 0
        %4129 = vmatprep.subr.bf16.mxu0 0
        %4130 = vmatpush2.bf16.msra.mxu0 0
        %4131 = vmatprep.subr.bf16.mxu0 0
        %4132 = vmatpush2.bf16.msra.mxu0 0
        %4133 = vmatprep.subr.bf16.mxu0 0
        %4134 = vmatpush2.bf16.msra.mxu0 0
        %4135 = vmatprep.subr.bf16.mxu0 0
        %4136 = vmatpush2.bf16.msra.mxu0 0
        %4137 = vmatprep.subr.bf16.mxu0 0
        %4138 = vmatpush2.bf16.msra.mxu0 0
        %4139 = vmatprep.subr.bf16.mxu0 0
        %4140 = vmatpush2.bf16.msra.mxu0 0
        %4141 = vmatprep.mubr.bf16.mxu0 0
        %4142 = vmatmul.mubr.bf16.gmra.mxu0 %v2955
        %v4143 = vpop.f32.mrf.mxu0
        %v4144 = vadd.f32 %v4104, %v4143
        %v4145 = vpop.f32.mrf.mxu0
        %v4146 = vpop.f32.mrf.mxu0
        %v4147 = vpop.f32.mrf.mxu0
        %4148 = vdwg.mxu0
        %4149 = vmatprep.subr.bf16.mxu0 0
        %4150 = vmatpush1.bf16.msra.mxu0 %v3633
        %4151 = vmatprep.subr.bf16.mxu0 0
        %4152 = vmatpush1.bf16.msra.mxu0 %v3632
        %4153 = vmatprep.subr.bf16.mxu0 0
        %4154 = vmatpush1.bf16.msra.mxu0 %v3631
        %4155 = vmatprep.subr.bf16.mxu0 0
        %4156 = vmatpush1.bf16.msra.mxu0 %v3630
        %4157 = vmatprep.subr.bf16.mxu0 0
        %4158 = vmatpush1.bf16.msra.mxu0 %v3629
        %4159 = vmatprep.subr.bf16.mxu0 0
        %4160 = vmatpush1.bf16.msra.mxu0 %v3628
        %4161 = vmatprep.subr.bf16.mxu0 0
        %4162 = vmatpush1.bf16.msra.mxu0 %v3627
        %4163 = vmatprep.subr.bf16.mxu0 0
        %4164 = vmatpush1.bf16.msra.mxu0 %v3626
        %4165 = vmatprep.subr.bf16.mxu0 0
        %4166 = vmatpush2.bf16.msra.mxu0 0
        %4167 = vmatprep.subr.bf16.mxu0 0
        %4168 = vmatpush2.bf16.msra.mxu0 0
        %4169 = vmatprep.subr.bf16.mxu0 0
        %4170 = vmatpush2.bf16.msra.mxu0 0
        %4171 = vmatprep.subr.bf16.mxu0 0
        %4172 = vmatpush2.bf16.msra.mxu0 0
        %4173 = vmatprep.subr.bf16.mxu0 0
        %4174 = vmatpush2.bf16.msra.mxu0 0
        %4175 = vmatprep.subr.bf16.mxu0 0
        %4176 = vmatpush2.bf16.msra.mxu0 0
        %4177 = vmatprep.subr.bf16.mxu0 0
        %4178 = vmatpush2.bf16.msra.mxu0 0
        %4179 = vmatprep.subr.bf16.mxu0 0
        %4180 = vmatpush2.bf16.msra.mxu0 0
        %4181 = vmatprep.mubr.bf16.mxu0 0
        %4182 = vmatmul.mubr.bf16.gmra.mxu0 %v3235
        %v4183 = vpop.f32.mrf.mxu0
        %v4184 = vadd.f32 0.0, %v4183
        %v4185 = vpop.f32.mrf.mxu0
        %v4186 = vpop.f32.mrf.mxu0
        %v4187 = vpop.f32.mrf.mxu0
        %4188 = vdwg.mxu0
        %v4189 = vadd.f32 %v4144, %v4184
        %4190 = vmatprep.subr.bf16.mxu0 0
        %4191 = vmatpush1.bf16.msra.mxu0 %v3722
        %4192 = vmatprep.subr.bf16.mxu0 0
        %4193 = vmatpush1.bf16.msra.mxu0 %v3721
        %4194 = vmatprep.subr.bf16.mxu0 0
        %4195 = vmatpush1.bf16.msra.mxu0 %v3720
        %4196 = vmatprep.subr.bf16.mxu0 0
        %4197 = vmatpush1.bf16.msra.mxu0 %v3719
        %4198 = vmatprep.subr.bf16.mxu0 0
        %4199 = vmatpush1.bf16.msra.mxu0 %v3718
        %4200 = vmatprep.subr.bf16.mxu0 0
        %4201 = vmatpush1.bf16.msra.mxu0 %v3717
        %4202 = vmatprep.subr.bf16.mxu0 0
        %4203 = vmatpush1.bf16.msra.mxu0 %v3716
        %4204 = vmatprep.subr.bf16.mxu0 0
        %4205 = vmatpush1.bf16.msra.mxu0 %v3715
        %4206 = vmatprep.subr.bf16.mxu0 0
        %4207 = vmatpush2.bf16.msra.mxu0 0
        %4208 = vmatprep.subr.bf16.mxu0 0
        %4209 = vmatpush2.bf16.msra.mxu0 0
        %4210 = vmatprep.subr.bf16.mxu0 0
        %4211 = vmatpush2.bf16.msra.mxu0 0
        %4212 = vmatprep.subr.bf16.mxu0 0
        %4213 = vmatpush2.bf16.msra.mxu0 0
        %4214 = vmatprep.subr.bf16.mxu0 0
        %4215 = vmatpush2.bf16.msra.mxu0 0
        %4216 = vmatprep.subr.bf16.mxu0 0
        %4217 = vmatpush2.bf16.msra.mxu0 0
        %4218 = vmatprep.subr.bf16.mxu0 0
        %4219 = vmatpush2.bf16.msra.mxu0 0
        %4220 = vmatprep.subr.bf16.mxu0 0
        %4221 = vmatpush2.bf16.msra.mxu0 0
        %4222 = vmatprep.mubr.bf16.mxu0 0
        %4223 = vmatmul.mubr.bf16.gmra.mxu0 %v3327
        %v4224 = vpop.f32.mrf.mxu0
        %v4225 = vadd.f32 0.0, %v4224
        %v4226 = vpop.f32.mrf.mxu0
        %v4227 = vpop.f32.mrf.mxu0
        %v4228 = vpop.f32.mrf.mxu0
        %4229 = vdwg.mxu0
        %v4230 = vadd.f32 %v4189, %v4225
        %4231 = vmatprep.subr.bf16.mxu0 0
        %4232 = vmatpush1.bf16.msra.mxu0 %v3811
        %4233 = vmatprep.subr.bf16.mxu0 0
        %4234 = vmatpush1.bf16.msra.mxu0 %v3810
        %4235 = vmatprep.subr.bf16.mxu0 0
        %4236 = vmatpush1.bf16.msra.mxu0 %v3809
        %4237 = vmatprep.subr.bf16.mxu0 0
        %4238 = vmatpush1.bf16.msra.mxu0 %v3808
        %4239 = vmatprep.subr.bf16.mxu0 0
        %4240 = vmatpush1.bf16.msra.mxu0 %v3807
        %4241 = vmatprep.subr.bf16.mxu0 0
        %4242 = vmatpush1.bf16.msra.mxu0 %v3806
        %4243 = vmatprep.subr.bf16.mxu0 0
        %4244 = vmatpush1.bf16.msra.mxu0 %v3805
        %4245 = vmatprep.subr.bf16.mxu0 0
        %4246 = vmatpush1.bf16.msra.mxu0 %v3804
        %4247 = vmatprep.subr.bf16.mxu0 0
        %4248 = vmatpush2.bf16.msra.mxu0 0
        %4249 = vmatprep.subr.bf16.mxu0 0
        %4250 = vmatpush2.bf16.msra.mxu0 0
        %4251 = vmatprep.subr.bf16.mxu0 0
        %4252 = vmatpush2.bf16.msra.mxu0 0
        %4253 = vmatprep.subr.bf16.mxu0 0
        %4254 = vmatpush2.bf16.msra.mxu0 0
        %4255 = vmatprep.subr.bf16.mxu0 0
        %4256 = vmatpush2.bf16.msra.mxu0 0
        %4257 = vmatprep.subr.bf16.mxu0 0
        %4258 = vmatpush2.bf16.msra.mxu0 0
        %4259 = vmatprep.subr.bf16.mxu0 0
        %4260 = vmatpush2.bf16.msra.mxu0 0
        %4261 = vmatprep.subr.bf16.mxu0 0
        %4262 = vmatpush2.bf16.msra.mxu0 0
        %4263 = vmatprep.mubr.bf16.mxu0 0
        %4264 = vmatmul.mubr.bf16.gmra.mxu0 %v4025
        %v4265 = vpop.f32.mrf.mxu0
        %v4266 = vadd.f32 0.0, %v4265
        %v4267 = vpop.f32.mrf.mxu0
        %v4268 = vpop.f32.mrf.mxu0
        %v4269 = vpop.f32.mrf.mxu0
        %4270 = vdwg.mxu0
        %v4271 = vadd.f32 %v4230, %v4266
        %v4272 = vmax.f32 %v4068, %v4271
        %v4273 = vld [vmem:[%s4] sm:$0x1]
        %v4275 = vlaneseq
        %v4276 = vshrl.u32 %v4275, 7
        %v4277 = vsub.s32 0, %v4276
        %v4278 = vrot.slane %v4273, %v4277
        %v4280 = vadd.f32 %v4272, %v4278
        %v4281 = vmax.f32 %v4280, 0.0
        %v4282 = vpack.c.bf16 %v4281, %v4281
        %v4284 = vshrl.u32 %v4282, 16
        %v4303 = vunpack.c.l.b16 %v725
        %v4304 = vunpack.c.l.b16 %v726
        %v4305 = vunpack.c.l.b16 %v727
        %v4306 = vunpack.c.l.b16 %v728
        %v4307 = vunpack.c.l.b16 %v729
        %v4308 = vunpack.c.l.b16 %v730
        %v4309 = vunpack.c.l.b16 %v731
        %v4310 = vunpack.c.l.b16 %v732
        %v4311 = vunpack.c.l.b16 %v733
        %v4312 = vunpack.c.l.b16 %v734
        %v4313 = vunpack.c.l.b16 %v735
        %v4314 = vunpack.c.l.b16 %v736
        %v4315 = vunpack.c.l.b16 %v737
        %v4316 = vunpack.c.l.b16 %v738
        %v4317 = vunpack.c.l.b16 %v739
        %v4318 = vunpack.c.l.b16 %v740
        %v4319 = vpack.c.b16 %v4304, %v4303
        %v4320 = vpack.c.b16 %v4306, %v4305
        %v4321 = vpack.c.b16 %v4308, %v4307
        %v4322 = vpack.c.b16 %v4310, %v4309
        %v4323 = vpack.c.b16 %v4312, %v4311
        %v4324 = vpack.c.b16 %v4314, %v4313
        %v4325 = vpack.c.b16 %v4316, %v4315
        %v4326 = vpack.c.b16 %v4318, %v4317
        %4335 = vmatprep.subr.bf16.mxu0 0
        %4336 = vmatpush1.bf16.msra.mxu0 %v4326
        %4337 = vmatprep.subr.bf16.mxu0 0
        %4338 = vmatpush1.bf16.msra.mxu0 %v4325
        %4339 = vmatprep.subr.bf16.mxu0 0
        %4340 = vmatpush1.bf16.msra.mxu0 %v4324
        %4341 = vmatprep.subr.bf16.mxu0 0
        %4342 = vmatpush1.bf16.msra.mxu0 %v4323
        %4343 = vmatprep.subr.bf16.mxu0 0
        %4344 = vmatpush1.bf16.msra.mxu0 %v4322
        %4345 = vmatprep.subr.bf16.mxu0 0
        %4346 = vmatpush1.bf16.msra.mxu0 %v4321
        %4347 = vmatprep.subr.bf16.mxu0 0
        %4348 = vmatpush1.bf16.msra.mxu0 %v4320
        %4349 = vmatprep.subr.bf16.mxu0 0
        %4350 = vmatpush1.bf16.msra.mxu0 %v4319
        %4351 = vmatprep.subr.bf16.mxu0 0
        %4352 = vmatpush2.bf16.msra.mxu0 0
        %4353 = vmatprep.subr.bf16.mxu0 0
        %4354 = vmatpush2.bf16.msra.mxu0 0
        %4355 = vmatprep.subr.bf16.mxu0 0
        %4356 = vmatpush2.bf16.msra.mxu0 0
        %4357 = vmatprep.subr.bf16.mxu0 0
        %4358 = vmatpush2.bf16.msra.mxu0 0
        %4359 = vmatprep.subr.bf16.mxu0 0
        %4360 = vmatpush2.bf16.msra.mxu0 0
        %4361 = vmatprep.subr.bf16.mxu0 0
        %4362 = vmatpush2.bf16.msra.mxu0 0
        %4363 = vmatprep.subr.bf16.mxu0 0
        %4364 = vmatpush2.bf16.msra.mxu0 0
        %4365 = vmatprep.subr.bf16.mxu0 0
        %4366 = vmatpush2.bf16.msra.mxu0 0
        %4367 = vmatprep.mubr.bf16.mxu0 0
        %4368 = vmatmul.mubr.bf16.gmra.mxu0 %v4284
        %v4369 = vpop.f32.mrf.mxu0
        %v4370 = vadd.f32 0.0, %v4369
        %v4371 = vpop.f32.mrf.mxu0
        %v4372 = vpop.f32.mrf.mxu0
        %v4373 = vpop.f32.mrf.mxu0
        %4374 = vdwg.mxu0
        %v4391 = vunpack.c.l.b16 %v709
        %v4392 = vunpack.c.l.b16 %v710
        %v4393 = vunpack.c.l.b16 %v711
        %v4394 = vunpack.c.l.b16 %v712
        %v4395 = vunpack.c.l.b16 %v713
        %v4396 = vunpack.c.l.b16 %v714
        %v4397 = vunpack.c.l.b16 %v715
        %v4398 = vunpack.c.l.b16 %v716
        %v4399 = vunpack.c.l.b16 %v717
        %v4400 = vunpack.c.l.b16 %v718
        %v4401 = vunpack.c.l.b16 %v719
        %v4402 = vunpack.c.l.b16 %v720
        %v4403 = vunpack.c.l.b16 %v721
        %v4404 = vunpack.c.l.b16 %v722
        %v4405 = vunpack.c.l.b16 %v723
        %v4406 = vunpack.c.l.b16 %v724
        %v4407 = vpack.c.b16 %v4392, %v4391
        %v4408 = vpack.c.b16 %v4394, %v4393
        %v4409 = vpack.c.b16 %v4396, %v4395
        %v4410 = vpack.c.b16 %v4398, %v4397
        %v4411 = vpack.c.b16 %v4400, %v4399
        %v4412 = vpack.c.b16 %v4402, %v4401
        %v4413 = vpack.c.b16 %v4404, %v4403
        %v4414 = vpack.c.b16 %v4406, %v4405
        %4423 = vmatprep.subr.bf16.mxu0 0
        %4424 = vmatpush1.bf16.msra.mxu0 %v4414
        %4425 = vmatprep.subr.bf16.mxu0 0
        %4426 = vmatpush1.bf16.msra.mxu0 %v4413
        %4427 = vmatprep.subr.bf16.mxu0 0
        %4428 = vmatpush1.bf16.msra.mxu0 %v4412
        %4429 = vmatprep.subr.bf16.mxu0 0
        %4430 = vmatpush1.bf16.msra.mxu0 %v4411
        %4431 = vmatprep.subr.bf16.mxu0 0
        %4432 = vmatpush1.bf16.msra.mxu0 %v4410
        %4433 = vmatprep.subr.bf16.mxu0 0
        %4434 = vmatpush1.bf16.msra.mxu0 %v4409
        %4435 = vmatprep.subr.bf16.mxu0 0
        %4436 = vmatpush1.bf16.msra.mxu0 %v4408
        %4437 = vmatprep.subr.bf16.mxu0 0
        %4438 = vmatpush1.bf16.msra.mxu0 %v4407
        %4439 = vmatprep.subr.bf16.mxu0 0
        %4440 = vmatpush2.bf16.msra.mxu0 0
        %4441 = vmatprep.subr.bf16.mxu0 0
        %4442 = vmatpush2.bf16.msra.mxu0 0
        %4443 = vmatprep.subr.bf16.mxu0 0
        %4444 = vmatpush2.bf16.msra.mxu0 0
        %4445 = vmatprep.subr.bf16.mxu0 0
        %4446 = vmatpush2.bf16.msra.mxu0 0
        %4447 = vmatprep.subr.bf16.mxu0 0
        %4448 = vmatpush2.bf16.msra.mxu0 0
        %4449 = vmatprep.subr.bf16.mxu0 0
        %4450 = vmatpush2.bf16.msra.mxu0 0
        %4451 = vmatprep.subr.bf16.mxu0 0
        %4452 = vmatpush2.bf16.msra.mxu0 0
        %4453 = vmatprep.subr.bf16.mxu0 0
        %4454 = vmatpush2.bf16.msra.mxu0 0
        %4455 = vmatprep.mubr.bf16.mxu0 0
        %4456 = vmatmul.mubr.bf16.gmra.mxu0 %v4282
        %v4457 = vpop.f32.mrf.mxu0
        %v4458 = vadd.f32 %v4370, %v4457
        %v4459 = vpop.f32.mrf.mxu0
        %v4460 = vpop.f32.mrf.mxu0
        %v4461 = vpop.f32.mrf.mxu0
        %4462 = vdwg.mxu0
        %v4464 = vrot.slane %v4282, 1
        %v4482 = vunpack.c.l.b16 %v741
        %v4483 = vunpack.c.l.b16 %v742
        %v4484 = vunpack.c.l.b16 %v743
        %v4485 = vunpack.c.l.b16 %v744
        %v4486 = vunpack.c.l.b16 %v745
        %v4487 = vunpack.c.l.b16 %v746
        %v4488 = vunpack.c.l.b16 %v747
        %v4489 = vunpack.c.l.b16 %v748
        %v4490 = vunpack.c.l.b16 %v749
        %v4491 = vunpack.c.l.b16 %v750
        %v4492 = vunpack.c.l.b16 %v751
        %v4493 = vunpack.c.l.b16 %v752
        %v4494 = vunpack.c.l.b16 %v753
        %v4495 = vunpack.c.l.b16 %v754
        %v4496 = vunpack.c.l.b16 %v755
        %v4497 = vunpack.c.l.b16 %v756
        %v4498 = vpack.c.b16 %v4483, %v4482
        %v4499 = vpack.c.b16 %v4485, %v4484
        %v4500 = vpack.c.b16 %v4487, %v4486
        %v4501 = vpack.c.b16 %v4489, %v4488
        %v4502 = vpack.c.b16 %v4491, %v4490
        %v4503 = vpack.c.b16 %v4493, %v4492
        %v4504 = vpack.c.b16 %v4495, %v4494
        %v4505 = vpack.c.b16 %v4497, %v4496
        %4514 = vmatprep.subr.bf16.mxu0 0
        %4515 = vmatpush1.bf16.msra.mxu0 %v4505
        %4516 = vmatprep.subr.bf16.mxu0 0
        %4517 = vmatpush1.bf16.msra.mxu0 %v4504
        %4518 = vmatprep.subr.bf16.mxu0 0
        %4519 = vmatpush1.bf16.msra.mxu0 %v4503
        %4520 = vmatprep.subr.bf16.mxu0 0
        %4521 = vmatpush1.bf16.msra.mxu0 %v4502
        %4522 = vmatprep.subr.bf16.mxu0 0
        %4523 = vmatpush1.bf16.msra.mxu0 %v4501
        %4524 = vmatprep.subr.bf16.mxu0 0
        %4525 = vmatpush1.bf16.msra.mxu0 %v4500
        %4526 = vmatprep.subr.bf16.mxu0 0
        %4527 = vmatpush1.bf16.msra.mxu0 %v4499
        %4528 = vmatprep.subr.bf16.mxu0 0
        %4529 = vmatpush1.bf16.msra.mxu0 %v4498
        %4530 = vmatprep.subr.bf16.mxu0 0
        %4531 = vmatpush2.bf16.msra.mxu0 0
        %4532 = vmatprep.subr.bf16.mxu0 0
        %4533 = vmatpush2.bf16.msra.mxu0 0
        %4534 = vmatprep.subr.bf16.mxu0 0
        %4535 = vmatpush2.bf16.msra.mxu0 0
        %4536 = vmatprep.subr.bf16.mxu0 0
        %4537 = vmatpush2.bf16.msra.mxu0 0
        %4538 = vmatprep.subr.bf16.mxu0 0
        %4539 = vmatpush2.bf16.msra.mxu0 0
        %4540 = vmatprep.subr.bf16.mxu0 0
        %4541 = vmatpush2.bf16.msra.mxu0 0
        %4542 = vmatprep.subr.bf16.mxu0 0
        %4543 = vmatpush2.bf16.msra.mxu0 0
        %4544 = vmatprep.subr.bf16.mxu0 0
        %4545 = vmatpush2.bf16.msra.mxu0 0
        %4546 = vmatprep.mubr.bf16.mxu0 0
        %4547 = vmatmul.mubr.bf16.gmra.mxu0 %v4464
        %v4548 = vpop.f32.mrf.mxu0
        %v4549 = vadd.f32 0.0, %v4548
        %v4550 = vpop.f32.mrf.mxu0
        %v4551 = vpop.f32.mrf.mxu0
        %v4552 = vpop.f32.mrf.mxu0
        %4553 = vdwg.mxu0
        %v4554 = vadd.f32 %v4458, %v4549
        %v4555 = vrot.slane %v4284, 1
        %v4573 = vunpack.c.l.b16 %v757
        %v4574 = vunpack.c.l.b16 %v758
        %v4575 = vunpack.c.l.b16 %v759
        %v4576 = vunpack.c.l.b16 %v760
        %v4577 = vunpack.c.l.b16 %v761
        %v4578 = vunpack.c.l.b16 %v762
        %v4579 = vunpack.c.l.b16 %v763
        %v4580 = vunpack.c.l.b16 %v764
        %v4581 = vunpack.c.l.b16 %v765
        %v4582 = vunpack.c.l.b16 %v766
        %v4583 = vunpack.c.l.b16 %v767
        %v4584 = vunpack.c.l.b16 %v768
        %v4585 = vunpack.c.l.b16 %v769
        %v4586 = vunpack.c.l.b16 %v770
        %v4587 = vunpack.c.l.b16 %v771
        %v4588 = vunpack.c.l.b16 %v772
        %v4589 = vpack.c.b16 %v4574, %v4573
        %v4590 = vpack.c.b16 %v4576, %v4575
        %v4591 = vpack.c.b16 %v4578, %v4577
        %v4592 = vpack.c.b16 %v4580, %v4579
        %v4593 = vpack.c.b16 %v4582, %v4581
        %v4594 = vpack.c.b16 %v4584, %v4583
        %v4595 = vpack.c.b16 %v4586, %v4585
        %v4596 = vpack.c.b16 %v4588, %v4587
        %4605 = vmatprep.subr.bf16.mxu0 0
        %4606 = vmatpush1.bf16.msra.mxu0 %v4596
        %4607 = vmatprep.subr.bf16.mxu0 0
        %4608 = vmatpush1.bf16.msra.mxu0 %v4595
        %4609 = vmatprep.subr.bf16.mxu0 0
        %4610 = vmatpush1.bf16.msra.mxu0 %v4594
        %4611 = vmatprep.subr.bf16.mxu0 0
        %4612 = vmatpush1.bf16.msra.mxu0 %v4593
        %4613 = vmatprep.subr.bf16.mxu0 0
        %4614 = vmatpush1.bf16.msra.mxu0 %v4592
        %4615 = vmatprep.subr.bf16.mxu0 0
        %4616 = vmatpush1.bf16.msra.mxu0 %v4591
        %4617 = vmatprep.subr.bf16.mxu0 0
        %4618 = vmatpush1.bf16.msra.mxu0 %v4590
        %4619 = vmatprep.subr.bf16.mxu0 0
        %4620 = vmatpush1.bf16.msra.mxu0 %v4589
        %4621 = vmatprep.subr.bf16.mxu0 0
        %4622 = vmatpush2.bf16.msra.mxu0 0
        %4623 = vmatprep.subr.bf16.mxu0 0
        %4624 = vmatpush2.bf16.msra.mxu0 0
        %4625 = vmatprep.subr.bf16.mxu0 0
        %4626 = vmatpush2.bf16.msra.mxu0 0
        %4627 = vmatprep.subr.bf16.mxu0 0
        %4628 = vmatpush2.bf16.msra.mxu0 0
        %4629 = vmatprep.subr.bf16.mxu0 0
        %4630 = vmatpush2.bf16.msra.mxu0 0
        %4631 = vmatprep.subr.bf16.mxu0 0
        %4632 = vmatpush2.bf16.msra.mxu0 0
        %4633 = vmatprep.subr.bf16.mxu0 0
        %4634 = vmatpush2.bf16.msra.mxu0 0
        %4635 = vmatprep.subr.bf16.mxu0 0
        %4636 = vmatpush2.bf16.msra.mxu0 0
        %4637 = vmatprep.mubr.bf16.mxu0 0
        %4638 = vmatmul.mubr.bf16.gmra.mxu0 %v4555
        %v4639 = vpop.f32.mrf.mxu0
        %v4640 = vadd.f32 0.0, %v4639
        %v4641 = vpop.f32.mrf.mxu0
        %v4642 = vpop.f32.mrf.mxu0
        %v4643 = vpop.f32.mrf.mxu0
        %4644 = vdwg.mxu0
        %v4645 = vadd.f32 %v4554, %v4640
        %v4646 = vrot.slane %v4282, 2
        %v4664 = vunpack.c.l.b16 %v773
        %v4665 = vunpack.c.l.b16 %v774
        %v4666 = vunpack.c.l.b16 %v775
        %v4667 = vunpack.c.l.b16 %v776
        %v4668 = vunpack.c.l.b16 %v777
        %v4669 = vunpack.c.l.b16 %v778
        %v4670 = vunpack.c.l.b16 %v779
        %v4671 = vunpack.c.l.b16 %v780
        %v4672 = vunpack.c.l.b16 %v781
        %v4673 = vunpack.c.l.b16 %v782
        %v4674 = vunpack.c.l.b16 %v783
        %v4675 = vunpack.c.l.b16 %v784
        %v4676 = vunpack.c.l.b16 %v785
        %v4677 = vunpack.c.l.b16 %v786
        %v4678 = vunpack.c.l.b16 %v787
        %v4679 = vunpack.c.l.b16 %v788
        %v4680 = vpack.c.b16 %v4665, %v4664
        %v4681 = vpack.c.b16 %v4667, %v4666
        %v4682 = vpack.c.b16 %v4669, %v4668
        %v4683 = vpack.c.b16 %v4671, %v4670
        %v4684 = vpack.c.b16 %v4673, %v4672
        %v4685 = vpack.c.b16 %v4675, %v4674
        %v4686 = vpack.c.b16 %v4677, %v4676
        %v4687 = vpack.c.b16 %v4679, %v4678
        %4696 = vmatprep.subr.bf16.mxu0 0
        %4697 = vmatpush1.bf16.msra.mxu0 %v4687
        %4698 = vmatprep.subr.bf16.mxu0 0
        %4699 = vmatpush1.bf16.msra.mxu0 %v4686
        %4700 = vmatprep.subr.bf16.mxu0 0
        %4701 = vmatpush1.bf16.msra.mxu0 %v4685
        %4702 = vmatprep.subr.bf16.mxu0 0
        %4703 = vmatpush1.bf16.msra.mxu0 %v4684
        %4704 = vmatprep.subr.bf16.mxu0 0
        %4705 = vmatpush1.bf16.msra.mxu0 %v4683
        %4706 = vmatprep.subr.bf16.mxu0 0
        %4707 = vmatpush1.bf16.msra.mxu0 %v4682
        %4708 = vmatprep.subr.bf16.mxu0 0
        %4709 = vmatpush1.bf16.msra.mxu0 %v4681
        %4710 = vmatprep.subr.bf16.mxu0 0
        %4711 = vmatpush1.bf16.msra.mxu0 %v4680
        %4712 = vmatprep.subr.bf16.mxu0 0
        %4713 = vmatpush2.bf16.msra.mxu0 0
        %4714 = vmatprep.subr.bf16.mxu0 0
        %4715 = vmatpush2.bf16.msra.mxu0 0
        %4716 = vmatprep.subr.bf16.mxu0 0
        %4717 = vmatpush2.bf16.msra.mxu0 0
        %4718 = vmatprep.subr.bf16.mxu0 0
        %4719 = vmatpush2.bf16.msra.mxu0 0
        %4720 = vmatprep.subr.bf16.mxu0 0
        %4721 = vmatpush2.bf16.msra.mxu0 0
        %4722 = vmatprep.subr.bf16.mxu0 0
        %4723 = vmatpush2.bf16.msra.mxu0 0
        %4724 = vmatprep.subr.bf16.mxu0 0
        %4725 = vmatpush2.bf16.msra.mxu0 0
        %4726 = vmatprep.subr.bf16.mxu0 0
        %4727 = vmatpush2.bf16.msra.mxu0 0
        %4728 = vmatprep.mubr.bf16.mxu0 0
        %4729 = vmatmul.mubr.bf16.gmra.mxu0 %v4646
        %v4730 = vpop.f32.mrf.mxu0
        %v4731 = vadd.f32 0.0, %v4730
        %v4732 = vpop.f32.mrf.mxu0
        %v4733 = vpop.f32.mrf.mxu0
        %v4734 = vpop.f32.mrf.mxu0
        %4735 = vdwg.mxu0
        %v4736 = vadd.f32 %v4645, %v4731
        %v4737 = vld [vmem:[%s6] sm:$0x1]
        %v4738 = vadd.f32 %v4736, %v4737
        %v4739 = vmax.f32 %v4738, 0.0
        %v4740 = vpack.c.bf16 %v4739, %v4739
        %v4741 = vld [vmem:[%s7] sm:$0xf]
        %v4742 = vld [vmem:[%s7 + $0x4] sm:$0xf]
        %v4743 = vld [vmem:[%s7 + $0x8] sm:$0xf]
        %v4744 = vld [vmem:[%s7 + $0xc] sm:$0xf]
        %v4745 = vld [vmem:[%s7 + $0x10] sm:$0xf]
        %v4746 = vld [vmem:[%s7 + $0x14] sm:$0xf]
        %v4747 = vld [vmem:[%s7 + $0x18] sm:$0xf]
        %v4748 = vld [vmem:[%s7 + $0x1c] sm:$0xf]
        %v4749 = vld [vmem:[%s7 + $0x20] sm:$0xf]
        %v4750 = vld [vmem:[%s7 + $0x24] sm:$0xf]
        %v4751 = vld [vmem:[%s7 + $0x28] sm:$0xf]
        %v4752 = vld [vmem:[%s7 + $0x2c] sm:$0xf]
        %v4753 = vld [vmem:[%s7 + $0x30] sm:$0xf]
        %v4754 = vld [vmem:[%s7 + $0x34] sm:$0xf]
        %v4755 = vld [vmem:[%s7 + $0x38] sm:$0xf]
        %v4756 = vld [vmem:[%s7 + $0x3c] sm:$0xf]
        %v4757 = vld [vmem:[%s8] sm:$0x1]
        %v4774 = vunpack.c.l.b16 %v4741
        %v4775 = vunpack.c.l.b16 %v4742
        %v4776 = vunpack.c.l.b16 %v4743
        %v4777 = vunpack.c.l.b16 %v4744
        %v4778 = vunpack.c.l.b16 %v4745
        %v4779 = vunpack.c.l.b16 %v4746
        %v4780 = vunpack.c.l.b16 %v4747
        %v4781 = vunpack.c.l.b16 %v4748
        %v4782 = vunpack.c.l.b16 %v4749
        %v4783 = vunpack.c.l.b16 %v4750
        %v4784 = vunpack.c.l.b16 %v4751
        %v4785 = vunpack.c.l.b16 %v4752
        %v4786 = vunpack.c.l.b16 %v4753
        %v4787 = vunpack.c.l.b16 %v4754
        %v4788 = vunpack.c.l.b16 %v4755
        %v4789 = vunpack.c.l.b16 %v4756
        %v4790 = vpack.c.b16 %v4775, %v4774
        %v4791 = vpack.c.b16 %v4777, %v4776
        %v4792 = vpack.c.b16 %v4779, %v4778
        %v4793 = vpack.c.b16 %v4781, %v4780
        %v4794 = vpack.c.b16 %v4783, %v4782
        %v4795 = vpack.c.b16 %v4785, %v4784
        %v4796 = vpack.c.b16 %v4787, %v4786
        %v4797 = vpack.c.b16 %v4789, %v4788
        %4806 = vmatprep.subr.bf16.mxu0 0
        %4807 = vmatpush1.bf16.msra.mxu0 %v4797
        %4808 = vmatprep.subr.bf16.mxu0 0
        %4809 = vmatpush1.bf16.msra.mxu0 %v4796
        %4810 = vmatprep.subr.bf16.mxu0 0
        %4811 = vmatpush1.bf16.msra.mxu0 %v4795
        %4812 = vmatprep.subr.bf16.mxu0 0
        %4813 = vmatpush1.bf16.msra.mxu0 %v4794
        %4814 = vmatprep.subr.bf16.mxu0 0
        %4815 = vmatpush1.bf16.msra.mxu0 %v4793
        %4816 = vmatprep.subr.bf16.mxu0 0
        %4817 = vmatpush1.bf16.msra.mxu0 %v4792
        %4818 = vmatprep.subr.bf16.mxu0 0
        %4819 = vmatpush1.bf16.msra.mxu0 %v4791
        %4820 = vmatprep.subr.bf16.mxu0 0
        %4821 = vmatpush1.bf16.msra.mxu0 %v4790
        %4822 = vmatprep.subr.bf16.mxu0 0
        %4823 = vmatpush2.bf16.msra.mxu0 0
        %4824 = vmatprep.subr.bf16.mxu0 0
        %4825 = vmatpush2.bf16.msra.mxu0 0
        %4826 = vmatprep.subr.bf16.mxu0 0
        %4827 = vmatpush2.bf16.msra.mxu0 0
        %4828 = vmatprep.subr.bf16.mxu0 0
        %4829 = vmatpush2.bf16.msra.mxu0 0
        %4830 = vmatprep.subr.bf16.mxu0 0
        %4831 = vmatpush2.bf16.msra.mxu0 0
        %4832 = vmatprep.subr.bf16.mxu0 0
        %4833 = vmatpush2.bf16.msra.mxu0 0
        %4834 = vmatprep.subr.bf16.mxu0 0
        %4835 = vmatpush2.bf16.msra.mxu0 0
        %4836 = vmatprep.subr.bf16.mxu0 0
        %4837 = vmatpush2.bf16.msra.mxu0 0
        %4838 = vmatprep.mubr.bf16.mxu0 0
        %4839 = vmatmul.mubr.bf16.gmra.mxu0 %v4740
        %v4840 = vpop.f32.mrf.mxu0
        %v4841 = vadd.f32 %v4757, %v4840
        %v4842 = vpop.f32.mrf.mxu0
        %v4843 = vpop.f32.mrf.mxu0
        %v4844 = vpop.f32.mrf.mxu0
        %4845 = vdwg.mxu0
        %v4846 = vmax.f32 %v4841, 0.0
        %v4847 = vpack.c.bf16 %v4846, %v4846
        %v4848 = vld [vmem:[%s9] sm:$0xf]
        %v4849 = vld [vmem:[%s9 + $0x4] sm:$0xf]
        %v4850 = vld [vmem:[%s9 + $0x8] sm:$0xf]
        %v4851 = vld [vmem:[%s9 + $0xc] sm:$0xf]
        %v4852 = vld [vmem:[%s9 + $0x10] sm:$0xf]
        %v4853 = vld [vmem:[%s9 + $0x14] sm:$0xf]
        %v4854 = vld [vmem:[%s9 + $0x18] sm:$0xf]
        %v4855 = vld [vmem:[%s9 + $0x1c] sm:$0xf]
        %v4856 = vld [vmem:[%s9 + $0x20] sm:$0xf]
        %v4857 = vld [vmem:[%s9 + $0x24] sm:$0xf]
        %v4858 = vld [vmem:[%s9 + $0x28] sm:$0xf]
        %v4859 = vld [vmem:[%s9 + $0x2c] sm:$0xf]
        %v4860 = vld [vmem:[%s9 + $0x30] sm:$0xf]
        %v4861 = vld [vmem:[%s9 + $0x34] sm:$0xf]
        %v4862 = vld [vmem:[%s9 + $0x38] sm:$0xf]
        %v4863 = vld [vmem:[%s9 + $0x3c] sm:$0xf]
        %v4864 = vld [vmem:[%s10] sm:$0x1]
        %v4881 = vunpack.c.l.b16 %v4848
        %v4882 = vunpack.c.l.b16 %v4849
        %v4883 = vunpack.c.l.b16 %v4850
        %v4884 = vunpack.c.l.b16 %v4851
        %v4885 = vunpack.c.l.b16 %v4852
        %v4886 = vunpack.c.l.b16 %v4853
        %v4887 = vunpack.c.l.b16 %v4854
        %v4888 = vunpack.c.l.b16 %v4855
        %v4889 = vunpack.c.l.b16 %v4856
        %v4890 = vunpack.c.l.b16 %v4857
        %v4891 = vunpack.c.l.b16 %v4858
        %v4892 = vunpack.c.l.b16 %v4859
        %v4893 = vunpack.c.l.b16 %v4860
        %v4894 = vunpack.c.l.b16 %v4861
        %v4895 = vunpack.c.l.b16 %v4862
        %v4896 = vunpack.c.l.b16 %v4863
        %v4897 = vpack.c.b16 %v4882, %v4881
        %v4898 = vpack.c.b16 %v4884, %v4883
        %v4899 = vpack.c.b16 %v4886, %v4885
        %v4900 = vpack.c.b16 %v4888, %v4887
        %v4901 = vpack.c.b16 %v4890, %v4889
        %v4902 = vpack.c.b16 %v4892, %v4891
        %v4903 = vpack.c.b16 %v4894, %v4893
        %v4904 = vpack.c.b16 %v4896, %v4895
        %4913 = vmatprep.subr.bf16.mxu0 0
        %4914 = vmatpush1.bf16.msra.mxu0 %v4904
        %4915 = vmatprep.subr.bf16.mxu0 0
        %4916 = vmatpush1.bf16.msra.mxu0 %v4903
        %4917 = vmatprep.subr.bf16.mxu0 0
        %4918 = vmatpush1.bf16.msra.mxu0 %v4902
        %4919 = vmatprep.subr.bf16.mxu0 0
        %4920 = vmatpush1.bf16.msra.mxu0 %v4901
        %4921 = vmatprep.subr.bf16.mxu0 0
        %4922 = vmatpush1.bf16.msra.mxu0 %v4900
        %4923 = vmatprep.subr.bf16.mxu0 0
        %4924 = vmatpush1.bf16.msra.mxu0 %v4899
        %4925 = vmatprep.subr.bf16.mxu0 0
        %4926 = vmatpush1.bf16.msra.mxu0 %v4898
        %4927 = vmatprep.subr.bf16.mxu0 0
        %4928 = vmatpush1.bf16.msra.mxu0 %v4897
        %4929 = vmatprep.subr.bf16.mxu0 0
        %4930 = vmatpush2.bf16.msra.mxu0 0
        %4931 = vmatprep.subr.bf16.mxu0 0
        %4932 = vmatpush2.bf16.msra.mxu0 0
        %4933 = vmatprep.subr.bf16.mxu0 0
        %4934 = vmatpush2.bf16.msra.mxu0 0
        %4935 = vmatprep.subr.bf16.mxu0 0
        %4936 = vmatpush2.bf16.msra.mxu0 0
        %4937 = vmatprep.subr.bf16.mxu0 0
        %4938 = vmatpush2.bf16.msra.mxu0 0
        %4939 = vmatprep.subr.bf16.mxu0 0
        %4940 = vmatpush2.bf16.msra.mxu0 0
        %4941 = vmatprep.subr.bf16.mxu0 0
        %4942 = vmatpush2.bf16.msra.mxu0 0
        %4943 = vmatprep.subr.bf16.mxu0 0
        %4944 = vmatpush2.bf16.msra.mxu0 0
        %4945 = vmatprep.mubr.bf16.mxu0 0
        %4946 = vmatmul.mubr.bf16.gmra.mxu0 %v4847
        %v4947 = vpop.f32.mrf.mxu0
        %v4948 = vadd.f32 %v4864, %v4947
        %v4949 = vpop.f32.mrf.mxu0
        %v4950 = vpop.f32.mrf.mxu0
        %v4951 = vpop.f32.mrf.mxu0
        %4952 = vdwg.mxu0
        %4953 = vst [vmem:[%s378] sm:$0x1] %v4948
        %s4954 = sand.u32 %s269, 1
        %s4955 = scalar_lea.sflag [#allocation3], %s4954
        %s4956 = sand.u32 %s269, 1
        %s4957 = scalar_lea.vmem [#allocation2], %s4956
        // Predicated region
        $region65: #{cifar_net_forward.1} parent=63 // pred_check
          %p4958 = pneg %p279
        $region66: #{cifar_net_forward.1} parent=63 // pred_check_branch
          %4960 = sbr.rel (%p4958) target = $region68
        $region67: #{cifar_net_forward.1} parent=63 // pred_region
          %s4962 = ssub.s32 16, 16
          %4963 = vsyncadd %s4955, %s4962
          %s4964 = smul.addr %s25, 16
          %s4965 = scalar_lea.hbm %s11, %s4964
          %s4967 = sshll.u32 %s4957, 4
          %s4968 = int_to_ptr.vmem [resolvable:$true] %s4967
          %4970 = dma.vmem_to_hbm [thread:$0]  %s4968, 16, %s4965, %s4955
        $region68: #{cifar_net_forward.1} parent=63 // pred_fallthru
          _
      $region64: #{cifar_net_forward.1} parent=5 // pred_fallthru
        _
      %p4971 = scmp.le.s32.totalorder 2, %s20
      // Predicated region
      $region69: #{cifar_net_forward.1} parent=5 // pred_check
        %p4972 = pneg %p4971
      $region70: #{cifar_net_forward.1} parent=5 // pred_check_branch
        %4974 = sbr.rel (%p4972) target = $region72
      $region71: #{cifar_net_forward.1} parent=5 // pred_region
        %s4975 = ssub.s32 %s20, 2
        // Predicated region
        $region73: #{cifar_net_forward.1} parent=71 // pred_check
          %p4976 = pneg %p285
        $region74: #{cifar_net_forward.1} parent=71 // pred_check_branch
          %4978 = sbr.rel (%p4976) target = $region76
        $region75: #{cifar_net_forward.1} parent=71 // pred_region
          %s4979 = sand.u32 %s270, 1
          %s4980 = scalar_lea.sflag [#allocation3], %s4979
          %s4981 = sand.u32 %s270, 1
          %s4982 = scalar_lea.vmem [#allocation2], %s4981
          %4983 = dma.done %s4980, 16
        $region76: #{cifar_net_forward.1} parent=71 // pred_fallthru
          _
      $region72: #{cifar_net_forward.1} parent=5 // pred_fallthru
        _
    $region6: #{cifar_net_forward.1} parent=1 // loop_footer
      %s24 = sadd.s32 1, %s20
    $region7: #{cifar_net_forward.1} parent=1 // loop_footer_branch
      %19 = sbr.rel target = $region3
    $region8: #{cifar_net_forward.1} parent=1 // loop_exit
      _
    %4984 = vsyncpa [#allocation3], 1
    %s4985 = scalar_lea.sflag [#allocation3], 1
    %4986 = vsyncpa %s4985, 1

</llo_original>
